<compile_context>
chip_gen: v6e
topology: v6e:2x2x1
jax: 0.10.0
libtpu: 0.0.40
codegen_flags: <defaults>
</compile_context>

<pallas_src>
import functools
import math

import jax
import jax.numpy as jnp
from jax.experimental import pallas as pl
from jax.experimental.pallas import tpu as pltpu

# ----------------------------- config ---------------------------------------
VOCAB = 256
MAX_SEQ = 16
HIDDEN = 256
N_HEADS = 2
HEAD_DIM = HIDDEN // N_HEADS            # 128 -> lane-aligned head slices
FFN = 512
N_LAYERS = 2
PAD_ID = 1          # RoBERTa pad token id (and padding_idx for positions)
NUM_CHOICES = 5
LN_EPS = 1e-5


# --------------------------- kernel helpers ----------------------------------
def _layernorm(x, g, b, eps=LN_EPS):
    """LayerNorm over the last axis, f32 math."""
    mu = jnp.mean(x, axis=-1, keepdims=True)
    var = jnp.mean(jnp.square(x - mu), axis=-1, keepdims=True)
    return (x - mu) * jax.lax.rsqrt(var + eps) * g + b


# --------------------------- fused encoder kernel ----------------------------
def _encoder_kernel(
    emb_ref, bias_ref, emb_g_ref, emb_b_ref,
    wqkv_ref, bqkv_ref, wo_ref, bo_ref, ln1_g_ref, ln1_b_ref,
    w1_ref, fb1_ref, w2_ref, fb2_ref, ln2_g_ref, ln2_b_ref,
    pool_w_ref, pool_b_ref, cls_w_ref, cls_b_ref,
    logits_ref, x_sc,
    *, n_seq, seq_len, n_heads, head_dim, hidden,
):
    layer = pl.program_id(1)
    n_layers = pl.num_programs(1)
    scale = 1.0 / math.sqrt(head_dim)

    # ---- embedding LayerNorm on the first layer step (no zeros residual) ----
    @pl.when(layer == 0)
    def _():
        x_sc[...] = _layernorm(emb_ref[...], emb_g_ref[...], emb_b_ref[...])

    x = x_sc[...]                                  # (n_seq*seq_len, hidden) f32, VMEM-resident

    # ---- fused Q|K|V projection: one MXU matmul (bf16 in, f32 accumulate) ----
    qkv = jnp.dot(x.astype(jnp.bfloat16), wqkv_ref[...],
                  preferred_element_type=jnp.float32) + bqkv_ref[...]

    bias = bias_ref[...]                           # (n_seq, 1, seq_len); broadcast in VMEM

    # ---- attention with in-kernel head split (all slices 128-lane aligned) ----
    ctx_heads = []
    for h in range(n_heads):                       # static unroll (2 heads)
        lo = h * head_dim
        qh = qkv[:, lo:lo + head_dim].reshape(n_seq, seq_len, head_dim).astype(jnp.bfloat16)
        kh = qkv[:, hidden + lo:hidden + lo + head_dim].reshape(
            n_seq, seq_len, head_dim).astype(jnp.bfloat16)
        vh = qkv[:, 2 * hidden + lo:2 * hidden + lo + head_dim].reshape(
            n_seq, seq_len, head_dim).astype(jnp.bfloat16)

        s = jnp.einsum("bqd,bkd->bqk", qh, kh,
                       preferred_element_type=jnp.float32) * scale + bias
        # softmax in f32; max-subtraction for numerical stability
        s = s - jnp.max(s, axis=-1, keepdims=True)
        p = jnp.exp(s)
        p = p * pl.reciprocal(jnp.sum(p, axis=-1, keepdims=True), approx=True)

        ctx = jnp.einsum("bqk,bkd->bqd", p.astype(jnp.bfloat16), vh,
                         preferred_element_type=jnp.float32)
        ctx_heads.append(ctx.reshape(n_seq * seq_len, head_dim))
    ctx = jnp.concatenate(ctx_heads, axis=-1)      # (tokens, hidden) f32

    # ---- attention output projection + residual + LayerNorm (fused epilogue) ----
    attn = jnp.dot(ctx.astype(jnp.bfloat16), wo_ref[...],
                   preferred_element_type=jnp.float32) + bo_ref[...]
    x = _layernorm(attn + x, ln1_g_ref[...], ln1_b_ref[...])

    # ---- FFN (gelu fused) + residual + LayerNorm (fused epilogue) ----
    h1 = jnp.dot(x.astype(jnp.bfloat16), w1_ref[...],
                 preferred_element_type=jnp.float32) + fb1_ref[...]
    # TODO(synk): RoBERTa uses exact erf-gelu; tanh-approx gelu is used here (EUP tanh).
    h1 = jax.nn.gelu(h1, approximate=True)
    h2 = jnp.dot(h1.astype(jnp.bfloat16), w2_ref[...],
                 preferred_element_type=jnp.float32) + fb2_ref[...]
    x = _layernorm(h2 + x, ln2_g_ref[...], ln2_b_ref[...])
    x_sc[...] = x                                  # carry to next layer in VMEM

    # ---- pooler + classifier, fused into the last layer step ----
    @pl.when(layer == n_layers - 1)
    def _():
        cls = x.reshape(n_seq, seq_len, hidden)[:, 0, :]          # [CLS] (<s>) tokens
        pooled = jnp.tanh(
            jnp.dot(cls.astype(jnp.bfloat16), pool_w_ref[...],
                    preferred_element_type=jnp.float32) + pool_b_ref[...])
        # Dropout is identity at inference; (hidden,1) classifier as VPU mul + lane reduce
        logits_ref[...] = (jnp.sum(pooled * cls_w_ref[...], axis=-1, keepdims=True)
                           + cls_b_ref[...])


def _encoder_pallas(p, emb_blocks, bias_blocks):
    """emb_blocks:(nb, n_seq*L, H) f32, bias_blocks:(nb, n_seq, 1, L) f32 -> (nb, n_seq, 1)."""
    n_blocks, mb, hidden = emb_blocks.shape
    n_seq = bias_blocks.shape[1]
    seq_len = bias_blocks.shape[3]
    grid = (n_blocks, N_LAYERS)

    per_block3 = lambda b, l: (b, 0, 0)
    per_block4 = lambda b, l: (b, 0, 0, 0)
    per_layer3 = lambda b, l: (l, 0, 0)
    const2 = lambda b, l: (0, 0)

    kernel = functools.partial(
        _encoder_kernel,
        n_seq=n_seq, seq_len=seq_len, n_heads=N_HEADS,
        head_dim=HEAD_DIM, hidden=hidden)

    return pl.pallas_call(
        kernel,
        grid=grid,
        in_specs=[
            pl.BlockSpec((None, mb, hidden), per_block3),           # emb
            pl.BlockSpec((None, n_seq, 1, seq_len), per_block4),    # mask bias
            pl.BlockSpec((1, hidden), const2),                      # emb_ln_g
            pl.BlockSpec((1, hidden), const2),                      # emb_ln_b
            pl.BlockSpec((None, hidden, 3 * hidden), per_layer3),   # wqkv
            pl.BlockSpec((None, 1, 3 * hidden), per_layer3),        # bqkv
            pl.BlockSpec((None, hidden, hidden), per_layer3),       # wo
            pl.BlockSpec((None, 1, hidden), per_layer3),            # bo
            pl.BlockSpec((None, 1, hidden), per_layer3),            # ln1_g
            pl.BlockSpec((None, 1, hidden), per_layer3),            # ln1_b
            pl.BlockSpec((None, hidden, FFN), per_layer3),          # w1
            pl.BlockSpec((None, 1, FFN), per_layer3),               # b1
            pl.BlockSpec((None, FFN, hidden), per_layer3),          # w2
            pl.BlockSpec((None, 1, hidden), per_layer3),            # b2
            pl.BlockSpec((None, 1, hidden), per_layer3),            # ln2_g
            pl.BlockSpec((None, 1, hidden), per_layer3),            # ln2_b
            pl.BlockSpec((hidden, hidden), const2),                 # pool_w
            pl.BlockSpec((1, hidden), const2),                      # pool_b
            pl.BlockSpec((1, hidden), const2),                      # cls_w
            pl.BlockSpec((1, 1), const2),                           # cls_b
        ],
        out_specs=pl.BlockSpec((None, n_seq, 1), per_block3),
        out_shape=jax.ShapeDtypeStruct((n_blocks, n_seq, 1), jnp.float32),
        scratch_shapes=[pltpu.VMEM((mb, hidden), jnp.float32)],
        compiler_params=pltpu.CompilerParams(
            dimension_semantics=("parallel", "arbitrary")),
    )(emb_blocks, bias_blocks,
      p["emb_ln_g"], p["emb_ln_b"],
      p["wqkv"], p["bqkv"], p["wo"], p["bo"], p["ln1_g"], p["ln1_b"],
      p["w1"], p["b1"], p["w2"], p["b2"], p["ln2_g"], p["ln2_b"],
      p["pool_w"], p["pool_b"], p["cls_w"], p["cls_b"])


# ----------------------------- parameters -----------------------------------
def init_params(key):
    keys = iter(jax.random.split(key, 64))

    def nrm(shape, dtype=jnp.float32):
        return (0.02 * jax.random.normal(next(keys), shape, jnp.float32)).astype(dtype)

    return {
        "word_emb": nrm((VOCAB, HIDDEN)),
        "pos_emb": nrm((MAX_SEQ + 4, HIDDEN)),
        "type_emb": nrm((1, HIDDEN)),
        "emb_ln_g": jnp.ones((1, HIDDEN), jnp.float32),
        "emb_ln_b": jnp.zeros((1, HIDDEN), jnp.float32),
        # per-layer weights stacked on a leading layer axis; Q|K|V fused; bf16 MXU inputs
        "wqkv": nrm((N_LAYERS, HIDDEN, 3 * HIDDEN), jnp.bfloat16),
        "bqkv": jnp.zeros((N_LAYERS, 1, 3 * HIDDEN), jnp.float32),
        "wo": nrm((N_LAYERS, HIDDEN, HIDDEN), jnp.bfloat16),
        "bo": jnp.zeros((N_LAYERS, 1, HIDDEN), jnp.float32),
        "ln1_g": jnp.ones((N_LAYERS, 1, HIDDEN), jnp.float32),
        "ln1_b": jnp.zeros((N_LAYERS, 1, HIDDEN), jnp.float32),
        "w1": nrm((N_LAYERS, HIDDEN, FFN), jnp.bfloat16),
        "b1": jnp.zeros((N_LAYERS, 1, FFN), jnp.float32),
        "w2": nrm((N_LAYERS, FFN, HIDDEN), jnp.bfloat16),
        "b2": jnp.zeros((N_LAYERS, 1, HIDDEN), jnp.float32),
        "ln2_g": jnp.ones((N_LAYERS, 1, HIDDEN), jnp.float32),
        "ln2_b": jnp.zeros((N_LAYERS, 1, HIDDEN), jnp.float32),
        "pool_w": nrm((HIDDEN, HIDDEN), jnp.bfloat16),
        "pool_b": jnp.zeros((1, HIDDEN), jnp.float32),
        "cls_w": nrm((1, HIDDEN)),                 # f32: used on the VPU (mul + lane reduce)
        "cls_b": jnp.zeros((1, 1), jnp.float32),
    }


# ------------------------------ forward -------------------------------------
def bd2bb_forward(params, input_ids, input_mask):
    """input_ids:(N,L) int32, input_mask:(N,L) float32 -> logits (N//5, 5)."""
    N, L = input_ids.shape

    # RoBERTa position ids: cumsum of non-pad mask * mask + padding_idx   (glue)
    nonpad = (input_ids != PAD_ID).astype(jnp.int32)
    position_ids = jnp.cumsum(nonpad, axis=1) * nonpad + PAD_ID

    # Embedding gathers stay in XLA (plain jnp.take); the kernel starts at the LN.
    emb = (jnp.take(params["word_emb"], input_ids, axis=0)
           + jnp.take(params["pos_emb"], position_ids, axis=0)
           + params["type_emb"][0])                      # token type 0 everywhere

    # One grid block = one sentence's NUM_CHOICES (intention, ending) sequences.
    n_blocks = N // NUM_CHOICES
    emb_blocks = emb.reshape(n_blocks, NUM_CHOICES * L, HIDDEN).astype(jnp.float32)
    # Extended attention mask bias (N,1,L); head/query broadcast happens inside the kernel.
    bias_blocks = ((1.0 - input_mask.astype(jnp.float32)) * -1e9
                   ).reshape(n_blocks, NUM_CHOICES, 1, L)

    logits = _encoder_pallas(params, emb_blocks, bias_blocks)   # (n_blocks, NUM_CHOICES, 1)
    return logits.reshape(-1, NUM_CHOICES)                      # (N/5, 5)


# -------------------------------- main ---------------------------------------
if __name__ == "__main__":
    key = jax.random.PRNGKey(0)
    pkey, ikey = jax.random.split(key)
    params = init_params(pkey)

    num_sents = 2
    N = num_sents * NUM_CHOICES            # 5 (intention, ending) pairs per sentence

    # Synthesize "tokenized" inputs deterministically (tokenizer is untranslatable).
    ids = jax.random.randint(ikey, (N, MAX_SEQ), 2, VOCAB, dtype=jnp.int32)
    ids = ids.at[:, 0].set(0)                                   # <s> token
    lengths = (jnp.arange(N) % 6 + 10)[:, None]                 # varied seq lengths
    col = jnp.arange(MAX_SEQ)[None, :]
    ids = jnp.where(col < lengths, ids, PAD_ID)                 # pad with 1 (as in module)
    # The reference code pads the attention mask with 1s as well -> all-ones mask.
    input_mask = jnp.ones((N, MAX_SEQ), jnp.float32)

    fwd = jax.jit(bd2bb_forward)
    logits = fwd(params, ids, input_mask)
    jax.block_until_ready(logits)

    assert logits.shape == (num_sents, NUM_CHOICES), logits.shape
    assert logits.dtype == jnp.float32
    assert bool(jnp.all(jnp.isfinite(logits)))
    print("KERNEL_OK")
</pallas_src>

<mosaic_0001>
module attributes {stable_mosaic.version = 11 : i64} {
  func.func @_encoder_kernel(%arg0: i32, %arg1: i32, %arg2: memref<1x80x256xf32, #tpu.memory_space<vmem>>, %arg3: memref<1x5x1x16xf32, #tpu.memory_space<vmem>>, %arg4: memref<1x256xf32, #tpu.memory_space<vmem>>, %arg5: memref<1x256xf32, #tpu.memory_space<vmem>>, %arg6: memref<1x256x768xbf16, #tpu.memory_space<vmem>>, %arg7: memref<1x1x768xf32, #tpu.memory_space<vmem>>, %arg8: memref<1x256x256xbf16, #tpu.memory_space<vmem>>, %arg9: memref<1x1x256xf32, #tpu.memory_space<vmem>>, %arg10: memref<1x1x256xf32, #tpu.memory_space<vmem>>, %arg11: memref<1x1x256xf32, #tpu.memory_space<vmem>>, %arg12: memref<1x256x512xbf16, #tpu.memory_space<vmem>>, %arg13: memref<1x1x512xf32, #tpu.memory_space<vmem>>, %arg14: memref<1x512x256xbf16, #tpu.memory_space<vmem>>, %arg15: memref<1x1x256xf32, #tpu.memory_space<vmem>>, %arg16: memref<1x1x256xf32, #tpu.memory_space<vmem>>, %arg17: memref<1x1x256xf32, #tpu.memory_space<vmem>>, %arg18: memref<256x256xbf16, #tpu.memory_space<vmem>>, %arg19: memref<1x256xf32, #tpu.memory_space<vmem>>, %arg20: memref<1x256xf32, #tpu.memory_space<vmem>>, %arg21: memref<1x1xf32, #tpu.memory_space<vmem>>, %arg22: memref<1x5x1xf32, #tpu.memory_space<vmem>>, %arg23: memref<80x256xf32, #tpu.memory_space<vmem>>) attributes {dimension_semantics = [#tpu.dimension_semantics<parallel>, #tpu.dimension_semantics<arbitrary>], iteration_bounds = array<i64: 2, 2>, scalar_prefetch = 0 : i64, scratch_operands = 1 : i64, tpu.core_type = #tpu.core_type<tc>, window_params = [{transform_indices = @transform_0, window_bounds = array<i64: 1, 80, 256>}, {transform_indices = @transform_1, window_bounds = array<i64: 1, 5, 1, 16>}, {pipeline_mode = #tpu.pipeline_mode<synchronous>, transform_indices = @transform_2, window_bounds = array<i64: 1, 256>}, {pipeline_mode = #tpu.pipeline_mode<synchronous>, transform_indices = @transform_3, window_bounds = array<i64: 1, 256>}, {transform_indices = @transform_4, window_bounds = array<i64: 1, 256, 768>}, {transform_indices = @transform_5, window_bounds = array<i64: 1, 1, 768>}, {transform_indices = @transform_6, window_bounds = array<i64: 1, 256, 256>}, {transform_indices = @transform_7, window_bounds = array<i64: 1, 1, 256>}, {transform_indices = @transform_8, window_bounds = array<i64: 1, 1, 256>}, {transform_indices = @transform_9, window_bounds = array<i64: 1, 1, 256>}, {transform_indices = @transform_10, window_bounds = array<i64: 1, 256, 512>}, {transform_indices = @transform_11, window_bounds = array<i64: 1, 1, 512>}, {transform_indices = @transform_12, window_bounds = array<i64: 1, 512, 256>}, {transform_indices = @transform_13, window_bounds = array<i64: 1, 1, 256>}, {transform_indices = @transform_14, window_bounds = array<i64: 1, 1, 256>}, {transform_indices = @transform_15, window_bounds = array<i64: 1, 1, 256>}, {pipeline_mode = #tpu.pipeline_mode<synchronous>, transform_indices = @transform_16, window_bounds = array<i64: 256, 256>}, {pipeline_mode = #tpu.pipeline_mode<synchronous>, transform_indices = @transform_17, window_bounds = array<i64: 1, 256>}, {pipeline_mode = #tpu.pipeline_mode<synchronous>, transform_indices = @transform_18, window_bounds = array<i64: 1, 256>}, {pipeline_mode = #tpu.pipeline_mode<synchronous>, transform_indices = @transform_19, window_bounds = array<i64: 1, 1>}, {transform_indices = @transform_20, window_bounds = array<i64: 1, 5, 1>}]} {
    %c0_i32 = arith.constant 0 : i32
    %0 = arith.cmpi eq, %arg1, %c0_i32 : i32
    %1 = arith.extui %0 : i1 to i32
    %c0_i32_0 = arith.constant 0 : i32
    %2 = arith.cmpi ne, %1, %c0_i32_0 : i32
    scf.if %2 {
      %c0_72 = arith.constant 0 : index
      %c0_73 = arith.constant 0 : index
      %c0_74 = arith.constant 0 : index
      %164 = vector.load %arg2[%c0_72, %c0_73, %c0_74] : memref<1x80x256xf32, #tpu.memory_space<vmem>>, vector<1x80x256xf32>
      %165 = vector.shape_cast %164 : vector<1x80x256xf32> to vector<80x256xf32>
      %c0_75 = arith.constant 0 : index
      %c0_76 = arith.constant 0 : index
      %166 = vector.load %arg4[%c0_75, %c0_76] : memref<1x256xf32, #tpu.memory_space<vmem>>, vector<1x256xf32>
      %c0_77 = arith.constant 0 : index
      %c0_78 = arith.constant 0 : index
      %167 = vector.load %arg5[%c0_77, %c0_78] : memref<1x256xf32, #tpu.memory_space<vmem>>, vector<1x256xf32>
      %cst_79 = arith.constant dense<0.000000e+00> : vector<80xf32>
      %168 = vector.multi_reduction <add>, %165, %cst_79 [1] : vector<80x256xf32> to vector<80xf32>
      %169 = vector.shape_cast %168 : vector<80xf32> to vector<80x1xf32>
      %cst_80 = arith.constant 2.560000e+02 : f32
      %170 = vector.broadcast %cst_80 : f32 to vector<80x1xf32>
      %171 = arith.divf %169, %170 : vector<80x1xf32>
      %172 = vector.broadcast %171 : vector<80x1xf32> to vector<80x256xf32>
      %173 = arith.subf %165, %172 : vector<80x256xf32>
      %174 = arith.mulf %173, %173 : vector<80x256xf32>
      %cst_81 = arith.constant dense<0.000000e+00> : vector<80xf32>
      %175 = vector.multi_reduction <add>, %174, %cst_81 [1] : vector<80x256xf32> to vector<80xf32>
      %176 = vector.shape_cast %175 : vector<80xf32> to vector<80x1xf32>
      %cst_82 = arith.constant 2.560000e+02 : f32
      %177 = vector.broadcast %cst_82 : f32 to vector<80x1xf32>
      %178 = arith.divf %176, %177 : vector<80x1xf32>
      %179 = vector.broadcast %171 : vector<80x1xf32> to vector<80x256xf32>
      %180 = arith.subf %165, %179 : vector<80x256xf32>
      %cst_83 = arith.constant 9.99999974E-6 : f32
      %181 = vector.broadcast %cst_83 : f32 to vector<80x1xf32>
      %182 = arith.addf %178, %181 : vector<80x1xf32>
      %183 = math.rsqrt %182 : vector<80x1xf32>
      %184 = vector.broadcast %183 : vector<80x1xf32> to vector<80x256xf32>
      %185 = arith.mulf %180, %184 : vector<80x256xf32>
      %186 = vector.broadcast %166 : vector<1x256xf32> to vector<80x256xf32>
      %187 = arith.mulf %185, %186 : vector<80x256xf32>
      %188 = vector.broadcast %167 : vector<1x256xf32> to vector<80x256xf32>
      %189 = arith.addf %187, %188 : vector<80x256xf32>
      %c0_84 = arith.constant 0 : index
      %c0_85 = arith.constant 0 : index
      %190 = vector.load %arg23[%c0_84, %c0_85] : memref<80x256xf32, #tpu.memory_space<vmem>>, vector<80x256xf32>
      tpu.vector_store %arg23[%c0_84, %c0_85], %189 {strides = array<i32>} : memref<80x256xf32, #tpu.memory_space<vmem>>, vector<80x256xf32>,
    } else {
    }
    %c0 = arith.constant 0 : index
    %c0_1 = arith.constant 0 : index
    %3 = vector.load %arg23[%c0, %c0_1] : memref<80x256xf32, #tpu.memory_space<vmem>>, vector<80x256xf32>
    %4 = arith.truncf %3 : vector<80x256xf32> to vector<80x256xbf16>
    %c0_2 = arith.constant 0 : index
    %c0_3 = arith.constant 0 : index
    %c0_4 = arith.constant 0 : index
    %5 = vector.load %arg6[%c0_2, %c0_3, %c0_4] : memref<1x256x768xbf16, #tpu.memory_space<vmem>>, vector<1x256x768xbf16>
    %6 = vector.shape_cast %5 : vector<1x256x768xbf16> to vector<256x768xbf16>
    %cst = arith.constant dense<0.000000e+00> : vector<80x768xf32>
    %7 = tpu.matmul %4, %6, %cst {dimension_numbers = #tpu.dot_dimension_numbers<[1], [0], [0], [1], [0, 0, 1, 1], [], []>} : vector<80x256xbf16>, vector<256x768xbf16>, vector<80x768xf32> -> vector<80x768xf32>
    %c0_5 = arith.constant 0 : index
    %c0_6 = arith.constant 0 : index
    %c0_7 = arith.constant 0 : index
    %8 = vector.load %arg7[%c0_5, %c0_6, %c0_7] : memref<1x1x768xf32, #tpu.memory_space<vmem>>, vector<1x1x768xf32>
    %9 = vector.shape_cast %8 : vector<1x1x768xf32> to vector<1x768xf32>
    %10 = vector.broadcast %9 : vector<1x768xf32> to vector<80x768xf32>
    %11 = arith.addf %7, %10 : vector<80x768xf32>
    %c0_8 = arith.constant 0 : index
    %c0_9 = arith.constant 0 : index
    %c0_10 = arith.constant 0 : index
    %c0_11 = arith.constant 0 : index
    %12 = vector.load %arg3[%c0_8, %c0_9, %c0_10, %c0_11] : memref<1x5x1x16xf32, #tpu.memory_space<vmem>>, vector<1x5x1x16xf32>
    %13 = vector.shape_cast %12 : vector<1x5x1x16xf32> to vector<5x1x16xf32>
    %14 = vector.extract_strided_slice %11 {offsets = [0, 0], sizes = [80, 128], strides = [1, 1]} : vector<80x768xf32> to vector<80x128xf32>
    %15 = vector.shape_cast %14 : vector<80x128xf32> to vector<5x16x128xf32>
    %16 = arith.truncf %15 : vector<5x16x128xf32> to vector<5x16x128xbf16>
    %17 = vector.extract_strided_slice %11 {offsets = [0, 256], sizes = [80, 128], strides = [1, 1]} : vector<80x768xf32> to vector<80x128xf32>
    %18 = vector.shape_cast %17 : vector<80x128xf32> to vector<5x16x128xf32>
    %19 = arith.truncf %18 : vector<5x16x128xf32> to vector<5x16x128xbf16>
    %20 = vector.extract_strided_slice %11 {offsets = [0, 512], sizes = [80, 128], strides = [1, 1]} : vector<80x768xf32> to vector<80x128xf32>
    %21 = vector.shape_cast %20 : vector<80x128xf32> to vector<5x16x128xf32>
    %22 = arith.truncf %21 : vector<5x16x128xf32> to vector<5x16x128xbf16>
    "tpu.trace_start"() <{level = 10 : i32, message = "bqd,bkd->bqk"}> : () -> ()
    %cst_12 = arith.constant dense<0.000000e+00> : vector<5x16x16xf32>
    %23 = tpu.matmul %16, %19, %cst_12 {dimension_numbers = #tpu.dot_dimension_numbers<[2], [2], [1], [1], [0, 0, 0, 1, 1, 1], [0], [0]>} : vector<5x16x128xbf16>, vector<5x16x128xbf16>, vector<5x16x16xf32> -> vector<5x16x16xf32>
    "tpu.trace_stop"() : () -> ()
    %cst_13 = arith.constant 0.0883883461 : f32
    %24 = vector.broadcast %cst_13 : f32 to vector<5x16x16xf32>
    %25 = arith.mulf %23, %24 : vector<5x16x16xf32>
    %26 = vector.broadcast %13 : vector<5x1x16xf32> to vector<5x16x16xf32>
    %27 = arith.addf %25, %26 : vector<5x16x16xf32>
    %cst_14 = arith.constant dense<0xFF800000> : vector<5x16xf32>
    %28 = vector.multi_reduction <maximumf>, %27, %cst_14 [2] : vector<5x16x16xf32> to vector<5x16xf32>
    %29 = vector.shape_cast %28 : vector<5x16xf32> to vector<5x16x1xf32>
    %30 = vector.broadcast %29 : vector<5x16x1xf32> to vector<5x16x16xf32>
    %31 = arith.subf %27, %30 : vector<5x16x16xf32>
    %32 = math.exp %31 : vector<5x16x16xf32>
    %cst_15 = arith.constant dense<0.000000e+00> : vector<5x16xf32>
    %33 = vector.multi_reduction <add>, %32, %cst_15 [2] : vector<5x16x16xf32> to vector<5x16xf32>
    %34 = vector.shape_cast %33 : vector<5x16xf32> to vector<5x16x1xf32>
    %35 = tpu.reciprocal %34 {approx = true} : vector<5x16x1xf32> -> vector<5x16x1xf32>
    %36 = vector.broadcast %35 : vector<5x16x1xf32> to vector<5x16x16xf32>
    %37 = arith.mulf %32, %36 : vector<5x16x16xf32>
    %38 = arith.truncf %37 : vector<5x16x16xf32> to vector<5x16x16xbf16>
    "tpu.trace_start"() <{level = 10 : i32, message = "bqk,bkd->bqd"}> : () -> ()
    %cst_16 = arith.constant dense<0.000000e+00> : vector<5x16x128xf32>
    %39 = tpu.matmul %38, %22, %cst_16 {dimension_numbers = #tpu.dot_dimension_numbers<[2], [1], [1], [2], [0, 0, 0, 1, 1, 2], [0], [0]>} : vector<5x16x16xbf16>, vector<5x16x128xbf16>, vector<5x16x128xf32> -> vector<5x16x128xf32>
    "tpu.trace_stop"() : () -> ()
    %40 = vector.shape_cast %39 : vector<5x16x128xf32> to vector<80x128xf32>
    %41 = vector.extract_strided_slice %11 {offsets = [0, 128], sizes = [80, 128], strides = [1, 1]} : vector<80x768xf32> to vector<80x128xf32>
    %42 = vector.shape_cast %41 : vector<80x128xf32> to vector<5x16x128xf32>
    %43 = arith.truncf %42 : vector<5x16x128xf32> to vector<5x16x128xbf16>
    %44 = vector.extract_strided_slice %11 {offsets = [0, 384], sizes = [80, 128], strides = [1, 1]} : vector<80x768xf32> to vector<80x128xf32>
    %45 = vector.shape_cast %44 : vector<80x128xf32> to vector<5x16x128xf32>
    %46 = arith.truncf %45 : vector<5x16x128xf32> to vector<5x16x128xbf16>
    %47 = vector.extract_strided_slice %11 {offsets = [0, 640], sizes = [80, 128], strides = [1, 1]} : vector<80x768xf32> to vector<80x128xf32>
    %48 = vector.shape_cast %47 : vector<80x128xf32> to vector<5x16x128xf32>
    %49 = arith.truncf %48 : vector<5x16x128xf32> to vector<5x16x128xbf16>
    "tpu.trace_start"() <{level = 10 : i32, message = "bqd,bkd->bqk"}> : () -> ()
    %cst_17 = arith.constant dense<0.000000e+00> : vector<5x16x16xf32>
    %50 = tpu.matmul %43, %46, %cst_17 {dimension_numbers = #tpu.dot_dimension_numbers<[2], [2], [1], [1], [0, 0, 0, 1, 1, 1], [0], [0]>} : vector<5x16x128xbf16>, vector<5x16x128xbf16>, vector<5x16x16xf32> -> vector<5x16x16xf32>
    "tpu.trace_stop"() : () -> ()
    %cst_18 = arith.constant 0.0883883461 : f32
    %51 = vector.broadcast %cst_18 : f32 to vector<5x16x16xf32>
    %52 = arith.mulf %50, %51 : vector<5x16x16xf32>
    %53 = vector.broadcast %13 : vector<5x1x16xf32> to vector<5x16x16xf32>
    %54 = arith.addf %52, %53 : vector<5x16x16xf32>
    %cst_19 = arith.constant dense<0xFF800000> : vector<5x16xf32>
    %55 = vector.multi_reduction <maximumf>, %54, %cst_19 [2] : vector<5x16x16xf32> to vector<5x16xf32>
    %56 = vector.shape_cast %55 : vector<5x16xf32> to vector<5x16x1xf32>
    %57 = vector.broadcast %56 : vector<5x16x1xf32> to vector<5x16x16xf32>
    %58 = arith.subf %54, %57 : vector<5x16x16xf32>
    %59 = math.exp %58 : vector<5x16x16xf32>
    %cst_20 = arith.constant dense<0.000000e+00> : vector<5x16xf32>
    %60 = vector.multi_reduction <add>, %59, %cst_20 [2] : vector<5x16x16xf32> to vector<5x16xf32>
    %61 = vector.shape_cast %60 : vector<5x16xf32> to vector<5x16x1xf32>
    %62 = tpu.reciprocal %61 {approx = true} : vector<5x16x1xf32> -> vector<5x16x1xf32>
    %63 = vector.broadcast %62 : vector<5x16x1xf32> to vector<5x16x16xf32>
    %64 = arith.mulf %59, %63 : vector<5x16x16xf32>
    %65 = arith.truncf %64 : vector<5x16x16xf32> to vector<5x16x16xbf16>
    "tpu.trace_start"() <{level = 10 : i32, message = "bqk,bkd->bqd"}> : () -> ()
    %cst_21 = arith.constant dense<0.000000e+00> : vector<5x16x128xf32>
    %66 = tpu.matmul %65, %49, %cst_21 {dimension_numbers = #tpu.dot_dimension_numbers<[2], [1], [1], [2], [0, 0, 0, 1, 1, 2], [0], [0]>} : vector<5x16x16xbf16>, vector<5x16x128xbf16>, vector<5x16x128xf32> -> vector<5x16x128xf32>
    "tpu.trace_stop"() : () -> ()
    %67 = vector.shape_cast %66 : vector<5x16x128xf32> to vector<80x128xf32>
    %68 = tpu.concatenate %40, %67 in 1 : vector<80x128xf32>, vector<80x128xf32> -> vector<80x256xf32>
    %69 = arith.truncf %68 : vector<80x256xf32> to vector<80x256xbf16>
    %c0_22 = arith.constant 0 : index
    %c0_23 = arith.constant 0 : index
    %c0_24 = arith.constant 0 : index
    %70 = vector.load %arg8[%c0_22, %c0_23, %c0_24] : memref<1x256x256xbf16, #tpu.memory_space<vmem>>, vector<1x256x256xbf16>
    %71 = vector.shape_cast %70 : vector<1x256x256xbf16> to vector<256x256xbf16>
    %cst_25 = arith.constant dense<0.000000e+00> : vector<80x256xf32>
    %72 = tpu.matmul %69, %71, %cst_25 {dimension_numbers = #tpu.dot_dimension_numbers<[1], [0], [0], [1], [0, 0, 1, 1], [], []>} : vector<80x256xbf16>, vector<256x256xbf16>, vector<80x256xf32> -> vector<80x256xf32>
    %c0_26 = arith.constant 0 : index
    %c0_27 = arith.constant 0 : index
    %c0_28 = arith.constant 0 : index
    %73 = vector.load %arg9[%c0_26, %c0_27, %c0_28] : memref<1x1x256xf32, #tpu.memory_space<vmem>>, vector<1x1x256xf32>
    %74 = vector.shape_cast %73 : vector<1x1x256xf32> to vector<1x256xf32>
    %75 = vector.broadcast %74 : vector<1x256xf32> to vector<80x256xf32>
    %76 = arith.addf %72, %75 : vector<80x256xf32>
    %77 = arith.addf %76, %3 : vector<80x256xf32>
    %c0_29 = arith.constant 0 : index
    %c0_30 = arith.constant 0 : index
    %c0_31 = arith.constant 0 : index
    %78 = vector.load %arg10[%c0_29, %c0_30, %c0_31] : memref<1x1x256xf32, #tpu.memory_space<vmem>>, vector<1x1x256xf32>
    %79 = vector.shape_cast %78 : vector<1x1x256xf32> to vector<1x256xf32>
    %c0_32 = arith.constant 0 : index
    %c0_33 = arith.constant 0 : index
    %c0_34 = arith.constant 0 : index
    %80 = vector.load %arg11[%c0_32, %c0_33, %c0_34] : memref<1x1x256xf32, #tpu.memory_space<vmem>>, vector<1x1x256xf32>
    %81 = vector.shape_cast %80 : vector<1x1x256xf32> to vector<1x256xf32>
    %cst_35 = arith.constant dense<0.000000e+00> : vector<80xf32>
    %82 = vector.multi_reduction <add>, %77, %cst_35 [1] : vector<80x256xf32> to vector<80xf32>
    %83 = vector.shape_cast %82 : vector<80xf32> to vector<80x1xf32>
    %cst_36 = arith.constant 2.560000e+02 : f32
    %84 = vector.broadcast %cst_36 : f32 to vector<80x1xf32>
    %85 = arith.divf %83, %84 : vector<80x1xf32>
    %86 = vector.broadcast %85 : vector<80x1xf32> to vector<80x256xf32>
    %87 = arith.subf %77, %86 : vector<80x256xf32>
    %88 = arith.mulf %87, %87 : vector<80x256xf32>
    %cst_37 = arith.constant dense<0.000000e+00> : vector<80xf32>
    %89 = vector.multi_reduction <add>, %88, %cst_37 [1] : vector<80x256xf32> to vector<80xf32>
    %90 = vector.shape_cast %89 : vector<80xf32> to vector<80x1xf32>
    %cst_38 = arith.constant 2.560000e+02 : f32
    %91 = vector.broadcast %cst_38 : f32 to vector<80x1xf32>
    %92 = arith.divf %90, %91 : vector<80x1xf32>
    %93 = vector.broadcast %85 : vector<80x1xf32> to vector<80x256xf32>
    %94 = arith.subf %77, %93 : vector<80x256xf32>
    %cst_39 = arith.constant 9.99999974E-6 : f32
    %95 = vector.broadcast %cst_39 : f32 to vector<80x1xf32>
    %96 = arith.addf %92, %95 : vector<80x1xf32>
    %97 = math.rsqrt %96 : vector<80x1xf32>
    %98 = vector.broadcast %97 : vector<80x1xf32> to vector<80x256xf32>
    %99 = arith.mulf %94, %98 : vector<80x256xf32>
    %100 = vector.broadcast %79 : vector<1x256xf32> to vector<80x256xf32>
    %101 = arith.mulf %99, %100 : vector<80x256xf32>
    %102 = vector.broadcast %81 : vector<1x256xf32> to vector<80x256xf32>
    %103 = arith.addf %101, %102 : vector<80x256xf32>
    %104 = arith.truncf %103 : vector<80x256xf32> to vector<80x256xbf16>
    %c0_40 = arith.constant 0 : index
    %c0_41 = arith.constant 0 : index
    %c0_42 = arith.constant 0 : index
    %105 = vector.load %arg12[%c0_40, %c0_41, %c0_42] : memref<1x256x512xbf16, #tpu.memory_space<vmem>>, vector<1x256x512xbf16>
    %106 = vector.shape_cast %105 : vector<1x256x512xbf16> to vector<256x512xbf16>
    %cst_43 = arith.constant dense<0.000000e+00> : vector<80x512xf32>
    %107 = tpu.matmul %104, %106, %cst_43 {dimension_numbers = #tpu.dot_dimension_numbers<[1], [0], [0], [1], [0, 0, 1, 1], [], []>} : vector<80x256xbf16>, vector<256x512xbf16>, vector<80x512xf32> -> vector<80x512xf32>
    %c0_44 = arith.constant 0 : index
    %c0_45 = arith.constant 0 : index
    %c0_46 = arith.constant 0 : index
    %108 = vector.load %arg13[%c0_44, %c0_45, %c0_46] : memref<1x1x512xf32, #tpu.memory_space<vmem>>, vector<1x1x512xf32>
    %109 = vector.shape_cast %108 : vector<1x1x512xf32> to vector<1x512xf32>
    %110 = vector.broadcast %109 : vector<1x512xf32> to vector<80x512xf32>
    %111 = arith.addf %107, %110 : vector<80x512xf32>
    %112 = arith.mulf %111, %111 : vector<80x512xf32>
    %113 = arith.mulf %111, %112 : vector<80x512xf32>
    %cst_47 = arith.constant 4.471500e-02 : f32
    %114 = vector.broadcast %cst_47 : f32 to vector<80x512xf32>
    %115 = arith.mulf %114, %113 : vector<80x512xf32>
    %116 = arith.addf %111, %115 : vector<80x512xf32>
    %cst_48 = arith.constant 0.797884583 : f32
    %117 = vector.broadcast %cst_48 : f32 to vector<80x512xf32>
    %118 = arith.mulf %117, %116 : vector<80x512xf32>
    %119 = math.tanh %118 : vector<80x512xf32>
    %cst_49 = arith.constant 1.000000e+00 : f32
    %120 = vector.broadcast %cst_49 : f32 to vector<80x512xf32>
    %121 = arith.addf %120, %119 : vector<80x512xf32>
    %cst_50 = arith.constant 5.000000e-01 : f32
    %122 = vector.broadcast %cst_50 : f32 to vector<80x512xf32>
    %123 = arith.mulf %122, %121 : vector<80x512xf32>
    %124 = arith.mulf %111, %123 : vector<80x512xf32>
    %125 = arith.truncf %124 : vector<80x512xf32> to vector<80x512xbf16>
    %c0_51 = arith.constant 0 : index
    %c0_52 = arith.constant 0 : index
    %c0_53 = arith.constant 0 : index
    %126 = vector.load %arg14[%c0_51, %c0_52, %c0_53] : memref<1x512x256xbf16, #tpu.memory_space<vmem>>, vector<1x512x256xbf16>
    %127 = vector.shape_cast %126 : vector<1x512x256xbf16> to vector<512x256xbf16>
    %cst_54 = arith.constant dense<0.000000e+00> : vector<80x256xf32>
    %128 = tpu.matmul %125, %127, %cst_54 {dimension_numbers = #tpu.dot_dimension_numbers<[1], [0], [0], [1], [0, 0, 1, 1], [], []>} : vector<80x512xbf16>, vector<512x256xbf16>, vector<80x256xf32> -> vector<80x256xf32>
    %c0_55 = arith.constant 0 : index
    %c0_56 = arith.constant 0 : index
    %c0_57 = arith.constant 0 : index
    %129 = vector.load %arg15[%c0_55, %c0_56, %c0_57] : memref<1x1x256xf32, #tpu.memory_space<vmem>>, vector<1x1x256xf32>
    %130 = vector.shape_cast %129 : vector<1x1x256xf32> to vector<1x256xf32>
    %131 = vector.broadcast %130 : vector<1x256xf32> to vector<80x256xf32>
    %132 = arith.addf %128, %131 : vector<80x256xf32>
    %133 = arith.addf %132, %103 : vector<80x256xf32>
    %c0_58 = arith.constant 0 : index
    %c0_59 = arith.constant 0 : index
    %c0_60 = arith.constant 0 : index
    %134 = vector.load %arg16[%c0_58, %c0_59, %c0_60] : memref<1x1x256xf32, #tpu.memory_space<vmem>>, vector<1x1x256xf32>
    %135 = vector.shape_cast %134 : vector<1x1x256xf32> to vector<1x256xf32>
    %c0_61 = arith.constant 0 : index
    %c0_62 = arith.constant 0 : index
    %c0_63 = arith.constant 0 : index
    %136 = vector.load %arg17[%c0_61, %c0_62, %c0_63] : memref<1x1x256xf32, #tpu.memory_space<vmem>>, vector<1x1x256xf32>
    %137 = vector.shape_cast %136 : vector<1x1x256xf32> to vector<1x256xf32>
    %cst_64 = arith.constant dense<0.000000e+00> : vector<80xf32>
    %138 = vector.multi_reduction <add>, %133, %cst_64 [1] : vector<80x256xf32> to vector<80xf32>
    %139 = vector.shape_cast %138 : vector<80xf32> to vector<80x1xf32>
    %cst_65 = arith.constant 2.560000e+02 : f32
    %140 = vector.broadcast %cst_65 : f32 to vector<80x1xf32>
    %141 = arith.divf %139, %140 : vector<80x1xf32>
    %142 = vector.broadcast %141 : vector<80x1xf32> to vector<80x256xf32>
    %143 = arith.subf %133, %142 : vector<80x256xf32>
    %144 = arith.mulf %143, %143 : vector<80x256xf32>
    %cst_66 = arith.constant dense<0.000000e+00> : vector<80xf32>
    %145 = vector.multi_reduction <add>, %144, %cst_66 [1] : vector<80x256xf32> to vector<80xf32>
    %146 = vector.shape_cast %145 : vector<80xf32> to vector<80x1xf32>
    %cst_67 = arith.constant 2.560000e+02 : f32
    %147 = vector.broadcast %cst_67 : f32 to vector<80x1xf32>
    %148 = arith.divf %146, %147 : vector<80x1xf32>
    %149 = vector.broadcast %141 : vector<80x1xf32> to vector<80x256xf32>
    %150 = arith.subf %133, %149 : vector<80x256xf32>
    %cst_68 = arith.constant 9.99999974E-6 : f32
    %151 = vector.broadcast %cst_68 : f32 to vector<80x1xf32>
    %152 = arith.addf %148, %151 : vector<80x1xf32>
    %153 = math.rsqrt %152 : vector<80x1xf32>
    %154 = vector.broadcast %153 : vector<80x1xf32> to vector<80x256xf32>
    %155 = arith.mulf %150, %154 : vector<80x256xf32>
    %156 = vector.broadcast %135 : vector<1x256xf32> to vector<80x256xf32>
    %157 = arith.mulf %155, %156 : vector<80x256xf32>
    %158 = vector.broadcast %137 : vector<1x256xf32> to vector<80x256xf32>
    %159 = arith.addf %157, %158 : vector<80x256xf32>
    %c0_69 = arith.constant 0 : index
    %c0_70 = arith.constant 0 : index
    %160 = vector.load %arg23[%c0_69, %c0_70] : memref<80x256xf32, #tpu.memory_space<vmem>>, vector<80x256xf32>
    tpu.vector_store %arg23[%c0_69, %c0_70], %159 {strides = array<i32>} : memref<80x256xf32, #tpu.memory_space<vmem>>, vector<80x256xf32>,
    %c1_i32 = arith.constant 1 : i32
    %161 = arith.cmpi eq, %arg1, %c1_i32 : i32
    %162 = arith.extui %161 : i1 to i32
    %c0_i32_71 = arith.constant 0 : i32
    %163 = arith.cmpi ne, %162, %c0_i32_71 : i32
    scf.if %163 {
      %164 = vector.shape_cast %159 : vector<80x256xf32> to vector<5x16x256xf32>
      %165 = vector.extract_strided_slice %164 {offsets = [0, 0, 0], sizes = [5, 1, 256], strides = [1, 1, 1]} : vector<5x16x256xf32> to vector<5x1x256xf32>
      %166 = vector.shape_cast %165 : vector<5x1x256xf32> to vector<5x256xf32>
      %167 = arith.truncf %166 : vector<5x256xf32> to vector<5x256xbf16>
      %c0_72 = arith.constant 0 : index
      %c0_73 = arith.constant 0 : index
      %168 = vector.load %arg18[%c0_72, %c0_73] : memref<256x256xbf16, #tpu.memory_space<vmem>>, vector<256x256xbf16>
      %cst_74 = arith.constant dense<0.000000e+00> : vector<5x256xf32>
      %169 = tpu.matmul %167, %168, %cst_74 {dimension_numbers = #tpu.dot_dimension_numbers<[1], [0], [0], [1], [0, 0, 1, 1], [], []>} : vector<5x256xbf16>, vector<256x256xbf16>, vector<5x256xf32> -> vector<5x256xf32>
      %c0_75 = arith.constant 0 : index
      %c0_76 = arith.constant 0 : index
      %170 = vector.load %arg19[%c0_75, %c0_76] : memref<1x256xf32, #tpu.memory_space<vmem>>, vector<1x256xf32>
      %171 = vector.broadcast %170 : vector<1x256xf32> to vector<5x256xf32>
      %172 = arith.addf %169, %171 : vector<5x256xf32>
      %173 = math.tanh %172 : vector<5x256xf32>
      %c0_77 = arith.constant 0 : index
      %c0_78 = arith.constant 0 : index
      %174 = vector.load %arg20[%c0_77, %c0_78] : memref<1x256xf32, #tpu.memory_space<vmem>>, vector<1x256xf32>
      %175 = vector.broadcast %174 : vector<1x256xf32> to vector<5x256xf32>
      %176 = arith.mulf %173, %175 : vector<5x256xf32>
      %cst_79 = arith.constant dense<0.000000e+00> : vector<5xf32>
      %177 = vector.multi_reduction <add>, %176, %cst_79 [1] : vector<5x256xf32> to vector<5xf32>
      %178 = vector.shape_cast %177 : vector<5xf32> to vector<5x1xf32>
      %c0_80 = arith.constant 0 : index
      %c0_81 = arith.constant 0 : index
      %179 = vector.load %arg21[%c0_80, %c0_81] : memref<1x1xf32, #tpu.memory_space<vmem>>, vector<1x1xf32>
      %180 = vector.broadcast %179 : vector<1x1xf32> to vector<5x1xf32>
      %181 = arith.addf %178, %180 : vector<5x1xf32>
      %c0_82 = arith.constant 0 : index
      %c0_83 = arith.constant 0 : index
      %c0_84 = arith.constant 0 : index
      %182 = vector.load %arg22[%c0_82, %c0_83, %c0_84] : memref<1x5x1xf32, #tpu.memory_space<vmem>>, vector<1x5x1xf32>
      %183 = vector.shape_cast %182 : vector<1x5x1xf32> to vector<5x1xf32>
      %184 = vector.shape_cast %181 : vector<5x1xf32> to vector<1x5x1xf32>
      tpu.vector_store %arg22[%c0_82, %c0_83, %c0_84], %184 {strides = array<i32>} : memref<1x5x1xf32, #tpu.memory_space<vmem>>, vector<1x5x1xf32>,
    } else {
    }
    return
  }
  func.func @transform_0(%arg0: i32, %arg1: i32) -> (i32, i32, i32) {
    %c0_i32 = arith.constant 0 : i32
    %c0_i32_0 = arith.constant 0 : i32
    %c0_i32_1 = arith.constant 0 : i32
    return %arg0, %c0_i32, %c0_i32_0 : i32, i32, i32
  }
  func.func @transform_1(%arg0: i32, %arg1: i32) -> (i32, i32, i32, i32) {
    %c0_i32 = arith.constant 0 : i32
    %c0_i32_0 = arith.constant 0 : i32
    %c0_i32_1 = arith.constant 0 : i32
    %c0_i32_2 = arith.constant 0 : i32
    return %arg0, %c0_i32, %c0_i32_0, %c0_i32_1 : i32, i32, i32, i32
  }
  func.func @transform_2(%arg0: i32, %arg1: i32) -> (i32, i32) {
    %c0_i32 = arith.constant 0 : i32
    %c0_i32_0 = arith.constant 0 : i32
    %c0_i32_1 = arith.constant 0 : i32
    return %c0_i32, %c0_i32_0 : i32, i32
  }
  func.func @transform_3(%arg0: i32, %arg1: i32) -> (i32, i32) {
    %c0_i32 = arith.constant 0 : i32
    %c0_i32_0 = arith.constant 0 : i32
    %c0_i32_1 = arith.constant 0 : i32
    return %c0_i32, %c0_i32_0 : i32, i32
  }
  func.func @transform_4(%arg0: i32, %arg1: i32) -> (i32, i32, i32) {
    %c0_i32 = arith.constant 0 : i32
    %c0_i32_0 = arith.constant 0 : i32
    %c0_i32_1 = arith.constant 0 : i32
    return %arg1, %c0_i32, %c0_i32_0 : i32, i32, i32
  }
  func.func @transform_5(%arg0: i32, %arg1: i32) -> (i32, i32, i32) {
    %c0_i32 = arith.constant 0 : i32
    %c0_i32_0 = arith.constant 0 : i32
    %c0_i32_1 = arith.constant 0 : i32
    return %arg1, %c0_i32, %c0_i32_0 : i32, i32, i32
  }
  func.func @transform_6(%arg0: i32, %arg1: i32) -> (i32, i32, i32) {
    %c0_i32 = arith.constant 0 : i32
    %c0_i32_0 = arith.constant 0 : i32
    %c0_i32_1 = arith.constant 0 : i32
    return %arg1, %c0_i32, %c0_i32_0 : i32, i32, i32
  }
  func.func @transform_7(%arg0: i32, %arg1: i32) -> (i32, i32, i32) {
    %c0_i32 = arith.constant 0 : i32
    %c0_i32_0 = arith.constant 0 : i32
    %c0_i32_1 = arith.constant 0 : i32
    return %arg1, %c0_i32, %c0_i32_0 : i32, i32, i32
  }
  func.func @transform_8(%arg0: i32, %arg1: i32) -> (i32, i32, i32) {
    %c0_i32 = arith.constant 0 : i32
    %c0_i32_0 = arith.constant 0 : i32
    %c0_i32_1 = arith.constant 0 : i32
    return %arg1, %c0_i32, %c0_i32_0 : i32, i32, i32
  }
  func.func @transform_9(%arg0: i32, %arg1: i32) -> (i32, i32, i32) {
    %c0_i32 = arith.constant 0 : i32
    %c0_i32_0 = arith.constant 0 : i32
    %c0_i32_1 = arith.constant 0 : i32
    return %arg1, %c0_i32, %c0_i32_0 : i32, i32, i32
  }
  func.func @transform_10(%arg0: i32, %arg1: i32) -> (i32, i32, i32) {
    %c0_i32 = arith.constant 0 : i32
    %c0_i32_0 = arith.constant 0 : i32
    %c0_i32_1 = arith.constant 0 : i32
    return %arg1, %c0_i32, %c0_i32_0 : i32, i32, i32
  }
  func.func @transform_11(%arg0: i32, %arg1: i32) -> (i32, i32, i32) {
    %c0_i32 = arith.constant 0 : i32
    %c0_i32_0 = arith.constant 0 : i32
    %c0_i32_1 = arith.constant 0 : i32
    return %arg1, %c0_i32, %c0_i32_0 : i32, i32, i32
  }
  func.func @transform_12(%arg0: i32, %arg1: i32) -> (i32, i32, i32) {
    %c0_i32 = arith.constant 0 : i32
    %c0_i32_0 = arith.constant 0 : i32
    %c0_i32_1 = arith.constant 0 : i32
    return %arg1, %c0_i32, %c0_i32_0 : i32, i32, i32
  }
  func.func @transform_13(%arg0: i32, %arg1: i32) -> (i32, i32, i32) {
    %c0_i32 = arith.constant 0 : i32
    %c0_i32_0 = arith.constant 0 : i32
    %c0_i32_1 = arith.constant 0 : i32
    return %arg1, %c0_i32, %c0_i32_0 : i32, i32, i32
  }
  func.func @transform_14(%arg0: i32, %arg1: i32) -> (i32, i32, i32) {
    %c0_i32 = arith.constant 0 : i32
    %c0_i32_0 = arith.constant 0 : i32
    %c0_i32_1 = arith.constant 0 : i32
    return %arg1, %c0_i32, %c0_i32_0 : i32, i32, i32
  }
  func.func @transform_15(%arg0: i32, %arg1: i32) -> (i32, i32, i32) {
    %c0_i32 = arith.constant 0 : i32
    %c0_i32_0 = arith.constant 0 : i32
    %c0_i32_1 = arith.constant 0 : i32
    return %arg1, %c0_i32, %c0_i32_0 : i32, i32, i32
  }
  func.func @transform_16(%arg0: i32, %arg1: i32) -> (i32, i32) {
    %c0_i32 = arith.constant 0 : i32
    %c0_i32_0 = arith.constant 0 : i32
    %c0_i32_1 = arith.constant 0 : i32
    return %c0_i32, %c0_i32_0 : i32, i32
  }
  func.func @transform_17(%arg0: i32, %arg1: i32) -> (i32, i32) {
    %c0_i32 = arith.constant 0 : i32
    %c0_i32_0 = arith.constant 0 : i32
    %c0_i32_1 = arith.constant 0 : i32
    return %c0_i32, %c0_i32_0 : i32, i32
  }
  func.func @transform_18(%arg0: i32, %arg1: i32) -> (i32, i32) {
    %c0_i32 = arith.constant 0 : i32
    %c0_i32_0 = arith.constant 0 : i32
    %c0_i32_1 = arith.constant 0 : i32
    return %c0_i32, %c0_i32_0 : i32, i32
  }
  func.func @transform_19(%arg0: i32, %arg1: i32) -> (i32, i32) {
    %c0_i32 = arith.constant 0 : i32
    %c0_i32_0 = arith.constant 0 : i32
    %c0_i32_1 = arith.constant 0 : i32
    return %c0_i32, %c0_i32_0 : i32, i32
  }
  func.func @transform_20(%arg0: i32, %arg1: i32) -> (i32, i32, i32) {
    %c0_i32 = arith.constant 0 : i32
    %c0_i32_0 = arith.constant 0 : i32
    %c0_i32_1 = arith.constant 0 : i32
    return %arg0, %c0_i32, %c0_i32_0 : i32, i32, i32
  }
}

</mosaic_0001>

<llo_original>
// kernel: bd2bb_forward.1
$region0: #{bd2bb_forward.1}
  #allocation0 [shape = 'u32[]', space=smem, size = 0x4, offset = 0x4, fixed_abs, tag = 'smem constant byte address 0x4 - core index']
  #allocation1 [shape = 'u32[144,128]{1,0:T(1,128)}', space=vmem, size = 0x12000, scoped, tag = 'internal scratch']
  #allocation2 [shape = 'f32[80,256]{1,0:T(8,128)}', space=vmem, size = 0x14000, scoped, tag = 'scratch operand']
  #allocation3 [shape = 'f32[1,1]{1,0:T(1,128)S(1)}', space=vmem, size = 0x200, scoped, tag = 'scoped memory for bd2bb_forward.1']
  %s0 = inlined_call_operand.vmem [shape: f32[2,80,256], index: 0, kind: input, shape index: {}]
  %s1 = inlined_call_operand.vmem [shape: f32[2,5,1,16], index: 1, kind: input, shape index: {}]
  %s2 = inlined_call_operand.vmem [shape: f32[1,256], index: 2, kind: input, shape index: {}]
  %s3 = inlined_call_operand.vmem [shape: f32[1,256], index: 3, kind: input, shape index: {}]
  %s4 = inlined_call_operand.vmem [shape: bf16[2,256,768], index: 4, kind: input, shape index: {}]
  %s5 = inlined_call_operand.vmem [shape: f32[2,1,768], index: 5, kind: input, shape index: {}]
  %s6 = inlined_call_operand.vmem [shape: bf16[2,256,256], index: 6, kind: input, shape index: {}]
  %s7 = inlined_call_operand.vmem [shape: f32[2,1,256], index: 7, kind: input, shape index: {}]
  %s8 = inlined_call_operand.vmem [shape: f32[2,1,256], index: 8, kind: input, shape index: {}]
  %s9 = inlined_call_operand.vmem [shape: f32[2,1,256], index: 9, kind: input, shape index: {}]
  %s10 = inlined_call_operand.vmem [shape: bf16[2,256,512], index: 10, kind: input, shape index: {}]
  %s11 = inlined_call_operand.vmem [shape: f32[2,1,512], index: 11, kind: input, shape index: {}]
  %s12 = inlined_call_operand.vmem [shape: bf16[2,512,256], index: 12, kind: input, shape index: {}]
  %s13 = inlined_call_operand.vmem [shape: f32[2,1,256], index: 13, kind: input, shape index: {}]
  %s14 = inlined_call_operand.vmem [shape: f32[2,1,256], index: 14, kind: input, shape index: {}]
  %s15 = inlined_call_operand.vmem [shape: f32[2,1,256], index: 15, kind: input, shape index: {}]
  %s16 = inlined_call_operand.vmem [shape: bf16[256,256], index: 16, kind: input, shape index: {}]
  %s17 = inlined_call_operand.vmem [shape: f32[1,256], index: 17, kind: input, shape index: {}]
  %s18 = inlined_call_operand.vmem [shape: f32[1,256], index: 18, kind: input, shape index: {}]
  %s19 = inlined_call_operand.<no memory space> [shape: f32[1,1], index: 19, kind: input, shape index: {}]
  %s20 = inlined_call_operand.vmem [shape: f32[2,5,1], index: 20, kind: output, shape index: {}]
  %s21 = sld [smem:[#allocation0]]
  $region121: #{bd2bb_forward.1} parent=0
    _
  %s23 = ssub.s32 1, %s21
  %s24 = scalar_select 0, %s23, %s21
  %v25 = vstv %s19
  %26 = vst [vmem:[#allocation3] sm:$0x1] %v25
  loop: start=0, step=1, limit=6
  $region2: #{bd2bb_forward.1} parent=0 // loop_pre_header
    _
  $region3: #{bd2bb_forward.1} parent=0 // loop_header
    %s28 = sphi 0, %s32
    %p29 = scmp.ge.s32.totalorder %s28, 6
    %s35 = sphi 0, %s47
    %s36 = sphi 0, %s43
    %s37 = sphi 0, %s35
    %s38 = sphi 0, %s36
    %s39 = sphi 0, %s37
    %s40 = sphi 0, %s38
    %s50 = sphi 0, %s52
    %s53 = sphi 0, %s50
    %s54 = sphi 0, %s53
    %s70 = sphi 0, %s54
    %s76 = sphi 0, %s78
    %s79 = sphi 0, %s76
    %s80 = sphi 0, %s79
    %s96 = sphi 0, %s80
    %s100 = sphi 0, %s100
    %s102 = sphi 0, %s100
    %s103 = sphi 0, %s102
    %s117 = sphi 0, %s103
    %s121 = sphi 0, %s121
    %s123 = sphi 0, %s121
    %s124 = sphi 0, %s123
    %s138 = sphi 0, %s124
    %s144 = sphi 0, %s146
    %s147 = sphi 0, %s144
    %s148 = sphi 0, %s147
    %s164 = sphi 0, %s148
    %s170 = sphi 0, %s172
    %s173 = sphi 0, %s170
    %s174 = sphi 0, %s173
    %s190 = sphi 0, %s174
    %s196 = sphi 0, %s198
    %s199 = sphi 0, %s196
    %s200 = sphi 0, %s199
    %s216 = sphi 0, %s200
    %s222 = sphi 0, %s224
    %s225 = sphi 0, %s222
    %s226 = sphi 0, %s225
    %s242 = sphi 0, %s226
    %s248 = sphi 0, %s250
    %s251 = sphi 0, %s248
    %s252 = sphi 0, %s251
    %s268 = sphi 0, %s252
    %s274 = sphi 0, %s276
    %s277 = sphi 0, %s274
    %s278 = sphi 0, %s277
    %s294 = sphi 0, %s278
    %s300 = sphi 0, %s302
    %s303 = sphi 0, %s300
    %s304 = sphi 0, %s303
    %s320 = sphi 0, %s304
    %s326 = sphi 0, %s328
    %s329 = sphi 0, %s326
    %s330 = sphi 0, %s329
    %s346 = sphi 0, %s330
    %s352 = sphi 0, %s354
    %s355 = sphi 0, %s352
    %s356 = sphi 0, %s355
    %s372 = sphi 0, %s356
    %s378 = sphi 0, %s380
    %s381 = sphi 0, %s378
    %s382 = sphi 0, %s381
    %s398 = sphi 0, %s382
    %s404 = sphi 0, %s406
    %s407 = sphi 0, %s404
    %s408 = sphi 0, %s407
    %s424 = sphi 0, %s408
    %s430 = sphi 0, %s432
    %s433 = sphi 0, %s430
    %s434 = sphi 0, %s433
    %s450 = sphi 0, %s434
    %s454 = sphi 0, %s454
    %s456 = sphi 0, %s454
    %s457 = sphi 0, %s456
    %s471 = sphi 0, %s457
    %s475 = sphi 0, %s475
    %s477 = sphi 0, %s475
    %s478 = sphi 0, %s477
    %s492 = sphi 0, %s478
    %s496 = sphi 0, %s496
    %s498 = sphi 0, %s496
    %s499 = sphi 0, %s498
    %s513 = sphi 0, %s499
    %s517 = sphi 0, %s517
    %s519 = sphi 0, %s517
    %s520 = sphi 0, %s519
    %s534 = sphi 0, %s520
    %s540 = sphi 0, %s542
    %s543 = sphi 0, %s540
    %s544 = sphi 0, %s543
    %s560 = sphi 0, %s544
  $region4: #{bd2bb_forward.1} parent=0 // loop_header_branch
    %31 = sbr.rel (%p29) target = $region8
  $region5: #{bd2bb_forward.1} parent=0 // loop_body
    %s33 = ssub.s32 %s28, 1
    %s34 = ssub.s32 %s28, 2
    %s41 = sadd.s32 1, %s36
    %p42 = scmp.ge.s32.totalorder %s41, 2
    %s43 = scalar_select %p42, 0, %s41
    %s44 = sadd.s32 1, %s35
    %s45 = scalar_select %p42, %s44, %s35
    %p46 = scmp.ge.s32.totalorder %s45, 2
    %s47 = scalar_select %p46, 0, %s45
    %s48 = ssub.s32 %s35, %s47
    %p49 = scmp.eq.s32.totalorder %s48, 0
    %s51 = sadd.s32 %s50, 1
    %s52 = scalar_select %p49, %s50, %s51
    %p55 = pneg %p49
    %p56 = scmp.eq.s32.totalorder %s28, 3
    %p57 = por %p55, %p56
    %p58 = scmp.ne.s32.totalorder %s50, %s53
    %p59 = scmp.eq.s32.totalorder %s28, 0
    %p60 = por %p58, %p59
    %p61 = scmp.ne.s32.totalorder %s50, %s53
    %p62 = scmp.eq.s32.totalorder %s33, 3
    %p63 = por %p61, %p62
    %p64 = scmp.ne.s32.totalorder %s53, %s54
    %p65 = scmp.eq.s32.totalorder %s33, 0
    %p66 = por %p64, %p65
    %p67 = scmp.ne.s32.totalorder %s53, %s54
    %p68 = scmp.eq.s32.totalorder %s34, 3
    %p69 = por %p67, %p68
    %p71 = scmp.ne.s32.totalorder %s54, %s70
    %p72 = scmp.eq.s32.totalorder %s34, 0
    %p73 = por %p71, %p72
    %s74 = ssub.s32 %s35, %s47
    %p75 = scmp.eq.s32.totalorder %s74, 0
    %s77 = sadd.s32 %s76, 1
    %s78 = scalar_select %p75, %s76, %s77
    %p81 = pneg %p75
    %p82 = scmp.eq.s32.totalorder %s28, 3
    %p83 = por %p81, %p82
    %p84 = scmp.ne.s32.totalorder %s76, %s79
    %p85 = scmp.eq.s32.totalorder %s28, 0
    %p86 = por %p84, %p85
    %p87 = scmp.ne.s32.totalorder %s76, %s79
    %p88 = scmp.eq.s32.totalorder %s33, 3
    %p89 = por %p87, %p88
    %p90 = scmp.ne.s32.totalorder %s79, %s80
    %p91 = scmp.eq.s32.totalorder %s33, 0
    %p92 = por %p90, %p91
    %p93 = scmp.ne.s32.totalorder %s79, %s80
    %p94 = scmp.eq.s32.totalorder %s34, 3
    %p95 = por %p93, %p94
    %p97 = scmp.ne.s32.totalorder %s80, %s96
    %p98 = scmp.eq.s32.totalorder %s34, 0
    %p99 = por %p97, %p98
    %s101 = sadd.s32 %s100, 1
    %p104 = scmp.eq.s32.totalorder %s28, 3
    %p105 = scmp.ne.s32.totalorder %s100, %s102
    %p106 = scmp.eq.s32.totalorder %s28, 0
    %p107 = por %p105, %p106
    %p108 = scmp.ne.s32.totalorder %s100, %s102
    %p109 = scmp.eq.s32.totalorder %s33, 3
    %p110 = por %p108, %p109
    %p111 = scmp.ne.s32.totalorder %s102, %s103
    %p112 = scmp.eq.s32.totalorder %s33, 0
    %p113 = por %p111, %p112
    %p114 = scmp.ne.s32.totalorder %s102, %s103
    %p115 = scmp.eq.s32.totalorder %s34, 3
    %p116 = por %p114, %p115
    %p118 = scmp.ne.s32.totalorder %s103, %s117
    %p119 = scmp.eq.s32.totalorder %s34, 0
    %p120 = por %p118, %p119
    %s122 = sadd.s32 %s121, 1
    %p125 = scmp.eq.s32.totalorder %s28, 3
    %p126 = scmp.ne.s32.totalorder %s121, %s123
    %p127 = scmp.eq.s32.totalorder %s28, 0
    %p128 = por %p126, %p127
    %p129 = scmp.ne.s32.totalorder %s121, %s123
    %p130 = scmp.eq.s32.totalorder %s33, 3
    %p131 = por %p129, %p130
    %p132 = scmp.ne.s32.totalorder %s123, %s124
    %p133 = scmp.eq.s32.totalorder %s33, 0
    %p134 = por %p132, %p133
    %p135 = scmp.ne.s32.totalorder %s123, %s124
    %p136 = scmp.eq.s32.totalorder %s34, 3
    %p137 = por %p135, %p136
    %p139 = scmp.ne.s32.totalorder %s124, %s138
    %p140 = scmp.eq.s32.totalorder %s34, 0
    %p141 = por %p139, %p140
    %s142 = ssub.s32 %s36, %s43
    %p143 = scmp.eq.s32.totalorder %s142, 0
    %s145 = sadd.s32 %s144, 1
    %s146 = scalar_select %p143, %s144, %s145
    %p149 = pneg %p143
    %p150 = scmp.eq.s32.totalorder %s28, 3
    %p151 = por %p149, %p150
    %p152 = scmp.ne.s32.totalorder %s144, %s147
    %p153 = scmp.eq.s32.totalorder %s28, 0
    %p154 = por %p152, %p153
    %p155 = scmp.ne.s32.totalorder %s144, %s147
    %p156 = scmp.eq.s32.totalorder %s33, 3
    %p157 = por %p155, %p156
    %p158 = scmp.ne.s32.totalorder %s147, %s148
    %p159 = scmp.eq.s32.totalorder %s33, 0
    %p160 = por %p158, %p159
    %p161 = scmp.ne.s32.totalorder %s147, %s148
    %p162 = scmp.eq.s32.totalorder %s34, 3
    %p163 = por %p161, %p162
    %p165 = scmp.ne.s32.totalorder %s148, %s164
    %p166 = scmp.eq.s32.totalorder %s34, 0
    %p167 = por %p165, %p166
    %s168 = ssub.s32 %s36, %s43
    %p169 = scmp.eq.s32.totalorder %s168, 0
    %s171 = sadd.s32 %s170, 1
    %s172 = scalar_select %p169, %s170, %s171
    %p175 = pneg %p169
    %p176 = scmp.eq.s32.totalorder %s28, 3
    %p177 = por %p175, %p176
    %p178 = scmp.ne.s32.totalorder %s170, %s173
    %p179 = scmp.eq.s32.totalorder %s28, 0
    %p180 = por %p178, %p179
    %p181 = scmp.ne.s32.totalorder %s170, %s173
    %p182 = scmp.eq.s32.totalorder %s33, 3
    %p183 = por %p181, %p182
    %p184 = scmp.ne.s32.totalorder %s173, %s174
    %p185 = scmp.eq.s32.totalorder %s33, 0
    %p186 = por %p184, %p185
    %p187 = scmp.ne.s32.totalorder %s173, %s174
    %p188 = scmp.eq.s32.totalorder %s34, 3
    %p189 = por %p187, %p188
    %p191 = scmp.ne.s32.totalorder %s174, %s190
    %p192 = scmp.eq.s32.totalorder %s34, 0
    %p193 = por %p191, %p192
    %s194 = ssub.s32 %s36, %s43
    %p195 = scmp.eq.s32.totalorder %s194, 0
    %s197 = sadd.s32 %s196, 1
    %s198 = scalar_select %p195, %s196, %s197
    %p201 = pneg %p195
    %p202 = scmp.eq.s32.totalorder %s28, 3
    %p203 = por %p201, %p202
    %p204 = scmp.ne.s32.totalorder %s196, %s199
    %p205 = scmp.eq.s32.totalorder %s28, 0
    %p206 = por %p204, %p205
    %p207 = scmp.ne.s32.totalorder %s196, %s199
    %p208 = scmp.eq.s32.totalorder %s33, 3
    %p209 = por %p207, %p208
    %p210 = scmp.ne.s32.totalorder %s199, %s200
    %p211 = scmp.eq.s32.totalorder %s33, 0
    %p212 = por %p210, %p211
    %p213 = scmp.ne.s32.totalorder %s199, %s200
    %p214 = scmp.eq.s32.totalorder %s34, 3
    %p215 = por %p213, %p214
    %p217 = scmp.ne.s32.totalorder %s200, %s216
    %p218 = scmp.eq.s32.totalorder %s34, 0
    %p219 = por %p217, %p218
    %s220 = ssub.s32 %s36, %s43
    %p221 = scmp.eq.s32.totalorder %s220, 0
    %s223 = sadd.s32 %s222, 1
    %s224 = scalar_select %p221, %s222, %s223
    %p227 = pneg %p221
    %p228 = scmp.eq.s32.totalorder %s28, 3
    %p229 = por %p227, %p228
    %p230 = scmp.ne.s32.totalorder %s222, %s225
    %p231 = scmp.eq.s32.totalorder %s28, 0
    %p232 = por %p230, %p231
    %p233 = scmp.ne.s32.totalorder %s222, %s225
    %p234 = scmp.eq.s32.totalorder %s33, 3
    %p235 = por %p233, %p234
    %p236 = scmp.ne.s32.totalorder %s225, %s226
    %p237 = scmp.eq.s32.totalorder %s33, 0
    %p238 = por %p236, %p237
    %p239 = scmp.ne.s32.totalorder %s225, %s226
    %p240 = scmp.eq.s32.totalorder %s34, 3
    %p241 = por %p239, %p240
    %p243 = scmp.ne.s32.totalorder %s226, %s242
    %p244 = scmp.eq.s32.totalorder %s34, 0
    %p245 = por %p243, %p244
    %s246 = ssub.s32 %s36, %s43
    %p247 = scmp.eq.s32.totalorder %s246, 0
    %s249 = sadd.s32 %s248, 1
    %s250 = scalar_select %p247, %s248, %s249
    %p253 = pneg %p247
    %p254 = scmp.eq.s32.totalorder %s28, 3
    %p255 = por %p253, %p254
    %p256 = scmp.ne.s32.totalorder %s248, %s251
    %p257 = scmp.eq.s32.totalorder %s28, 0
    %p258 = por %p256, %p257
    %p259 = scmp.ne.s32.totalorder %s248, %s251
    %p260 = scmp.eq.s32.totalorder %s33, 3
    %p261 = por %p259, %p260
    %p262 = scmp.ne.s32.totalorder %s251, %s252
    %p263 = scmp.eq.s32.totalorder %s33, 0
    %p264 = por %p262, %p263
    %p265 = scmp.ne.s32.totalorder %s251, %s252
    %p266 = scmp.eq.s32.totalorder %s34, 3
    %p267 = por %p265, %p266
    %p269 = scmp.ne.s32.totalorder %s252, %s268
    %p270 = scmp.eq.s32.totalorder %s34, 0
    %p271 = por %p269, %p270
    %s272 = ssub.s32 %s36, %s43
    %p273 = scmp.eq.s32.totalorder %s272, 0
    %s275 = sadd.s32 %s274, 1
    %s276 = scalar_select %p273, %s274, %s275
    %p279 = pneg %p273
    %p280 = scmp.eq.s32.totalorder %s28, 3
    %p281 = por %p279, %p280
    %p282 = scmp.ne.s32.totalorder %s274, %s277
    %p283 = scmp.eq.s32.totalorder %s28, 0
    %p284 = por %p282, %p283
    %p285 = scmp.ne.s32.totalorder %s274, %s277
    %p286 = scmp.eq.s32.totalorder %s33, 3
    %p287 = por %p285, %p286
    %p288 = scmp.ne.s32.totalorder %s277, %s278
    %p289 = scmp.eq.s32.totalorder %s33, 0
    %p290 = por %p288, %p289
    %p291 = scmp.ne.s32.totalorder %s277, %s278
    %p292 = scmp.eq.s32.totalorder %s34, 3
    %p293 = por %p291, %p292
    %p295 = scmp.ne.s32.totalorder %s278, %s294
    %p296 = scmp.eq.s32.totalorder %s34, 0
    %p297 = por %p295, %p296
    %s298 = ssub.s32 %s36, %s43
    %p299 = scmp.eq.s32.totalorder %s298, 0
    %s301 = sadd.s32 %s300, 1
    %s302 = scalar_select %p299, %s300, %s301
    %p305 = pneg %p299
    %p306 = scmp.eq.s32.totalorder %s28, 3
    %p307 = por %p305, %p306
    %p308 = scmp.ne.s32.totalorder %s300, %s303
    %p309 = scmp.eq.s32.totalorder %s28, 0
    %p310 = por %p308, %p309
    %p311 = scmp.ne.s32.totalorder %s300, %s303
    %p312 = scmp.eq.s32.totalorder %s33, 3
    %p313 = por %p311, %p312
    %p314 = scmp.ne.s32.totalorder %s303, %s304
    %p315 = scmp.eq.s32.totalorder %s33, 0
    %p316 = por %p314, %p315
    %p317 = scmp.ne.s32.totalorder %s303, %s304
    %p318 = scmp.eq.s32.totalorder %s34, 3
    %p319 = por %p317, %p318
    %p321 = scmp.ne.s32.totalorder %s304, %s320
    %p322 = scmp.eq.s32.totalorder %s34, 0
    %p323 = por %p321, %p322
    %s324 = ssub.s32 %s36, %s43
    %p325 = scmp.eq.s32.totalorder %s324, 0
    %s327 = sadd.s32 %s326, 1
    %s328 = scalar_select %p325, %s326, %s327
    %p331 = pneg %p325
    %p332 = scmp.eq.s32.totalorder %s28, 3
    %p333 = por %p331, %p332
    %p334 = scmp.ne.s32.totalorder %s326, %s329
    %p335 = scmp.eq.s32.totalorder %s28, 0
    %p336 = por %p334, %p335
    %p337 = scmp.ne.s32.totalorder %s326, %s329
    %p338 = scmp.eq.s32.totalorder %s33, 3
    %p339 = por %p337, %p338
    %p340 = scmp.ne.s32.totalorder %s329, %s330
    %p341 = scmp.eq.s32.totalorder %s33, 0
    %p342 = por %p340, %p341
    %p343 = scmp.ne.s32.totalorder %s329, %s330
    %p344 = scmp.eq.s32.totalorder %s34, 3
    %p345 = por %p343, %p344
    %p347 = scmp.ne.s32.totalorder %s330, %s346
    %p348 = scmp.eq.s32.totalorder %s34, 0
    %p349 = por %p347, %p348
    %s350 = ssub.s32 %s36, %s43
    %p351 = scmp.eq.s32.totalorder %s350, 0
    %s353 = sadd.s32 %s352, 1
    %s354 = scalar_select %p351, %s352, %s353
    %p357 = pneg %p351
    %p358 = scmp.eq.s32.totalorder %s28, 3
    %p359 = por %p357, %p358
    %p360 = scmp.ne.s32.totalorder %s352, %s355
    %p361 = scmp.eq.s32.totalorder %s28, 0
    %p362 = por %p360, %p361
    %p363 = scmp.ne.s32.totalorder %s352, %s355
    %p364 = scmp.eq.s32.totalorder %s33, 3
    %p365 = por %p363, %p364
    %p366 = scmp.ne.s32.totalorder %s355, %s356
    %p367 = scmp.eq.s32.totalorder %s33, 0
    %p368 = por %p366, %p367
    %p369 = scmp.ne.s32.totalorder %s355, %s356
    %p370 = scmp.eq.s32.totalorder %s34, 3
    %p371 = por %p369, %p370
    %p373 = scmp.ne.s32.totalorder %s356, %s372
    %p374 = scmp.eq.s32.totalorder %s34, 0
    %p375 = por %p373, %p374
    %s376 = ssub.s32 %s36, %s43
    %p377 = scmp.eq.s32.totalorder %s376, 0
    %s379 = sadd.s32 %s378, 1
    %s380 = scalar_select %p377, %s378, %s379
    %p383 = pneg %p377
    %p384 = scmp.eq.s32.totalorder %s28, 3
    %p385 = por %p383, %p384
    %p386 = scmp.ne.s32.totalorder %s378, %s381
    %p387 = scmp.eq.s32.totalorder %s28, 0
    %p388 = por %p386, %p387
    %p389 = scmp.ne.s32.totalorder %s378, %s381
    %p390 = scmp.eq.s32.totalorder %s33, 3
    %p391 = por %p389, %p390
    %p392 = scmp.ne.s32.totalorder %s381, %s382
    %p393 = scmp.eq.s32.totalorder %s33, 0
    %p394 = por %p392, %p393
    %p395 = scmp.ne.s32.totalorder %s381, %s382
    %p396 = scmp.eq.s32.totalorder %s34, 3
    %p397 = por %p395, %p396
    %p399 = scmp.ne.s32.totalorder %s382, %s398
    %p400 = scmp.eq.s32.totalorder %s34, 0
    %p401 = por %p399, %p400
    %s402 = ssub.s32 %s36, %s43
    %p403 = scmp.eq.s32.totalorder %s402, 0
    %s405 = sadd.s32 %s404, 1
    %s406 = scalar_select %p403, %s404, %s405
    %p409 = pneg %p403
    %p410 = scmp.eq.s32.totalorder %s28, 3
    %p411 = por %p409, %p410
    %p412 = scmp.ne.s32.totalorder %s404, %s407
    %p413 = scmp.eq.s32.totalorder %s28, 0
    %p414 = por %p412, %p413
    %p415 = scmp.ne.s32.totalorder %s404, %s407
    %p416 = scmp.eq.s32.totalorder %s33, 3
    %p417 = por %p415, %p416
    %p418 = scmp.ne.s32.totalorder %s407, %s408
    %p419 = scmp.eq.s32.totalorder %s33, 0
    %p420 = por %p418, %p419
    %p421 = scmp.ne.s32.totalorder %s407, %s408
    %p422 = scmp.eq.s32.totalorder %s34, 3
    %p423 = por %p421, %p422
    %p425 = scmp.ne.s32.totalorder %s408, %s424
    %p426 = scmp.eq.s32.totalorder %s34, 0
    %p427 = por %p425, %p426
    %s428 = ssub.s32 %s36, %s43
    %p429 = scmp.eq.s32.totalorder %s428, 0
    %s431 = sadd.s32 %s430, 1
    %s432 = scalar_select %p429, %s430, %s431
    %p435 = pneg %p429
    %p436 = scmp.eq.s32.totalorder %s28, 3
    %p437 = por %p435, %p436
    %p438 = scmp.ne.s32.totalorder %s430, %s433
    %p439 = scmp.eq.s32.totalorder %s28, 0
    %p440 = por %p438, %p439
    %p441 = scmp.ne.s32.totalorder %s430, %s433
    %p442 = scmp.eq.s32.totalorder %s33, 3
    %p443 = por %p441, %p442
    %p444 = scmp.ne.s32.totalorder %s433, %s434
    %p445 = scmp.eq.s32.totalorder %s33, 0
    %p446 = por %p444, %p445
    %p447 = scmp.ne.s32.totalorder %s433, %s434
    %p448 = scmp.eq.s32.totalorder %s34, 3
    %p449 = por %p447, %p448
    %p451 = scmp.ne.s32.totalorder %s434, %s450
    %p452 = scmp.eq.s32.totalorder %s34, 0
    %p453 = por %p451, %p452
    %s455 = sadd.s32 %s454, 1
    %p458 = scmp.eq.s32.totalorder %s28, 3
    %p459 = scmp.ne.s32.totalorder %s454, %s456
    %p460 = scmp.eq.s32.totalorder %s28, 0
    %p461 = por %p459, %p460
    %p462 = scmp.ne.s32.totalorder %s454, %s456
    %p463 = scmp.eq.s32.totalorder %s33, 3
    %p464 = por %p462, %p463
    %p465 = scmp.ne.s32.totalorder %s456, %s457
    %p466 = scmp.eq.s32.totalorder %s33, 0
    %p467 = por %p465, %p466
    %p468 = scmp.ne.s32.totalorder %s456, %s457
    %p469 = scmp.eq.s32.totalorder %s34, 3
    %p470 = por %p468, %p469
    %p472 = scmp.ne.s32.totalorder %s457, %s471
    %p473 = scmp.eq.s32.totalorder %s34, 0
    %p474 = por %p472, %p473
    %s476 = sadd.s32 %s475, 1
    %p479 = scmp.eq.s32.totalorder %s28, 3
    %p480 = scmp.ne.s32.totalorder %s475, %s477
    %p481 = scmp.eq.s32.totalorder %s28, 0
    %p482 = por %p480, %p481
    %p483 = scmp.ne.s32.totalorder %s475, %s477
    %p484 = scmp.eq.s32.totalorder %s33, 3
    %p485 = por %p483, %p484
    %p486 = scmp.ne.s32.totalorder %s477, %s478
    %p487 = scmp.eq.s32.totalorder %s33, 0
    %p488 = por %p486, %p487
    %p489 = scmp.ne.s32.totalorder %s477, %s478
    %p490 = scmp.eq.s32.totalorder %s34, 3
    %p491 = por %p489, %p490
    %p493 = scmp.ne.s32.totalorder %s478, %s492
    %p494 = scmp.eq.s32.totalorder %s34, 0
    %p495 = por %p493, %p494
    %s497 = sadd.s32 %s496, 1
    %p500 = scmp.eq.s32.totalorder %s28, 3
    %p501 = scmp.ne.s32.totalorder %s496, %s498
    %p502 = scmp.eq.s32.totalorder %s28, 0
    %p503 = por %p501, %p502
    %p504 = scmp.ne.s32.totalorder %s496, %s498
    %p505 = scmp.eq.s32.totalorder %s33, 3
    %p506 = por %p504, %p505
    %p507 = scmp.ne.s32.totalorder %s498, %s499
    %p508 = scmp.eq.s32.totalorder %s33, 0
    %p509 = por %p507, %p508
    %p510 = scmp.ne.s32.totalorder %s498, %s499
    %p511 = scmp.eq.s32.totalorder %s34, 3
    %p512 = por %p510, %p511
    %p514 = scmp.ne.s32.totalorder %s499, %s513
    %p515 = scmp.eq.s32.totalorder %s34, 0
    %p516 = por %p514, %p515
    %s518 = sadd.s32 %s517, 1
    %p521 = scmp.eq.s32.totalorder %s28, 3
    %p522 = scmp.ne.s32.totalorder %s517, %s519
    %p523 = scmp.eq.s32.totalorder %s28, 0
    %p524 = por %p522, %p523
    %p525 = scmp.ne.s32.totalorder %s517, %s519
    %p526 = scmp.eq.s32.totalorder %s33, 3
    %p527 = por %p525, %p526
    %p528 = scmp.ne.s32.totalorder %s519, %s520
    %p529 = scmp.eq.s32.totalorder %s33, 0
    %p530 = por %p528, %p529
    %p531 = scmp.ne.s32.totalorder %s519, %s520
    %p532 = scmp.eq.s32.totalorder %s34, 3
    %p533 = por %p531, %p532
    %p535 = scmp.ne.s32.totalorder %s520, %s534
    %p536 = scmp.eq.s32.totalorder %s34, 0
    %p537 = por %p535, %p536
    %s538 = ssub.s32 %s35, %s47
    %p539 = scmp.eq.s32.totalorder %s538, 0
    %s541 = sadd.s32 %s540, 1
    %s542 = scalar_select %p539, %s540, %s541
    %p545 = pneg %p539
    %p546 = scmp.eq.s32.totalorder %s28, 3
    %p547 = por %p545, %p546
    %p548 = scmp.ne.s32.totalorder %s540, %s543
    %p549 = scmp.eq.s32.totalorder %s28, 0
    %p550 = por %p548, %p549
    %p551 = scmp.ne.s32.totalorder %s540, %s543
    %p552 = scmp.eq.s32.totalorder %s33, 3
    %p553 = por %p551, %p552
    %p554 = scmp.ne.s32.totalorder %s543, %s544
    %p555 = scmp.eq.s32.totalorder %s33, 0
    %p556 = por %p554, %p555
    %p557 = scmp.ne.s32.totalorder %s543, %s544
    %p558 = scmp.eq.s32.totalorder %s34, 3
    %p559 = por %p557, %p558
    %p561 = scmp.ne.s32.totalorder %s544, %s560
    %p562 = scmp.eq.s32.totalorder %s34, 0
    %p563 = por %p561, %p562
    %p564 = scmp.le.s32.totalorder 1, %s28
    %p565 = scmp.lt.s32.totalorder %s28, 5
    %p566 = pnand %p564, %p565
    %p567 = pneg %p566
    // Predicated region
    $region9: #{bd2bb_forward.1} parent=5 // pred_check
      _
    $region10: #{bd2bb_forward.1} parent=5 // pred_check_branch
      %569 = sbr.rel (%p566) target = $region12
    $region11: #{bd2bb_forward.1} parent=5 // pred_region
      %s570 = ssub.s32 %s28, 1
      // Predicated region
      $region13: #{bd2bb_forward.1} parent=11 // pred_check
        %p571 = pneg %p113
      $region14: #{bd2bb_forward.1} parent=11 // pred_check_branch
        %573 = sbr.rel (%p571) target = $region16
      $region15: #{bd2bb_forward.1} parent=11 // pred_region
        _
      $region16: #{bd2bb_forward.1} parent=11 // pred_fallthru
        _
      // Predicated region
      $region17: #{bd2bb_forward.1} parent=11 // pred_check
        %p574 = pneg %p134
      $region18: #{bd2bb_forward.1} parent=11 // pred_check_branch
        %576 = sbr.rel (%p574) target = $region20
      $region19: #{bd2bb_forward.1} parent=11 // pred_region
        _
      $region20: #{bd2bb_forward.1} parent=11 // pred_fallthru
        _
      // Predicated region
      $region21: #{bd2bb_forward.1} parent=11 // pred_check
        %p577 = pneg %p467
      $region22: #{bd2bb_forward.1} parent=11 // pred_check_branch
        %579 = sbr.rel (%p577) target = $region24
      $region23: #{bd2bb_forward.1} parent=11 // pred_region
        _
      $region24: #{bd2bb_forward.1} parent=11 // pred_fallthru
        _
      // Predicated region
      $region25: #{bd2bb_forward.1} parent=11 // pred_check
        %p580 = pneg %p488
      $region26: #{bd2bb_forward.1} parent=11 // pred_check_branch
        %582 = sbr.rel (%p580) target = $region28
      $region27: #{bd2bb_forward.1} parent=11 // pred_region
        _
      $region28: #{bd2bb_forward.1} parent=11 // pred_fallthru
        _
      // Predicated region
      $region29: #{bd2bb_forward.1} parent=11 // pred_check
        %p583 = pneg %p509
      $region30: #{bd2bb_forward.1} parent=11 // pred_check_branch
        %585 = sbr.rel (%p583) target = $region32
      $region31: #{bd2bb_forward.1} parent=11 // pred_region
        _
      $region32: #{bd2bb_forward.1} parent=11 // pred_fallthru
        _
      // Predicated region
      $region33: #{bd2bb_forward.1} parent=11 // pred_check
        %p586 = pneg %p530
      $region34: #{bd2bb_forward.1} parent=11 // pred_check_branch
        %588 = sbr.rel (%p586) target = $region36
      $region35: #{bd2bb_forward.1} parent=11 // pred_region
        _
      $region36: #{bd2bb_forward.1} parent=11 // pred_fallthru
        _
    $region12: #{bd2bb_forward.1} parent=5 // pred_fallthru
      _
    %p589 = scmp.lt.s32.totalorder %s28, 4
    // Predicated region
    $region37: #{bd2bb_forward.1} parent=5 // pred_check
      %p590 = pneg %p589
    $region38: #{bd2bb_forward.1} parent=5 // pred_check_branch
      %592 = sbr.rel (%p590) target = $region40
    $region39: #{bd2bb_forward.1} parent=5 // pred_region
      // Predicated region
      $region41: #{bd2bb_forward.1} parent=39 // pred_check
        %p593 = pneg %p60
      $region42: #{bd2bb_forward.1} parent=39 // pred_check_branch
        %595 = sbr.rel (%p593) target = $region44
      $region43: #{bd2bb_forward.1} parent=39 // pred_region
        %p596 = scmp.lt.s32.totalorder %s35, 1
        %s597 = scalar_select %p596, %s35, 1
        %s598 = smul.addr %s597, 20
        %s599 = smul.addr %s598, 8
        %s600 = scalar_lea.vmem %s0, %s599
      $region44: #{bd2bb_forward.1} parent=39 // pred_fallthru
        _
      // Predicated region
      $region45: #{bd2bb_forward.1} parent=39 // pred_check
        %p601 = pneg %p86
      $region46: #{bd2bb_forward.1} parent=39 // pred_check_branch
        %603 = sbr.rel (%p601) target = $region48
      $region47: #{bd2bb_forward.1} parent=39 // pred_region
        %p604 = scmp.lt.s32.totalorder %s35, 1
        %s605 = scalar_select %p604, %s35, 1
        %s606 = smul.addr %s605, 5
        %s607 = scalar_lea.vmem %s1, %s606
      $region48: #{bd2bb_forward.1} parent=39 // pred_fallthru
        _
      // Predicated region
      $region49: #{bd2bb_forward.1} parent=39 // pred_check
        %p608 = pneg %p154
      $region50: #{bd2bb_forward.1} parent=39 // pred_check_branch
        %610 = sbr.rel (%p608) target = $region52
      $region51: #{bd2bb_forward.1} parent=39 // pred_region
        %p611 = scmp.lt.s32.totalorder %s36, 1
        %s612 = scalar_select %p611, %s36, 1
        %s613 = smul.addr %s612, 192
        %s614 = smul.addr %s613, 4
        %s615 = scalar_lea.vmem %s4, %s614
      $region52: #{bd2bb_forward.1} parent=39 // pred_fallthru
        _
      // Predicated region
      $region53: #{bd2bb_forward.1} parent=39 // pred_check
        %p616 = pneg %p180
      $region54: #{bd2bb_forward.1} parent=39 // pred_check_branch
        %618 = sbr.rel (%p616) target = $region56
      $region55: #{bd2bb_forward.1} parent=39 // pred_region
        %p619 = scmp.lt.s32.totalorder %s36, 1
        %s620 = scalar_select %p619, %s36, 1
        %s621 = smul.addr %s620, 6
        %s622 = scalar_lea.vmem %s5, %s621
      $region56: #{bd2bb_forward.1} parent=39 // pred_fallthru
        _
      // Predicated region
      $region57: #{bd2bb_forward.1} parent=39 // pred_check
        %p623 = pneg %p206
      $region58: #{bd2bb_forward.1} parent=39 // pred_check_branch
        %625 = sbr.rel (%p623) target = $region60
      $region59: #{bd2bb_forward.1} parent=39 // pred_region
        %p626 = scmp.lt.s32.totalorder %s36, 1
        %s627 = scalar_select %p626, %s36, 1
        %s628 = smul.addr %s627, 64
        %s629 = smul.addr %s628, 4
        %s630 = scalar_lea.vmem %s6, %s629
      $region60: #{bd2bb_forward.1} parent=39 // pred_fallthru
        _
      // Predicated region
      $region61: #{bd2bb_forward.1} parent=39 // pred_check
        %p631 = pneg %p232
      $region62: #{bd2bb_forward.1} parent=39 // pred_check_branch
        %633 = sbr.rel (%p631) target = $region64
      $region63: #{bd2bb_forward.1} parent=39 // pred_region
        %p634 = scmp.lt.s32.totalorder %s36, 1
        %s635 = scalar_select %p634, %s36, 1
        %s636 = smul.addr %s635, 2
        %s637 = scalar_lea.vmem %s7, %s636
      $region64: #{bd2bb_forward.1} parent=39 // pred_fallthru
        _
      // Predicated region
      $region65: #{bd2bb_forward.1} parent=39 // pred_check
        %p638 = pneg %p258
      $region66: #{bd2bb_forward.1} parent=39 // pred_check_branch
        %640 = sbr.rel (%p638) target = $region68
      $region67: #{bd2bb_forward.1} parent=39 // pred_region
        %p641 = scmp.lt.s32.totalorder %s36, 1
        %s642 = scalar_select %p641, %s36, 1
        %s643 = smul.addr %s642, 2
        %s644 = scalar_lea.vmem %s8, %s643
      $region68: #{bd2bb_forward.1} parent=39 // pred_fallthru
        _
      // Predicated region
      $region69: #{bd2bb_forward.1} parent=39 // pred_check
        %p645 = pneg %p284
      $region70: #{bd2bb_forward.1} parent=39 // pred_check_branch
        %647 = sbr.rel (%p645) target = $region72
      $region71: #{bd2bb_forward.1} parent=39 // pred_region
        %p648 = scmp.lt.s32.totalorder %s36, 1
        %s649 = scalar_select %p648, %s36, 1
        %s650 = smul.addr %s649, 2
        %s651 = scalar_lea.vmem %s9, %s650
      $region72: #{bd2bb_forward.1} parent=39 // pred_fallthru
        _
      // Predicated region
      $region73: #{bd2bb_forward.1} parent=39 // pred_check
        %p652 = pneg %p310
      $region74: #{bd2bb_forward.1} parent=39 // pred_check_branch
        %654 = sbr.rel (%p652) target = $region76
      $region75: #{bd2bb_forward.1} parent=39 // pred_region
        %p655 = scmp.lt.s32.totalorder %s36, 1
        %s656 = scalar_select %p655, %s36, 1
        %s657 = smul.addr %s656, 128
        %s658 = smul.addr %s657, 4
        %s659 = scalar_lea.vmem %s10, %s658
      $region76: #{bd2bb_forward.1} parent=39 // pred_fallthru
        _
      // Predicated region
      $region77: #{bd2bb_forward.1} parent=39 // pred_check
        %p660 = pneg %p336
      $region78: #{bd2bb_forward.1} parent=39 // pred_check_branch
        %662 = sbr.rel (%p660) target = $region80
      $region79: #{bd2bb_forward.1} parent=39 // pred_region
        %p663 = scmp.lt.s32.totalorder %s36, 1
        %s664 = scalar_select %p663, %s36, 1
        %s665 = smul.addr %s664, 4
        %s666 = scalar_lea.vmem %s11, %s665
      $region80: #{bd2bb_forward.1} parent=39 // pred_fallthru
        _
      // Predicated region
      $region81: #{bd2bb_forward.1} parent=39 // pred_check
        %p667 = pneg %p362
      $region82: #{bd2bb_forward.1} parent=39 // pred_check_branch
        %669 = sbr.rel (%p667) target = $region84
      $region83: #{bd2bb_forward.1} parent=39 // pred_region
        %p670 = scmp.lt.s32.totalorder %s36, 1
        %s671 = scalar_select %p670, %s36, 1
        %s672 = smul.addr %s671, 128
        %s673 = smul.addr %s672, 4
        %s674 = scalar_lea.vmem %s12, %s673
      $region84: #{bd2bb_forward.1} parent=39 // pred_fallthru
        _
      // Predicated region
      $region85: #{bd2bb_forward.1} parent=39 // pred_check
        %p675 = pneg %p388
      $region86: #{bd2bb_forward.1} parent=39 // pred_check_branch
        %677 = sbr.rel (%p675) target = $region88
      $region87: #{bd2bb_forward.1} parent=39 // pred_region
        %p678 = scmp.lt.s32.totalorder %s36, 1
        %s679 = scalar_select %p678, %s36, 1
        %s680 = smul.addr %s679, 2
        %s681 = scalar_lea.vmem %s13, %s680
      $region88: #{bd2bb_forward.1} parent=39 // pred_fallthru
        _
      // Predicated region
      $region89: #{bd2bb_forward.1} parent=39 // pred_check
        %p682 = pneg %p414
      $region90: #{bd2bb_forward.1} parent=39 // pred_check_branch
        %684 = sbr.rel (%p682) target = $region92
      $region91: #{bd2bb_forward.1} parent=39 // pred_region
        %p685 = scmp.lt.s32.totalorder %s36, 1
        %s686 = scalar_select %p685, %s36, 1
        %s687 = smul.addr %s686, 2
        %s688 = scalar_lea.vmem %s14, %s687
      $region92: #{bd2bb_forward.1} parent=39 // pred_fallthru
        _
      // Predicated region
      $region93: #{bd2bb_forward.1} parent=39 // pred_check
        %p689 = pneg %p440
      $region94: #{bd2bb_forward.1} parent=39 // pred_check_branch
        %691 = sbr.rel (%p689) target = $region96
      $region95: #{bd2bb_forward.1} parent=39 // pred_region
        %p692 = scmp.lt.s32.totalorder %s36, 1
        %s693 = scalar_select %p692, %s36, 1
        %s694 = smul.addr %s693, 2
        %s695 = scalar_lea.vmem %s15, %s694
      $region96: #{bd2bb_forward.1} parent=39 // pred_fallthru
        _
    $region40: #{bd2bb_forward.1} parent=5 // pred_fallthru
      _
    %p696 = scmp.le.s32.totalorder 1, %s28
    %p697 = scmp.lt.s32.totalorder %s28, 5
    %p698 = pnand %p696, %p697
    %p699 = pneg %p698
    // Predicated region
    $region97: #{bd2bb_forward.1} parent=5 // pred_check
      _
    $region98: #{bd2bb_forward.1} parent=5 // pred_check_branch
      %701 = sbr.rel (%p698) target = $region100
    $region99: #{bd2bb_forward.1} parent=5 // pred_region
      %s702 = ssub.s32 %s28, 1
      %p703 = scmp.lt.s32.totalorder %s37, 1
      %s704 = scalar_select %p703, %s37, 1
      %s705 = smul.addr %s704, 20
      %s706 = smul.addr %s705, 8
      %s707 = scalar_lea.vmem %s0, %s706
      %p708 = pneg %p66
      %p709 = pneg %p63
      %p710 = scmp.lt.s32.totalorder %s37, 1
      %s711 = scalar_select %p710, %s37, 1
      %s712 = smul.addr %s711, 5
      %s713 = scalar_lea.vmem %s1, %s712
      %p714 = pneg %p92
      %p715 = pneg %p89
      %p716 = pneg %p113
      %p717 = pneg %p110
      %p718 = pneg %p134
      %p719 = pneg %p131
      %p720 = scmp.lt.s32.totalorder %s38, 1
      %s721 = scalar_select %p720, %s38, 1
      %s722 = smul.addr %s721, 192
      %s723 = smul.addr %s722, 4
      %s724 = scalar_lea.vmem %s4, %s723
      %p725 = pneg %p160
      %p726 = pneg %p157
      %p727 = scmp.lt.s32.totalorder %s38, 1
      %s728 = scalar_select %p727, %s38, 1
      %s729 = smul.addr %s728, 6
      %s730 = scalar_lea.vmem %s5, %s729
      %p731 = pneg %p186
      %p732 = pneg %p183
      %p733 = scmp.lt.s32.totalorder %s38, 1
      %s734 = scalar_select %p733, %s38, 1
      %s735 = smul.addr %s734, 64
      %s736 = smul.addr %s735, 4
      %s737 = scalar_lea.vmem %s6, %s736
      %p738 = pneg %p212
      %p739 = pneg %p209
      %p740 = scmp.lt.s32.totalorder %s38, 1
      %s741 = scalar_select %p740, %s38, 1
      %s742 = smul.addr %s741, 2
      %s743 = scalar_lea.vmem %s7, %s742
      %p744 = pneg %p238
      %p745 = pneg %p235
      %p746 = scmp.lt.s32.totalorder %s38, 1
      %s747 = scalar_select %p746, %s38, 1
      %s748 = smul.addr %s747, 2
      %s749 = scalar_lea.vmem %s8, %s748
      %p750 = pneg %p264
      %p751 = pneg %p261
      %p752 = scmp.lt.s32.totalorder %s38, 1
      %s753 = scalar_select %p752, %s38, 1
      %s754 = smul.addr %s753, 2
      %s755 = scalar_lea.vmem %s9, %s754
      %p756 = pneg %p290
      %p757 = pneg %p287
      %p758 = scmp.lt.s32.totalorder %s38, 1
      %s759 = scalar_select %p758, %s38, 1
      %s760 = smul.addr %s759, 128
      %s761 = smul.addr %s760, 4
      %s762 = scalar_lea.vmem %s10, %s761
      %p763 = pneg %p316
      %p764 = pneg %p313
      %p765 = scmp.lt.s32.totalorder %s38, 1
      %s766 = scalar_select %p765, %s38, 1
      %s767 = smul.addr %s766, 4
      %s768 = scalar_lea.vmem %s11, %s767
      %p769 = pneg %p342
      %p770 = pneg %p339
      %p771 = scmp.lt.s32.totalorder %s38, 1
      %s772 = scalar_select %p771, %s38, 1
      %s773 = smul.addr %s772, 128
      %s774 = smul.addr %s773, 4
      %s775 = scalar_lea.vmem %s12, %s774
      %p776 = pneg %p368
      %p777 = pneg %p365
      %p778 = scmp.lt.s32.totalorder %s38, 1
      %s779 = scalar_select %p778, %s38, 1
      %s780 = smul.addr %s779, 2
      %s781 = scalar_lea.vmem %s13, %s780
      %p782 = pneg %p394
      %p783 = pneg %p391
      %p784 = scmp.lt.s32.totalorder %s38, 1
      %s785 = scalar_select %p784, %s38, 1
      %s786 = smul.addr %s785, 2
      %s787 = scalar_lea.vmem %s14, %s786
      %p788 = pneg %p420
      %p789 = pneg %p417
      %p790 = scmp.lt.s32.totalorder %s38, 1
      %s791 = scalar_select %p790, %s38, 1
      %s792 = smul.addr %s791, 2
      %s793 = scalar_lea.vmem %s15, %s792
      %p794 = pneg %p446
      %p795 = pneg %p443
      %p796 = pneg %p467
      %p797 = pneg %p464
      %p798 = pneg %p488
      %p799 = pneg %p485
      %p800 = pneg %p509
      %p801 = pneg %p506
      %p802 = pneg %p530
      %p803 = pneg %p527
      %p804 = pneg %p556
      %p805 = pneg %p553
      %p806 = scmp.lt.s32.totalorder %s37, 1
      %s807 = scalar_select %p806, %s37, 1
      %s808 = smul.addr %s807, 8
      %s809 = scalar_lea.vmem %s20, %s808
      %p810 = scmp.lt.s32.totalorder %s37, 1
      %s811 = scalar_select %p810, %s37, 1
      %s812 = smul.addr %s811, 20
      %s813 = smul.addr %s812, 8
      %s814 = scalar_lea.vmem %s0, %s813
      %p815 = scmp.lt.s32.totalorder %s37, 1
      %s816 = scalar_select %p815, %s37, 1
      %s817 = smul.addr %s816, 5
      %s818 = scalar_lea.vmem %s1, %s817
      %p819 = scmp.lt.s32.totalorder %s38, 1
      %s820 = scalar_select %p819, %s38, 1
      %s821 = smul.addr %s820, 192
      %s822 = smul.addr %s821, 4
      %s823 = scalar_lea.vmem %s4, %s822
      %p824 = scmp.lt.s32.totalorder %s38, 1
      %s825 = scalar_select %p824, %s38, 1
      %s826 = smul.addr %s825, 6
      %s827 = scalar_lea.vmem %s5, %s826
      %p828 = scmp.lt.s32.totalorder %s38, 1
      %s829 = scalar_select %p828, %s38, 1
      %s830 = smul.addr %s829, 64
      %s831 = smul.addr %s830, 4
      %s832 = scalar_lea.vmem %s6, %s831
      %p833 = scmp.lt.s32.totalorder %s38, 1
      %s834 = scalar_select %p833, %s38, 1
      %s835 = smul.addr %s834, 2
      %s836 = scalar_lea.vmem %s7, %s835
      %p837 = scmp.lt.s32.totalorder %s38, 1
      %s838 = scalar_select %p837, %s38, 1
      %s839 = smul.addr %s838, 2
      %s840 = scalar_lea.vmem %s8, %s839
      %p841 = scmp.lt.s32.totalorder %s38, 1
      %s842 = scalar_select %p841, %s38, 1
      %s843 = smul.addr %s842, 2
      %s844 = scalar_lea.vmem %s9, %s843
      %p845 = scmp.lt.s32.totalorder %s38, 1
      %s846 = scalar_select %p845, %s38, 1
      %s847 = smul.addr %s846, 128
      %s848 = smul.addr %s847, 4
      %s849 = scalar_lea.vmem %s10, %s848
      %p850 = scmp.lt.s32.totalorder %s38, 1
      %s851 = scalar_select %p850, %s38, 1
      %s852 = smul.addr %s851, 4
      %s853 = scalar_lea.vmem %s11, %s852
      %p854 = scmp.lt.s32.totalorder %s38, 1
      %s855 = scalar_select %p854, %s38, 1
      %s856 = smul.addr %s855, 128
      %s857 = smul.addr %s856, 4
      %s858 = scalar_lea.vmem %s12, %s857
      %p859 = scmp.lt.s32.totalorder %s38, 1
      %s860 = scalar_select %p859, %s38, 1
      %s861 = smul.addr %s860, 2
      %s862 = scalar_lea.vmem %s13, %s861
      %p863 = scmp.lt.s32.totalorder %s38, 1
      %s864 = scalar_select %p863, %s38, 1
      %s865 = smul.addr %s864, 2
      %s866 = scalar_lea.vmem %s14, %s865
      %p867 = scmp.lt.s32.totalorder %s38, 1
      %s868 = scalar_select %p867, %s38, 1
      %s869 = smul.addr %s868, 2
      %s870 = scalar_lea.vmem %s15, %s869
      %p871 = scmp.lt.s32.totalorder %s37, 1
      %s872 = scalar_select %p871, %s37, 1
      %s873 = smul.addr %s872, 8
      %s874 = scalar_lea.vmem %s20, %s873
      %p876 = scmp.eq.s32.totalorder %s38, 0
      // Predicated region
      $region101: #{bd2bb_forward.1} parent=99 // pred_check
        %p877 = pneg %p876
      $region102: #{bd2bb_forward.1} parent=99 // pred_check_branch
        %879 = sbr.rel (%p877) target = $region104
      $region103: #{bd2bb_forward.1} parent=99 // pred_region
        %v880 = vld [vmem:[%s814] sm:$0xff]
        %v881 = vld [vmem:[%s814 + $0x8] sm:$0xff]
        %v882 = vld [vmem:[%s814 + $0x10] sm:$0xff]
        %v883 = vld [vmem:[%s814 + $0x18] sm:$0xff]
        %v884 = vld [vmem:[%s814 + $0x20] sm:$0xff]
        %v885 = vld [vmem:[%s814 + $0x28] sm:$0xff]
        %v886 = vld [vmem:[%s814 + $0x30] sm:$0xff]
        %v887 = vld [vmem:[%s814 + $0x38] sm:$0xff]
        %v888 = vld [vmem:[%s814 + $0x40] sm:$0xff]
        %v889 = vld [vmem:[%s814 + $0x48] sm:$0xff]
        %v890 = vld [vmem:[%s814 + $0x50] sm:$0xff]
        %v891 = vld [vmem:[%s814 + $0x58] sm:$0xff]
        %v892 = vld [vmem:[%s814 + $0x60] sm:$0xff]
        %v893 = vld [vmem:[%s814 + $0x68] sm:$0xff]
        %v894 = vld [vmem:[%s814 + $0x70] sm:$0xff]
        %v895 = vld [vmem:[%s814 + $0x78] sm:$0xff]
        %v896 = vld [vmem:[%s814 + $0x80] sm:$0xff]
        %v897 = vld [vmem:[%s814 + $0x88] sm:$0xff]
        %v898 = vld [vmem:[%s814 + $0x90] sm:$0xff]
        %v899 = vld [vmem:[%s814 + $0x98] sm:$0xff]
        %v900 = vld [vmem:[%s2] sm:$0x3]
        %v901 = vld [vmem:[%s3] sm:$0x3]
        %v902 = vadd.f32 %v880, %v881
        %903 = vadd.xlane.f32.xlu0 %v902
        %v904 = vpop.xlane.xlu0 %903
        %v905 = vadd.f32 %v882, %v883
        %906 = vadd.xlane.f32.xlu0 %v905
        %v907 = vpop.xlane.xlu0 %906
        %v908 = vadd.f32 %v884, %v885
        %909 = vadd.xlane.f32.xlu0 %v908
        %v910 = vpop.xlane.xlu0 %909
        %v911 = vadd.f32 %v886, %v887
        %912 = vadd.xlane.f32.xlu0 %v911
        %v913 = vpop.xlane.xlu0 %912
        %v914 = vadd.f32 %v888, %v889
        %915 = vadd.xlane.f32.xlu0 %v914
        %v916 = vpop.xlane.xlu0 %915
        %v917 = vadd.f32 %v890, %v891
        %918 = vadd.xlane.f32.xlu0 %v917
        %v919 = vpop.xlane.xlu0 %918
        %v920 = vadd.f32 %v892, %v893
        %921 = vadd.xlane.f32.xlu0 %v920
        %v922 = vpop.xlane.xlu0 %921
        %v923 = vadd.f32 %v894, %v895
        %924 = vadd.xlane.f32.xlu0 %v923
        %v925 = vpop.xlane.xlu0 %924
        %v926 = vadd.f32 %v896, %v897
        %927 = vadd.xlane.f32.xlu0 %v926
        %v928 = vpop.xlane.xlu0 %927
        %v929 = vadd.f32 %v898, %v899
        %930 = vadd.xlane.f32.xlu0 %v929
        %v931 = vpop.xlane.xlu0 %930
        %v932 = vrcp.pop 256.0
        %v933 = vmul.f32 %v904, %v932
        %v934 = vmul.f32 %v907, %v932
        %v935 = vmul.f32 %v910, %v932
        %v936 = vmul.f32 %v913, %v932
        %v937 = vmul.f32 %v916, %v932
        %v938 = vmul.f32 %v919, %v932
        %v939 = vmul.f32 %v922, %v932
        %v940 = vmul.f32 %v925, %v932
        %v941 = vmul.f32 %v928, %v932
        %v942 = vmul.f32 %v931, %v932
        %v943 = vsub.f32 %v880, %v933
        %v944 = vsub.f32 %v881, %v933
        %v945 = vsub.f32 %v882, %v934
        %v946 = vsub.f32 %v883, %v934
        %v947 = vsub.f32 %v884, %v935
        %v948 = vsub.f32 %v885, %v935
        %v949 = vsub.f32 %v886, %v936
        %v950 = vsub.f32 %v887, %v936
        %v951 = vsub.f32 %v888, %v937
        %v952 = vsub.f32 %v889, %v937
        %v953 = vsub.f32 %v890, %v938
        %v954 = vsub.f32 %v891, %v938
        %v955 = vsub.f32 %v892, %v939
        %v956 = vsub.f32 %v893, %v939
        %v957 = vsub.f32 %v894, %v940
        %v958 = vsub.f32 %v895, %v940
        %v959 = vsub.f32 %v896, %v941
        %v960 = vsub.f32 %v897, %v941
        %v961 = vsub.f32 %v898, %v942
        %v962 = vsub.f32 %v899, %v942
        %v963 = vmul.f32 %v943, %v943
        %v964 = vmul.f32 %v944, %v944
        %v965 = vmul.f32 %v945, %v945
        %v966 = vmul.f32 %v946, %v946
        %v967 = vmul.f32 %v947, %v947
        %v968 = vmul.f32 %v948, %v948
        %v969 = vmul.f32 %v949, %v949
        %v970 = vmul.f32 %v950, %v950
        %v971 = vmul.f32 %v951, %v951
        %v972 = vmul.f32 %v952, %v952
        %v973 = vmul.f32 %v953, %v953
        %v974 = vmul.f32 %v954, %v954
        %v975 = vmul.f32 %v955, %v955
        %v976 = vmul.f32 %v956, %v956
        %v977 = vmul.f32 %v957, %v957
        %v978 = vmul.f32 %v958, %v958
        %v979 = vmul.f32 %v959, %v959
        %v980 = vmul.f32 %v960, %v960
        %v981 = vmul.f32 %v961, %v961
        %v982 = vmul.f32 %v962, %v962
        %v983 = vadd.f32 %v963, %v964
        %984 = vadd.xlane.f32.xlu0 %v983
        %v985 = vpop.xlane.xlu0 %984
        %v986 = vadd.f32 %v965, %v966
        %987 = vadd.xlane.f32.xlu0 %v986
        %v988 = vpop.xlane.xlu0 %987
        %v989 = vadd.f32 %v967, %v968
        %990 = vadd.xlane.f32.xlu0 %v989
        %v991 = vpop.xlane.xlu0 %990
        %v992 = vadd.f32 %v969, %v970
        %993 = vadd.xlane.f32.xlu0 %v992
        %v994 = vpop.xlane.xlu0 %993
        %v995 = vadd.f32 %v971, %v972
        %996 = vadd.xlane.f32.xlu0 %v995
        %v997 = vpop.xlane.xlu0 %996
        %v998 = vadd.f32 %v973, %v974
        %999 = vadd.xlane.f32.xlu0 %v998
        %v1000 = vpop.xlane.xlu0 %999
        %v1001 = vadd.f32 %v975, %v976
        %1002 = vadd.xlane.f32.xlu0 %v1001
        %v1003 = vpop.xlane.xlu0 %1002
        %v1004 = vadd.f32 %v977, %v978
        %1005 = vadd.xlane.f32.xlu0 %v1004
        %v1006 = vpop.xlane.xlu0 %1005
        %v1007 = vadd.f32 %v979, %v980
        %1008 = vadd.xlane.f32.xlu0 %v1007
        %v1009 = vpop.xlane.xlu0 %1008
        %v1010 = vadd.f32 %v981, %v982
        %1011 = vadd.xlane.f32.xlu0 %v1010
        %v1012 = vpop.xlane.xlu0 %1011
        %v1013 = vmul.f32 %v985, %v932
        %v1014 = vmul.f32 %v988, %v932
        %v1015 = vmul.f32 %v991, %v932
        %v1016 = vmul.f32 %v994, %v932
        %v1017 = vmul.f32 %v997, %v932
        %v1018 = vmul.f32 %v1000, %v932
        %v1019 = vmul.f32 %v1003, %v932
        %v1020 = vmul.f32 %v1006, %v932
        %v1021 = vmul.f32 %v1009, %v932
        %v1022 = vmul.f32 %v1012, %v932
        %v1023 = vadd.f32 %v1013, 1e-05
        %v1024 = vadd.f32 %v1014, 1e-05
        %v1025 = vadd.f32 %v1015, 1e-05
        %v1026 = vadd.f32 %v1016, 1e-05
        %v1027 = vadd.f32 %v1017, 1e-05
        %v1028 = vadd.f32 %v1018, 1e-05
        %v1029 = vadd.f32 %v1019, 1e-05
        %v1030 = vadd.f32 %v1020, 1e-05
        %v1031 = vadd.f32 %v1021, 1e-05
        %v1032 = vadd.f32 %v1022, 1e-05
        %v1033 = vrsqrt.pop %v1023
        %v1034 = vrsqrt.pop %v1024
        %v1035 = vrsqrt.pop %v1025
        %v1036 = vrsqrt.pop %v1026
        %v1037 = vrsqrt.pop %v1027
        %v1038 = vrsqrt.pop %v1028
        %v1039 = vrsqrt.pop %v1029
        %v1040 = vrsqrt.pop %v1030
        %v1041 = vrsqrt.pop %v1031
        %v1042 = vrsqrt.pop %v1032
        %v1043 = vmul.f32 %v943, %v1033
        %v1044 = vmul.f32 %v944, %v1033
        %v1045 = vmul.f32 %v945, %v1034
        %v1046 = vmul.f32 %v946, %v1034
        %v1047 = vmul.f32 %v947, %v1035
        %v1048 = vmul.f32 %v948, %v1035
        %v1049 = vmul.f32 %v949, %v1036
        %v1050 = vmul.f32 %v950, %v1036
        %v1051 = vmul.f32 %v951, %v1037
        %v1052 = vmul.f32 %v952, %v1037
        %v1053 = vmul.f32 %v953, %v1038
        %v1054 = vmul.f32 %v954, %v1038
        %v1055 = vmul.f32 %v955, %v1039
        %v1056 = vmul.f32 %v956, %v1039
        %v1057 = vmul.f32 %v957, %v1040
        %v1058 = vmul.f32 %v958, %v1040
        %v1059 = vmul.f32 %v959, %v1041
        %v1060 = vmul.f32 %v960, %v1041
        %v1061 = vmul.f32 %v961, %v1042
        %v1062 = vmul.f32 %v962, %v1042
        %v1064 = vlaneseq
        %v1065 = vshrl.u32 %v1064, 7
        %v1066 = vsub.s32 0, %v1065
        %v1067 = vrot.slane %v900, %v1066
        %v1068 = vlaneseq
        %v1069 = vshrl.u32 %v1068, 7
        %v1070 = vsub.s32 1, %v1069
        %v1071 = vrot.slane %v900, %v1070
        %v1074 = vmul.f32 %v1043, %v1067
        %v1075 = vmul.f32 %v1044, %v1071
        %v1076 = vmul.f32 %v1045, %v1067
        %v1077 = vmul.f32 %v1046, %v1071
        %v1078 = vmul.f32 %v1047, %v1067
        %v1079 = vmul.f32 %v1048, %v1071
        %v1080 = vmul.f32 %v1049, %v1067
        %v1081 = vmul.f32 %v1050, %v1071
        %v1082 = vmul.f32 %v1051, %v1067
        %v1083 = vmul.f32 %v1052, %v1071
        %v1084 = vmul.f32 %v1053, %v1067
        %v1085 = vmul.f32 %v1054, %v1071
        %v1086 = vmul.f32 %v1055, %v1067
        %v1087 = vmul.f32 %v1056, %v1071
        %v1088 = vmul.f32 %v1057, %v1067
        %v1089 = vmul.f32 %v1058, %v1071
        %v1090 = vmul.f32 %v1059, %v1067
        %v1091 = vmul.f32 %v1060, %v1071
        %v1092 = vmul.f32 %v1061, %v1067
        %v1093 = vmul.f32 %v1062, %v1071
        %v1095 = vlaneseq
        %v1096 = vshrl.u32 %v1095, 7
        %v1097 = vsub.s32 0, %v1096
        %v1098 = vrot.slane %v901, %v1097
        %v1099 = vlaneseq
        %v1100 = vshrl.u32 %v1099, 7
        %v1101 = vsub.s32 1, %v1100
        %v1102 = vrot.slane %v901, %v1101
        %v1105 = vadd.f32 %v1074, %v1098
        %v1106 = vadd.f32 %v1075, %v1102
        %v1107 = vadd.f32 %v1076, %v1098
        %v1108 = vadd.f32 %v1077, %v1102
        %v1109 = vadd.f32 %v1078, %v1098
        %v1110 = vadd.f32 %v1079, %v1102
        %v1111 = vadd.f32 %v1080, %v1098
        %v1112 = vadd.f32 %v1081, %v1102
        %v1113 = vadd.f32 %v1082, %v1098
        %v1114 = vadd.f32 %v1083, %v1102
        %v1115 = vadd.f32 %v1084, %v1098
        %v1116 = vadd.f32 %v1085, %v1102
        %v1117 = vadd.f32 %v1086, %v1098
        %v1118 = vadd.f32 %v1087, %v1102
        %v1119 = vadd.f32 %v1088, %v1098
        %v1120 = vadd.f32 %v1089, %v1102
        %v1121 = vadd.f32 %v1090, %v1098
        %v1122 = vadd.f32 %v1091, %v1102
        %v1123 = vadd.f32 %v1092, %v1098
        %v1124 = vadd.f32 %v1093, %v1102
        %1125 = vst [vmem:[#allocation2] sm:$0xff] %v1105
        %1126 = vst [vmem:[#allocation2 + $0x8] sm:$0xff] %v1106
        %1127 = vst [vmem:[#allocation2 + $0x10] sm:$0xff] %v1107
        %1128 = vst [vmem:[#allocation2 + $0x18] sm:$0xff] %v1108
        %1129 = vst [vmem:[#allocation2 + $0x20] sm:$0xff] %v1109
        %1130 = vst [vmem:[#allocation2 + $0x28] sm:$0xff] %v1110
        %1131 = vst [vmem:[#allocation2 + $0x30] sm:$0xff] %v1111
        %1132 = vst [vmem:[#allocation2 + $0x38] sm:$0xff] %v1112
        %1133 = vst [vmem:[#allocation2 + $0x40] sm:$0xff] %v1113
        %1134 = vst [vmem:[#allocation2 + $0x48] sm:$0xff] %v1114
        %1135 = vst [vmem:[#allocation2 + $0x50] sm:$0xff] %v1115
        %1136 = vst [vmem:[#allocation2 + $0x58] sm:$0xff] %v1116
        %1137 = vst [vmem:[#allocation2 + $0x60] sm:$0xff] %v1117
        %1138 = vst [vmem:[#allocation2 + $0x68] sm:$0xff] %v1118
        %1139 = vst [vmem:[#allocation2 + $0x70] sm:$0xff] %v1119
        %1140 = vst [vmem:[#allocation2 + $0x78] sm:$0xff] %v1120
        %1141 = vst [vmem:[#allocation2 + $0x80] sm:$0xff] %v1121
        %1142 = vst [vmem:[#allocation2 + $0x88] sm:$0xff] %v1122
        %1143 = vst [vmem:[#allocation2 + $0x90] sm:$0xff] %v1123
        %1144 = vst [vmem:[#allocation2 + $0x98] sm:$0xff] %v1124
      $region104: #{bd2bb_forward.1} parent=99 // pred_fallthru
        _
      %v1145 = vld [vmem:[#allocation2] sm:$0xff]
      %v1146 = vld [vmem:[#allocation2 + $0x8] sm:$0xff]
      %v1147 = vld [vmem:[#allocation2 + $0x10] sm:$0xff]
      %v1148 = vld [vmem:[#allocation2 + $0x18] sm:$0xff]
      %v1149 = vld [vmem:[#allocation2 + $0x20] sm:$0xff]
      %v1150 = vld [vmem:[#allocation2 + $0x28] sm:$0xff]
      %v1151 = vld [vmem:[#allocation2 + $0x30] sm:$0xff]
      %v1152 = vld [vmem:[#allocation2 + $0x38] sm:$0xff]
      %v1153 = vld [vmem:[#allocation2 + $0x40] sm:$0xff]
      %v1154 = vld [vmem:[#allocation2 + $0x48] sm:$0xff]
      %v1155 = vld [vmem:[#allocation2 + $0x50] sm:$0xff]
      %v1156 = vld [vmem:[#allocation2 + $0x58] sm:$0xff]
      %v1157 = vld [vmem:[#allocation2 + $0x60] sm:$0xff]
      %v1158 = vld [vmem:[#allocation2 + $0x68] sm:$0xff]
      %v1159 = vld [vmem:[#allocation2 + $0x70] sm:$0xff]
      %v1160 = vld [vmem:[#allocation2 + $0x78] sm:$0xff]
      %v1161 = vld [vmem:[#allocation2 + $0x80] sm:$0xff]
      %v1162 = vld [vmem:[#allocation2 + $0x88] sm:$0xff]
      %v1163 = vld [vmem:[#allocation2 + $0x90] sm:$0xff]
      %v1164 = vld [vmem:[#allocation2 + $0x98] sm:$0xff]
      %v1165 = vpack.c.bf16 %v1147, %v1145
      %v1166 = vpack.c.bf16 %v1148, %v1146
      %v1167 = vpack.c.bf16 %v1151, %v1149
      %v1168 = vpack.c.bf16 %v1152, %v1150
      %v1169 = vpack.c.bf16 %v1155, %v1153
      %v1170 = vpack.c.bf16 %v1156, %v1154
      %v1171 = vpack.c.bf16 %v1159, %v1157
      %v1172 = vpack.c.bf16 %v1160, %v1158
      %v1173 = vpack.c.bf16 %v1163, %v1161
      %v1174 = vpack.c.bf16 %v1164, %v1162
      %v1175 = vld [vmem:[%s823] sm:$0xff]
      %v1176 = vld [vmem:[%s823 + $0x8] sm:$0xff]
      %v1177 = vld [vmem:[%s823 + $0x10] sm:$0xff]
      %v1178 = vld [vmem:[%s823 + $0x18] sm:$0xff]
      %v1179 = vld [vmem:[%s823 + $0x20] sm:$0xff]
      %v1180 = vld [vmem:[%s823 + $0x28] sm:$0xff]
      %v1181 = vld [vmem:[%s823 + $0x30] sm:$0xff]
      %v1182 = vld [vmem:[%s823 + $0x38] sm:$0xff]
      %v1183 = vld [vmem:[%s823 + $0x40] sm:$0xff]
      %v1184 = vld [vmem:[%s823 + $0x48] sm:$0xff]
      %v1185 = vld [vmem:[%s823 + $0x50] sm:$0xff]
      %v1186 = vld [vmem:[%s823 + $0x58] sm:$0xff]
      %v1187 = vld [vmem:[%s823 + $0x60] sm:$0xff]
      %v1188 = vld [vmem:[%s823 + $0x68] sm:$0xff]
      %v1189 = vld [vmem:[%s823 + $0x70] sm:$0xff]
      %v1190 = vld [vmem:[%s823 + $0x78] sm:$0xff]
      %v1191 = vld [vmem:[%s823 + $0x80] sm:$0xff]
      %v1192 = vld [vmem:[%s823 + $0x88] sm:$0xff]
      %v1193 = vld [vmem:[%s823 + $0x90] sm:$0xff]
      %v1194 = vld [vmem:[%s823 + $0x98] sm:$0xff]
      %v1195 = vld [vmem:[%s823 + $0xa0] sm:$0xff]
      %v1196 = vld [vmem:[%s823 + $0xa8] sm:$0xff]
      %v1197 = vld [vmem:[%s823 + $0xb0] sm:$0xff]
      %v1198 = vld [vmem:[%s823 + $0xb8] sm:$0xff]
      %v1199 = vld [vmem:[%s823 + $0xc0] sm:$0xff]
      %v1200 = vld [vmem:[%s823 + $0xc8] sm:$0xff]
      %v1201 = vld [vmem:[%s823 + $0xd0] sm:$0xff]
      %v1202 = vld [vmem:[%s823 + $0xd8] sm:$0xff]
      %v1203 = vld [vmem:[%s823 + $0xe0] sm:$0xff]
      %v1204 = vld [vmem:[%s823 + $0xe8] sm:$0xff]
      %v1205 = vld [vmem:[%s823 + $0xf0] sm:$0xff]
      %v1206 = vld [vmem:[%s823 + $0xf8] sm:$0xff]
      %v1207 = vld [vmem:[%s823 + $0x100] sm:$0xff]
      %v1208 = vld [vmem:[%s823 + $0x108] sm:$0xff]
      %v1209 = vld [vmem:[%s823 + $0x110] sm:$0xff]
      %v1210 = vld [vmem:[%s823 + $0x118] sm:$0xff]
      %v1211 = vld [vmem:[%s823 + $0x120] sm:$0xff]
      %v1212 = vld [vmem:[%s823 + $0x128] sm:$0xff]
      %v1213 = vld [vmem:[%s823 + $0x130] sm:$0xff]
      %v1214 = vld [vmem:[%s823 + $0x138] sm:$0xff]
      %v1215 = vld [vmem:[%s823 + $0x140] sm:$0xff]
      %v1216 = vld [vmem:[%s823 + $0x148] sm:$0xff]
      %v1217 = vld [vmem:[%s823 + $0x150] sm:$0xff]
      %v1218 = vld [vmem:[%s823 + $0x158] sm:$0xff]
      %v1219 = vld [vmem:[%s823 + $0x160] sm:$0xff]
      %v1220 = vld [vmem:[%s823 + $0x168] sm:$0xff]
      %v1221 = vld [vmem:[%s823 + $0x170] sm:$0xff]
      %v1222 = vld [vmem:[%s823 + $0x178] sm:$0xff]
      %v1223 = vld [vmem:[%s823 + $0x180] sm:$0xff]
      %v1224 = vld [vmem:[%s823 + $0x188] sm:$0xff]
      %v1225 = vld [vmem:[%s823 + $0x190] sm:$0xff]
      %v1226 = vld [vmem:[%s823 + $0x198] sm:$0xff]
      %v1227 = vld [vmem:[%s823 + $0x1a0] sm:$0xff]
      %v1228 = vld [vmem:[%s823 + $0x1a8] sm:$0xff]
      %v1229 = vld [vmem:[%s823 + $0x1b0] sm:$0xff]
      %v1230 = vld [vmem:[%s823 + $0x1b8] sm:$0xff]
      %v1231 = vld [vmem:[%s823 + $0x1c0] sm:$0xff]
      %v1232 = vld [vmem:[%s823 + $0x1c8] sm:$0xff]
      %v1233 = vld [vmem:[%s823 + $0x1d0] sm:$0xff]
      %v1234 = vld [vmem:[%s823 + $0x1d8] sm:$0xff]
      %v1235 = vld [vmem:[%s823 + $0x1e0] sm:$0xff]
      %v1236 = vld [vmem:[%s823 + $0x1e8] sm:$0xff]
      %v1237 = vld [vmem:[%s823 + $0x1f0] sm:$0xff]
      %v1238 = vld [vmem:[%s823 + $0x1f8] sm:$0xff]
      %v1239 = vld [vmem:[%s823 + $0x200] sm:$0xff]
      %v1240 = vld [vmem:[%s823 + $0x208] sm:$0xff]
      %v1241 = vld [vmem:[%s823 + $0x210] sm:$0xff]
      %v1242 = vld [vmem:[%s823 + $0x218] sm:$0xff]
      %v1243 = vld [vmem:[%s823 + $0x220] sm:$0xff]
      %v1244 = vld [vmem:[%s823 + $0x228] sm:$0xff]
      %v1245 = vld [vmem:[%s823 + $0x230] sm:$0xff]
      %v1246 = vld [vmem:[%s823 + $0x238] sm:$0xff]
      %v1247 = vld [vmem:[%s823 + $0x240] sm:$0xff]
      %v1248 = vld [vmem:[%s823 + $0x248] sm:$0xff]
      %v1249 = vld [vmem:[%s823 + $0x250] sm:$0xff]
      %v1250 = vld [vmem:[%s823 + $0x258] sm:$0xff]
      %v1251 = vld [vmem:[%s823 + $0x260] sm:$0xff]
      %v1252 = vld [vmem:[%s823 + $0x268] sm:$0xff]
      %v1253 = vld [vmem:[%s823 + $0x270] sm:$0xff]
      %v1254 = vld [vmem:[%s823 + $0x278] sm:$0xff]
      %v1255 = vld [vmem:[%s823 + $0x280] sm:$0xff]
      %v1256 = vld [vmem:[%s823 + $0x288] sm:$0xff]
      %v1257 = vld [vmem:[%s823 + $0x290] sm:$0xff]
      %v1258 = vld [vmem:[%s823 + $0x298] sm:$0xff]
      %v1259 = vld [vmem:[%s823 + $0x2a0] sm:$0xff]
      %v1260 = vld [vmem:[%s823 + $0x2a8] sm:$0xff]
      %v1261 = vld [vmem:[%s823 + $0x2b0] sm:$0xff]
      %v1262 = vld [vmem:[%s823 + $0x2b8] sm:$0xff]
      %v1263 = vld [vmem:[%s823 + $0x2c0] sm:$0xff]
      %v1264 = vld [vmem:[%s823 + $0x2c8] sm:$0xff]
      %v1265 = vld [vmem:[%s823 + $0x2d0] sm:$0xff]
      %v1266 = vld [vmem:[%s823 + $0x2d8] sm:$0xff]
      %v1267 = vld [vmem:[%s823 + $0x2e0] sm:$0xff]
      %v1268 = vld [vmem:[%s823 + $0x2e8] sm:$0xff]
      %v1269 = vld [vmem:[%s823 + $0x2f0] sm:$0xff]
      %v1270 = vld [vmem:[%s823 + $0x2f8] sm:$0xff]
      %v1271 = vld [vmem:[%s827] sm:$0x3f]
      %v1273 = vlaneseq
      %v1274 = vshrl.u32 %v1273, 7
      %v1275 = vsub.s32 0, %v1274
      %v1276 = vrot.slane %v1271, %v1275
      %v1277 = vlaneseq
      %v1278 = vshrl.u32 %v1277, 7
      %v1279 = vsub.s32 1, %v1278
      %v1280 = vrot.slane %v1271, %v1279
      %v1281 = vlaneseq
      %v1282 = vshrl.u32 %v1281, 7
      %v1283 = vsub.s32 2, %v1282
      %v1284 = vrot.slane %v1271, %v1283
      %v1285 = vlaneseq
      %v1286 = vshrl.u32 %v1285, 7
      %v1287 = vsub.s32 3, %v1286
      %v1288 = vrot.slane %v1271, %v1287
      %v1289 = vlaneseq
      %v1290 = vshrl.u32 %v1289, 7
      %v1291 = vsub.s32 4, %v1290
      %v1292 = vrot.slane %v1271, %v1291
      %v1293 = vlaneseq
      %v1294 = vshrl.u32 %v1293, 7
      %v1295 = vsub.s32 5, %v1294
      %v1296 = vrot.slane %v1271, %v1295
      %v1399 = vunpack.c.l.b16 %v1175
      %v1400 = vunpack.c.h.b16 %v1175
      %v1401 = vunpack.c.l.b16 %v1176
      %v1402 = vunpack.c.h.b16 %v1176
      %v1403 = vunpack.c.l.b16 %v1177
      %v1404 = vunpack.c.h.b16 %v1177
      %v1405 = vunpack.c.l.b16 %v1178
      %v1406 = vunpack.c.h.b16 %v1178
      %v1407 = vunpack.c.l.b16 %v1179
      %v1408 = vunpack.c.h.b16 %v1179
      %v1409 = vunpack.c.l.b16 %v1180
      %v1410 = vunpack.c.h.b16 %v1180
      %v1411 = vunpack.c.l.b16 %v1181
      %v1412 = vunpack.c.h.b16 %v1181
      %v1413 = vunpack.c.l.b16 %v1182
      %v1414 = vunpack.c.h.b16 %v1182
      %v1415 = vunpack.c.l.b16 %v1183
      %v1416 = vunpack.c.h.b16 %v1183
      %v1417 = vunpack.c.l.b16 %v1184
      %v1418 = vunpack.c.h.b16 %v1184
      %v1419 = vunpack.c.l.b16 %v1185
      %v1420 = vunpack.c.h.b16 %v1185
      %v1421 = vunpack.c.l.b16 %v1186
      %v1422 = vunpack.c.h.b16 %v1186
      %v1423 = vunpack.c.l.b16 %v1187
      %v1424 = vunpack.c.h.b16 %v1187
      %v1425 = vunpack.c.l.b16 %v1188
      %v1426 = vunpack.c.h.b16 %v1188
      %v1427 = vunpack.c.l.b16 %v1189
      %v1428 = vunpack.c.h.b16 %v1189
      %v1429 = vunpack.c.l.b16 %v1190
      %v1430 = vunpack.c.h.b16 %v1190
      %v1431 = vunpack.c.l.b16 %v1191
      %v1432 = vunpack.c.h.b16 %v1191
      %v1433 = vunpack.c.l.b16 %v1192
      %v1434 = vunpack.c.h.b16 %v1192
      %v1435 = vunpack.c.l.b16 %v1193
      %v1436 = vunpack.c.h.b16 %v1193
      %v1437 = vunpack.c.l.b16 %v1194
      %v1438 = vunpack.c.h.b16 %v1194
      %v1439 = vunpack.c.l.b16 %v1195
      %v1440 = vunpack.c.h.b16 %v1195
      %v1441 = vunpack.c.l.b16 %v1196
      %v1442 = vunpack.c.h.b16 %v1196
      %v1443 = vunpack.c.l.b16 %v1197
      %v1444 = vunpack.c.h.b16 %v1197
      %v1445 = vunpack.c.l.b16 %v1198
      %v1446 = vunpack.c.h.b16 %v1198
      %v1447 = vunpack.c.l.b16 %v1199
      %v1448 = vunpack.c.h.b16 %v1199
      %v1449 = vunpack.c.l.b16 %v1200
      %v1450 = vunpack.c.h.b16 %v1200
      %v1451 = vunpack.c.l.b16 %v1201
      %v1452 = vunpack.c.h.b16 %v1201
      %v1453 = vunpack.c.l.b16 %v1202
      %v1454 = vunpack.c.h.b16 %v1202
      %v1455 = vunpack.c.l.b16 %v1203
      %v1456 = vunpack.c.h.b16 %v1203
      %v1457 = vunpack.c.l.b16 %v1204
      %v1458 = vunpack.c.h.b16 %v1204
      %v1459 = vunpack.c.l.b16 %v1205
      %v1460 = vunpack.c.h.b16 %v1205
      %v1461 = vunpack.c.l.b16 %v1206
      %v1462 = vunpack.c.h.b16 %v1206
      %v1463 = vunpack.c.l.b16 %v1207
      %v1464 = vunpack.c.h.b16 %v1207
      %v1465 = vunpack.c.l.b16 %v1208
      %v1466 = vunpack.c.h.b16 %v1208
      %v1467 = vunpack.c.l.b16 %v1209
      %v1468 = vunpack.c.h.b16 %v1209
      %v1469 = vunpack.c.l.b16 %v1210
      %v1470 = vunpack.c.h.b16 %v1210
      %v1471 = vunpack.c.l.b16 %v1211
      %v1472 = vunpack.c.h.b16 %v1211
      %v1473 = vunpack.c.l.b16 %v1212
      %v1474 = vunpack.c.h.b16 %v1212
      %v1475 = vunpack.c.l.b16 %v1213
      %v1476 = vunpack.c.h.b16 %v1213
      %v1477 = vunpack.c.l.b16 %v1214
      %v1478 = vunpack.c.h.b16 %v1214
      %v1479 = vunpack.c.l.b16 %v1215
      %v1480 = vunpack.c.h.b16 %v1215
      %v1481 = vunpack.c.l.b16 %v1216
      %v1482 = vunpack.c.h.b16 %v1216
      %v1483 = vunpack.c.l.b16 %v1217
      %v1484 = vunpack.c.h.b16 %v1217
      %v1485 = vunpack.c.l.b16 %v1218
      %v1486 = vunpack.c.h.b16 %v1218
      %v1487 = vunpack.c.l.b16 %v1219
      %v1488 = vunpack.c.h.b16 %v1219
      %v1489 = vunpack.c.l.b16 %v1220
      %v1490 = vunpack.c.h.b16 %v1220
      %v1491 = vunpack.c.l.b16 %v1221
      %v1492 = vunpack.c.h.b16 %v1221
      %v1493 = vunpack.c.l.b16 %v1222
      %v1494 = vunpack.c.h.b16 %v1222
      %v1495 = vunpack.c.l.b16 %v1223
      %v1496 = vunpack.c.h.b16 %v1223
      %v1497 = vunpack.c.l.b16 %v1224
      %v1498 = vunpack.c.h.b16 %v1224
      %v1499 = vunpack.c.l.b16 %v1225
      %v1500 = vunpack.c.h.b16 %v1225
      %v1501 = vunpack.c.l.b16 %v1226
      %v1502 = vunpack.c.h.b16 %v1226
      %v1503 = vunpack.c.l.b16 %v1227
      %v1504 = vunpack.c.h.b16 %v1227
      %v1505 = vunpack.c.l.b16 %v1228
      %v1506 = vunpack.c.h.b16 %v1228
      %v1507 = vunpack.c.l.b16 %v1229
      %v1508 = vunpack.c.h.b16 %v1229
      %v1509 = vunpack.c.l.b16 %v1230
      %v1510 = vunpack.c.h.b16 %v1230
      %v1511 = vunpack.c.l.b16 %v1231
      %v1512 = vunpack.c.h.b16 %v1231
      %v1513 = vunpack.c.l.b16 %v1232
      %v1514 = vunpack.c.h.b16 %v1232
      %v1515 = vunpack.c.l.b16 %v1233
      %v1516 = vunpack.c.h.b16 %v1233
      %v1517 = vunpack.c.l.b16 %v1234
      %v1518 = vunpack.c.h.b16 %v1234
      %v1519 = vunpack.c.l.b16 %v1235
      %v1520 = vunpack.c.h.b16 %v1235
      %v1521 = vunpack.c.l.b16 %v1236
      %v1522 = vunpack.c.h.b16 %v1236
      %v1523 = vunpack.c.l.b16 %v1237
      %v1524 = vunpack.c.h.b16 %v1237
      %v1525 = vunpack.c.l.b16 %v1238
      %v1526 = vunpack.c.h.b16 %v1238
      %v1527 = vunpack.c.l.b16 %v1239
      %v1528 = vunpack.c.h.b16 %v1239
      %v1529 = vunpack.c.l.b16 %v1240
      %v1530 = vunpack.c.h.b16 %v1240
      %v1531 = vunpack.c.l.b16 %v1241
      %v1532 = vunpack.c.h.b16 %v1241
      %v1533 = vunpack.c.l.b16 %v1242
      %v1534 = vunpack.c.h.b16 %v1242
      %v1535 = vunpack.c.l.b16 %v1243
      %v1536 = vunpack.c.h.b16 %v1243
      %v1537 = vunpack.c.l.b16 %v1244
      %v1538 = vunpack.c.h.b16 %v1244
      %v1539 = vunpack.c.l.b16 %v1245
      %v1540 = vunpack.c.h.b16 %v1245
      %v1541 = vunpack.c.l.b16 %v1246
      %v1542 = vunpack.c.h.b16 %v1246
      %v1543 = vunpack.c.l.b16 %v1247
      %v1544 = vunpack.c.h.b16 %v1247
      %v1545 = vunpack.c.l.b16 %v1248
      %v1546 = vunpack.c.h.b16 %v1248
      %v1547 = vunpack.c.l.b16 %v1249
      %v1548 = vunpack.c.h.b16 %v1249
      %v1549 = vunpack.c.l.b16 %v1250
      %v1550 = vunpack.c.h.b16 %v1250
      %v1551 = vunpack.c.l.b16 %v1251
      %v1552 = vunpack.c.h.b16 %v1251
      %v1553 = vunpack.c.l.b16 %v1252
      %v1554 = vunpack.c.h.b16 %v1252
      %v1555 = vunpack.c.l.b16 %v1253
      %v1556 = vunpack.c.h.b16 %v1253
      %v1557 = vunpack.c.l.b16 %v1254
      %v1558 = vunpack.c.h.b16 %v1254
      %v1559 = vunpack.c.l.b16 %v1255
      %v1560 = vunpack.c.h.b16 %v1255
      %v1561 = vunpack.c.l.b16 %v1256
      %v1562 = vunpack.c.h.b16 %v1256
      %v1563 = vunpack.c.l.b16 %v1257
      %v1564 = vunpack.c.h.b16 %v1257
      %v1565 = vunpack.c.l.b16 %v1258
      %v1566 = vunpack.c.h.b16 %v1258
      %v1567 = vunpack.c.l.b16 %v1259
      %v1568 = vunpack.c.h.b16 %v1259
      %v1569 = vunpack.c.l.b16 %v1260
      %v1570 = vunpack.c.h.b16 %v1260
      %v1571 = vunpack.c.l.b16 %v1261
      %v1572 = vunpack.c.h.b16 %v1261
      %v1573 = vunpack.c.l.b16 %v1262
      %v1574 = vunpack.c.h.b16 %v1262
      %v1575 = vunpack.c.l.b16 %v1263
      %v1576 = vunpack.c.h.b16 %v1263
      %v1577 = vunpack.c.l.b16 %v1264
      %v1578 = vunpack.c.h.b16 %v1264
      %v1579 = vunpack.c.l.b16 %v1265
      %v1580 = vunpack.c.h.b16 %v1265
      %v1581 = vunpack.c.l.b16 %v1266
      %v1582 = vunpack.c.h.b16 %v1266
      %v1583 = vunpack.c.l.b16 %v1267
      %v1584 = vunpack.c.h.b16 %v1267
      %v1585 = vunpack.c.l.b16 %v1268
      %v1586 = vunpack.c.h.b16 %v1268
      %v1587 = vunpack.c.l.b16 %v1269
      %v1588 = vunpack.c.h.b16 %v1269
      %v1589 = vunpack.c.l.b16 %v1270
      %v1590 = vunpack.c.h.b16 %v1270
      %v1591 = vpack.c.b16 %v1405, %v1399
      %v1592 = vpack.c.b16 %v1406, %v1400
      %v1593 = vpack.c.b16 %v1407, %v1401
      %v1594 = vpack.c.b16 %v1408, %v1402
      %v1595 = vpack.c.b16 %v1409, %v1403
      %v1596 = vpack.c.b16 %v1410, %v1404
      %v1597 = vpack.c.b16 %v1417, %v1411
      %v1598 = vpack.c.b16 %v1418, %v1412
      %v1599 = vpack.c.b16 %v1419, %v1413
      %v1600 = vpack.c.b16 %v1420, %v1414
      %v1601 = vpack.c.b16 %v1421, %v1415
      %v1602 = vpack.c.b16 %v1422, %v1416
      %v1603 = vpack.c.b16 %v1429, %v1423
      %v1604 = vpack.c.b16 %v1430, %v1424
      %v1605 = vpack.c.b16 %v1431, %v1425
      %v1606 = vpack.c.b16 %v1432, %v1426
      %v1607 = vpack.c.b16 %v1433, %v1427
      %v1608 = vpack.c.b16 %v1434, %v1428
      %v1609 = vpack.c.b16 %v1441, %v1435
      %v1610 = vpack.c.b16 %v1442, %v1436
      %v1611 = vpack.c.b16 %v1443, %v1437
      %v1612 = vpack.c.b16 %v1444, %v1438
      %v1613 = vpack.c.b16 %v1445, %v1439
      %v1614 = vpack.c.b16 %v1446, %v1440
      %v1615 = vpack.c.b16 %v1453, %v1447
      %v1616 = vpack.c.b16 %v1454, %v1448
      %v1617 = vpack.c.b16 %v1455, %v1449
      %v1618 = vpack.c.b16 %v1456, %v1450
      %v1619 = vpack.c.b16 %v1457, %v1451
      %v1620 = vpack.c.b16 %v1458, %v1452
      %v1621 = vpack.c.b16 %v1465, %v1459
      %v1622 = vpack.c.b16 %v1466, %v1460
      %v1623 = vpack.c.b16 %v1467, %v1461
      %v1624 = vpack.c.b16 %v1468, %v1462
      %v1625 = vpack.c.b16 %v1469, %v1463
      %v1626 = vpack.c.b16 %v1470, %v1464
      %v1627 = vpack.c.b16 %v1477, %v1471
      %v1628 = vpack.c.b16 %v1478, %v1472
      %v1629 = vpack.c.b16 %v1479, %v1473
      %v1630 = vpack.c.b16 %v1480, %v1474
      %v1631 = vpack.c.b16 %v1481, %v1475
      %v1632 = vpack.c.b16 %v1482, %v1476
      %v1633 = vpack.c.b16 %v1489, %v1483
      %v1634 = vpack.c.b16 %v1490, %v1484
      %v1635 = vpack.c.b16 %v1491, %v1485
      %v1636 = vpack.c.b16 %v1492, %v1486
      %v1637 = vpack.c.b16 %v1493, %v1487
      %v1638 = vpack.c.b16 %v1494, %v1488
      %v1639 = vpack.c.b16 %v1501, %v1495
      %v1640 = vpack.c.b16 %v1502, %v1496
      %v1641 = vpack.c.b16 %v1503, %v1497
      %v1642 = vpack.c.b16 %v1504, %v1498
      %v1643 = vpack.c.b16 %v1505, %v1499
      %v1644 = vpack.c.b16 %v1506, %v1500
      %v1645 = vpack.c.b16 %v1513, %v1507
      %v1646 = vpack.c.b16 %v1514, %v1508
      %v1647 = vpack.c.b16 %v1515, %v1509
      %v1648 = vpack.c.b16 %v1516, %v1510
      %v1649 = vpack.c.b16 %v1517, %v1511
      %v1650 = vpack.c.b16 %v1518, %v1512
      %v1651 = vpack.c.b16 %v1525, %v1519
      %v1652 = vpack.c.b16 %v1526, %v1520
      %v1653 = vpack.c.b16 %v1527, %v1521
      %v1654 = vpack.c.b16 %v1528, %v1522
      %v1655 = vpack.c.b16 %v1529, %v1523
      %v1656 = vpack.c.b16 %v1530, %v1524
      %v1657 = vpack.c.b16 %v1537, %v1531
      %v1658 = vpack.c.b16 %v1538, %v1532
      %v1659 = vpack.c.b16 %v1539, %v1533
      %v1660 = vpack.c.b16 %v1540, %v1534
      %v1661 = vpack.c.b16 %v1541, %v1535
      %v1662 = vpack.c.b16 %v1542, %v1536
      %v1663 = vpack.c.b16 %v1549, %v1543
      %v1664 = vpack.c.b16 %v1550, %v1544
      %v1665 = vpack.c.b16 %v1551, %v1545
      %v1666 = vpack.c.b16 %v1552, %v1546
      %v1667 = vpack.c.b16 %v1553, %v1547
      %v1668 = vpack.c.b16 %v1554, %v1548
      %v1669 = vpack.c.b16 %v1561, %v1555
      %v1670 = vpack.c.b16 %v1562, %v1556
      %v1671 = vpack.c.b16 %v1563, %v1557
      %v1672 = vpack.c.b16 %v1564, %v1558
      %v1673 = vpack.c.b16 %v1565, %v1559
      %v1674 = vpack.c.b16 %v1566, %v1560
      %v1675 = vpack.c.b16 %v1573, %v1567
      %v1676 = vpack.c.b16 %v1574, %v1568
      %v1677 = vpack.c.b16 %v1575, %v1569
      %v1678 = vpack.c.b16 %v1576, %v1570
      %v1679 = vpack.c.b16 %v1577, %v1571
      %v1680 = vpack.c.b16 %v1578, %v1572
      %v1681 = vpack.c.b16 %v1585, %v1579
      %v1682 = vpack.c.b16 %v1586, %v1580
      %v1683 = vpack.c.b16 %v1587, %v1581
      %v1684 = vpack.c.b16 %v1588, %v1582
      %v1685 = vpack.c.b16 %v1589, %v1583
      %v1686 = vpack.c.b16 %v1590, %v1584
      %1783 = vmatprep.subr.bf16.mxu0 %v1634
      %1784 = vmatpush1.bf16.msra.mxu0 %v1633
      %1785 = vmatprep.subr.bf16.mxu0 %v1628
      %1786 = vmatpush1.bf16.msra.mxu0 %v1627
      %1787 = vmatprep.subr.bf16.mxu0 %v1622
      %1788 = vmatpush1.bf16.msra.mxu0 %v1621
      %1789 = vmatprep.subr.bf16.mxu0 %v1616
      %1790 = vmatpush1.bf16.msra.mxu0 %v1615
      %1791 = vmatprep.subr.bf16.mxu0 %v1610
      %1792 = vmatpush1.bf16.msra.mxu0 %v1609
      %1793 = vmatprep.subr.bf16.mxu0 %v1604
      %1794 = vmatpush1.bf16.msra.mxu0 %v1603
      %1795 = vmatprep.subr.bf16.mxu0 %v1598
      %1796 = vmatpush1.bf16.msra.mxu0 %v1597
      %1797 = vmatprep.subr.bf16.mxu0 %v1592
      %1798 = vmatpush1.bf16.msra.mxu0 %v1591
      %1799 = vmatprep.subr.bf16.mxu0 %v1682
      %1800 = vmatpush2.bf16.msra.mxu0 %v1681
      %1801 = vmatprep.subr.bf16.mxu0 %v1676
      %1802 = vmatpush2.bf16.msra.mxu0 %v1675
      %1803 = vmatprep.subr.bf16.mxu0 %v1670
      %1804 = vmatpush2.bf16.msra.mxu0 %v1669
      %1805 = vmatprep.subr.bf16.mxu0 %v1664
      %1806 = vmatpush2.bf16.msra.mxu0 %v1663
      %1807 = vmatprep.subr.bf16.mxu0 %v1658
      %1808 = vmatpush2.bf16.msra.mxu0 %v1657
      %1809 = vmatprep.subr.bf16.mxu0 %v1652
      %1810 = vmatpush2.bf16.msra.mxu0 %v1651
      %1811 = vmatprep.subr.bf16.mxu0 %v1646
      %1812 = vmatpush2.bf16.msra.mxu0 %v1645
      %1813 = vmatprep.subr.bf16.mxu0 %v1640
      %1814 = vmatpush2.bf16.msra.mxu0 %v1639
      %1815 = vmatprep.mubr.bf16.mxu0 %v1166
      %1816 = vmatmul.mubr.bf16.gmra.mxu0 %v1165
      %v1817 = vpop.f32.mrf.mxu0
      %v1818 = vadd.f32 %v1276, %v1817
      %v1819 = vpop.f32.mrf.mxu0
      %v1820 = vadd.f32 %v1280, %v1819
      %v1821 = vpop.f32.mrf.mxu0
      %v1822 = vadd.f32 %v1276, %v1821
      %v1823 = vpop.f32.mrf.mxu0
      %v1824 = vadd.f32 %v1280, %v1823
      %1825 = vmatprep.mubr.bf16.mxu0 %v1168
      %1826 = vmatmul.mubr.bf16.gmra.mxu0 %v1167
      %v1827 = vpop.f32.mrf.mxu0
      %v1828 = vadd.f32 %v1276, %v1827
      %v1829 = vpop.f32.mrf.mxu0
      %v1830 = vadd.f32 %v1280, %v1829
      %v1831 = vpop.f32.mrf.mxu0
      %v1832 = vadd.f32 %v1276, %v1831
      %v1833 = vpop.f32.mrf.mxu0
      %v1834 = vadd.f32 %v1280, %v1833
      %1835 = vmatprep.mubr.bf16.mxu0 %v1170
      %1836 = vmatmul.mubr.bf16.gmra.mxu0 %v1169
      %v1837 = vpop.f32.mrf.mxu0
      %v1838 = vadd.f32 %v1276, %v1837
      %v1839 = vpop.f32.mrf.mxu0
      %v1840 = vadd.f32 %v1280, %v1839
      %v1841 = vpop.f32.mrf.mxu0
      %v1842 = vadd.f32 %v1276, %v1841
      %v1843 = vpop.f32.mrf.mxu0
      %v1844 = vadd.f32 %v1280, %v1843
      %1845 = vmatprep.mubr.bf16.mxu0 %v1172
      %1846 = vmatmul.mubr.bf16.gmra.mxu0 %v1171
      %v1847 = vpop.f32.mrf.mxu0
      %v1848 = vadd.f32 %v1276, %v1847
      %v1849 = vpop.f32.mrf.mxu0
      %v1850 = vadd.f32 %v1280, %v1849
      %v1851 = vpop.f32.mrf.mxu0
      %v1852 = vadd.f32 %v1276, %v1851
      %v1853 = vpop.f32.mrf.mxu0
      %v1854 = vadd.f32 %v1280, %v1853
      %1855 = vmatprep.mubr.bf16.mxu0 %v1174
      %1856 = vmatmul.mubr.bf16.gmra.mxu0 %v1173
      %v1857 = vpop.f32.mrf.mxu0
      %v1858 = vadd.f32 %v1276, %v1857
      %v1859 = vpop.f32.mrf.mxu0
      %v1860 = vadd.f32 %v1280, %v1859
      %v1861 = vpop.f32.mrf.mxu0
      %v1862 = vadd.f32 %v1276, %v1861
      %v1863 = vpop.f32.mrf.mxu0
      %v1864 = vadd.f32 %v1280, %v1863
      %1865 = vdwg.mxu0
      %1866 = vmatprep.subr.bf16.mxu0 %v1636
      %1867 = vmatpush1.bf16.msra.mxu0 %v1635
      %1868 = vmatprep.subr.bf16.mxu0 %v1630
      %1869 = vmatpush1.bf16.msra.mxu0 %v1629
      %1870 = vmatprep.subr.bf16.mxu0 %v1624
      %1871 = vmatpush1.bf16.msra.mxu0 %v1623
      %1872 = vmatprep.subr.bf16.mxu0 %v1618
      %1873 = vmatpush1.bf16.msra.mxu0 %v1617
      %1874 = vmatprep.subr.bf16.mxu0 %v1612
      %1875 = vmatpush1.bf16.msra.mxu0 %v1611
      %1876 = vmatprep.subr.bf16.mxu0 %v1606
      %1877 = vmatpush1.bf16.msra.mxu0 %v1605
      %1878 = vmatprep.subr.bf16.mxu0 %v1600
      %1879 = vmatpush1.bf16.msra.mxu0 %v1599
      %1880 = vmatprep.subr.bf16.mxu0 %v1594
      %1881 = vmatpush1.bf16.msra.mxu0 %v1593
      %1882 = vmatprep.subr.bf16.mxu0 %v1684
      %1883 = vmatpush2.bf16.msra.mxu0 %v1683
      %1884 = vmatprep.subr.bf16.mxu0 %v1678
      %1885 = vmatpush2.bf16.msra.mxu0 %v1677
      %1886 = vmatprep.subr.bf16.mxu0 %v1672
      %1887 = vmatpush2.bf16.msra.mxu0 %v1671
      %1888 = vmatprep.subr.bf16.mxu0 %v1666
      %1889 = vmatpush2.bf16.msra.mxu0 %v1665
      %1890 = vmatprep.subr.bf16.mxu0 %v1660
      %1891 = vmatpush2.bf16.msra.mxu0 %v1659
      %1892 = vmatprep.subr.bf16.mxu0 %v1654
      %1893 = vmatpush2.bf16.msra.mxu0 %v1653
      %1894 = vmatprep.subr.bf16.mxu0 %v1648
      %1895 = vmatpush2.bf16.msra.mxu0 %v1647
      %1896 = vmatprep.subr.bf16.mxu0 %v1642
      %1897 = vmatpush2.bf16.msra.mxu0 %v1641
      %1898 = vmatprep.mubr.bf16.mxu0 %v1166
      %1899 = vmatmul.mubr.bf16.gmra.mxu0 %v1165
      %v1900 = vpop.f32.mrf.mxu0
      %v1901 = vadd.f32 %v1284, %v1900
      %v1902 = vpop.f32.mrf.mxu0
      %v1903 = vadd.f32 %v1288, %v1902
      %v1904 = vpop.f32.mrf.mxu0
      %v1905 = vadd.f32 %v1284, %v1904
      %v1906 = vpop.f32.mrf.mxu0
      %v1907 = vadd.f32 %v1288, %v1906
      %1908 = vmatprep.mubr.bf16.mxu0 %v1168
      %1909 = vmatmul.mubr.bf16.gmra.mxu0 %v1167
      %v1910 = vpop.f32.mrf.mxu0
      %v1911 = vadd.f32 %v1284, %v1910
      %v1912 = vpop.f32.mrf.mxu0
      %v1913 = vadd.f32 %v1288, %v1912
      %v1914 = vpop.f32.mrf.mxu0
      %v1915 = vadd.f32 %v1284, %v1914
      %v1916 = vpop.f32.mrf.mxu0
      %v1917 = vadd.f32 %v1288, %v1916
      %1918 = vmatprep.mubr.bf16.mxu0 %v1170
      %1919 = vmatmul.mubr.bf16.gmra.mxu0 %v1169
      %v1920 = vpop.f32.mrf.mxu0
      %v1921 = vadd.f32 %v1284, %v1920
      %v1922 = vpop.f32.mrf.mxu0
      %v1923 = vadd.f32 %v1288, %v1922
      %v1924 = vpop.f32.mrf.mxu0
      %v1925 = vadd.f32 %v1284, %v1924
      %v1926 = vpop.f32.mrf.mxu0
      %v1927 = vadd.f32 %v1288, %v1926
      %1928 = vmatprep.mubr.bf16.mxu0 %v1172
      %1929 = vmatmul.mubr.bf16.gmra.mxu0 %v1171
      %v1930 = vpop.f32.mrf.mxu0
      %v1931 = vadd.f32 %v1284, %v1930
      %v1932 = vpop.f32.mrf.mxu0
      %v1933 = vadd.f32 %v1288, %v1932
      %v1934 = vpop.f32.mrf.mxu0
      %v1935 = vadd.f32 %v1284, %v1934
      %v1936 = vpop.f32.mrf.mxu0
      %v1937 = vadd.f32 %v1288, %v1936
      %1938 = vmatprep.mubr.bf16.mxu0 %v1174
      %1939 = vmatmul.mubr.bf16.gmra.mxu0 %v1173
      %v1940 = vpop.f32.mrf.mxu0
      %v1941 = vadd.f32 %v1284, %v1940
      %v1942 = vpop.f32.mrf.mxu0
      %v1943 = vadd.f32 %v1288, %v1942
      %v1944 = vpop.f32.mrf.mxu0
      %v1945 = vadd.f32 %v1284, %v1944
      %v1946 = vpop.f32.mrf.mxu0
      %v1947 = vadd.f32 %v1288, %v1946
      %1948 = vdwg.mxu0
      %1949 = vmatprep.subr.bf16.mxu0 %v1638
      %1950 = vmatpush1.bf16.msra.mxu0 %v1637
      %1951 = vmatprep.subr.bf16.mxu0 %v1632
      %1952 = vmatpush1.bf16.msra.mxu0 %v1631
      %1953 = vmatprep.subr.bf16.mxu0 %v1626
      %1954 = vmatpush1.bf16.msra.mxu0 %v1625
      %1955 = vmatprep.subr.bf16.mxu0 %v1620
      %1956 = vmatpush1.bf16.msra.mxu0 %v1619
      %1957 = vmatprep.subr.bf16.mxu0 %v1614
      %1958 = vmatpush1.bf16.msra.mxu0 %v1613
      %1959 = vmatprep.subr.bf16.mxu0 %v1608
      %1960 = vmatpush1.bf16.msra.mxu0 %v1607
      %1961 = vmatprep.subr.bf16.mxu0 %v1602
      %1962 = vmatpush1.bf16.msra.mxu0 %v1601
      %1963 = vmatprep.subr.bf16.mxu0 %v1596
      %1964 = vmatpush1.bf16.msra.mxu0 %v1595
      %1965 = vmatprep.subr.bf16.mxu0 %v1686
      %1966 = vmatpush2.bf16.msra.mxu0 %v1685
      %1967 = vmatprep.subr.bf16.mxu0 %v1680
      %1968 = vmatpush2.bf16.msra.mxu0 %v1679
      %1969 = vmatprep.subr.bf16.mxu0 %v1674
      %1970 = vmatpush2.bf16.msra.mxu0 %v1673
      %1971 = vmatprep.subr.bf16.mxu0 %v1668
      %1972 = vmatpush2.bf16.msra.mxu0 %v1667
      %1973 = vmatprep.subr.bf16.mxu0 %v1662
      %1974 = vmatpush2.bf16.msra.mxu0 %v1661
      %1975 = vmatprep.subr.bf16.mxu0 %v1656
      %1976 = vmatpush2.bf16.msra.mxu0 %v1655
      %1977 = vmatprep.subr.bf16.mxu0 %v1650
      %1978 = vmatpush2.bf16.msra.mxu0 %v1649
      %1979 = vmatprep.subr.bf16.mxu0 %v1644
      %1980 = vmatpush2.bf16.msra.mxu0 %v1643
      %1981 = vmatprep.mubr.bf16.mxu0 %v1166
      %1982 = vmatmul.mubr.bf16.gmra.mxu0 %v1165
      %v1983 = vpop.f32.mrf.mxu0
      %v1984 = vadd.f32 %v1292, %v1983
      %v1985 = vpop.f32.mrf.mxu0
      %v1986 = vadd.f32 %v1296, %v1985
      %v1987 = vpop.f32.mrf.mxu0
      %v1988 = vadd.f32 %v1292, %v1987
      %v1989 = vpop.f32.mrf.mxu0
      %v1990 = vadd.f32 %v1296, %v1989
      %1991 = vmatprep.mubr.bf16.mxu0 %v1168
      %1992 = vmatmul.mubr.bf16.gmra.mxu0 %v1167
      %v1993 = vpop.f32.mrf.mxu0
      %v1994 = vadd.f32 %v1292, %v1993
      %v1995 = vpop.f32.mrf.mxu0
      %v1996 = vadd.f32 %v1296, %v1995
      %v1997 = vpop.f32.mrf.mxu0
      %v1998 = vadd.f32 %v1292, %v1997
      %v1999 = vpop.f32.mrf.mxu0
      %v2000 = vadd.f32 %v1296, %v1999
      %2001 = vmatprep.mubr.bf16.mxu0 %v1170
      %2002 = vmatmul.mubr.bf16.gmra.mxu0 %v1169
      %v2003 = vpop.f32.mrf.mxu0
      %v2004 = vadd.f32 %v1292, %v2003
      %v2005 = vpop.f32.mrf.mxu0
      %v2006 = vadd.f32 %v1296, %v2005
      %v2007 = vpop.f32.mrf.mxu0
      %v2008 = vadd.f32 %v1292, %v2007
      %v2009 = vpop.f32.mrf.mxu0
      %v2010 = vadd.f32 %v1296, %v2009
      %2011 = vmatprep.mubr.bf16.mxu0 %v1172
      %2012 = vmatmul.mubr.bf16.gmra.mxu0 %v1171
      %v2013 = vpop.f32.mrf.mxu0
      %v2014 = vadd.f32 %v1292, %v2013
      %v2015 = vpop.f32.mrf.mxu0
      %v2016 = vadd.f32 %v1296, %v2015
      %v2017 = vpop.f32.mrf.mxu0
      %v2018 = vadd.f32 %v1292, %v2017
      %v2019 = vpop.f32.mrf.mxu0
      %v2020 = vadd.f32 %v1296, %v2019
      %2021 = vmatprep.mubr.bf16.mxu0 %v1174
      %2022 = vmatmul.mubr.bf16.gmra.mxu0 %v1173
      %v2023 = vpop.f32.mrf.mxu0
      %v2024 = vadd.f32 %v1292, %v2023
      %v2025 = vpop.f32.mrf.mxu0
      %v2026 = vadd.f32 %v1296, %v2025
      %v2027 = vpop.f32.mrf.mxu0
      %v2028 = vadd.f32 %v1292, %v2027
      %v2029 = vpop.f32.mrf.mxu0
      %v2030 = vadd.f32 %v1296, %v2029
      %2031 = vdwg.mxu0
      %v2032 = vld [vmem:[%s818] sm:$0x1]
      %v2033 = vld [vmem:[%s818 + $0x1] sm:$0x1]
      %v2034 = vld [vmem:[%s818 + $0x2] sm:$0x1]
      %v2035 = vld [vmem:[%s818 + $0x3] sm:$0x1]
      %v2036 = vld [vmem:[%s818 + $0x4] sm:$0x1]
      %v2037 = vpack.c.bf16 %v1822, %v1818
      %v2038 = vpack.c.bf16 %v1832, %v1828
      %v2039 = vpack.c.bf16 %v1842, %v1838
      %v2040 = vpack.c.bf16 %v1852, %v1848
      %v2041 = vpack.c.bf16 %v1862, %v1858
      %v2042 = vpack.c.bf16 %v1905, %v1901
      %v2043 = vpack.c.bf16 %v1915, %v1911
      %v2044 = vpack.c.bf16 %v1925, %v1921
      %v2045 = vpack.c.bf16 %v1935, %v1931
      %v2046 = vpack.c.bf16 %v1945, %v1941
      %v2047 = vpack.c.bf16 %v1988, %v1984
      %v2048 = vpack.c.bf16 %v1998, %v1994
      %v2049 = vpack.c.bf16 %v2008, %v2004
      %v2050 = vpack.c.bf16 %v2018, %v2014
      %v2051 = vpack.c.bf16 %v2028, %v2024
      %2052 = vmatprep.subr.bf16.mxu0 0
      %2053 = vmatpush1.bf16.xpose.msra.mxu0 0
      %2054 = vmatprep.subr.bf16.mxu0 0
      %2055 = vmatpush1.bf16.xpose.msra.mxu0 0
      %2056 = vmatprep.subr.bf16.mxu0 0
      %2057 = vmatpush1.bf16.xpose.msra.mxu0 0
      %2058 = vmatprep.subr.bf16.mxu0 0
      %2059 = vmatpush1.bf16.xpose.msra.mxu0 0
      %2060 = vmatprep.subr.bf16.mxu0 0
      %2061 = vmatpush1.bf16.xpose.msra.mxu0 0
      %2062 = vmatprep.subr.bf16.mxu0 0
      %2063 = vmatpush1.bf16.xpose.msra.mxu0 0
      %2064 = vmatprep.subr.bf16.mxu0 0
      %2065 = vmatpush1.bf16.xpose.msra.mxu0 0
      %2066 = vmatprep.subr.bf16.mxu0 0
      %2067 = vmatpush1.bf16.xpose.msra.mxu0 %v2042
      %2068 = vmatprep.subr.bf16.mxu0 0
      %2069 = vmatpush2.bf16.xpose.msra.mxu0 0
      %2070 = vmatprep.subr.bf16.mxu0 0
      %2071 = vmatpush2.bf16.xpose.msra.mxu0 0
      %2072 = vmatprep.subr.bf16.mxu0 0
      %2073 = vmatpush2.bf16.xpose.msra.mxu0 0
      %2074 = vmatprep.subr.bf16.mxu0 0
      %2075 = vmatpush2.bf16.xpose.msra.mxu0 0
      %2076 = vmatprep.subr.bf16.mxu0 0
      %2077 = vmatpush2.bf16.xpose.msra.mxu0 0
      %2078 = vmatprep.subr.bf16.mxu0 0
      %2079 = vmatpush2.bf16.xpose.msra.mxu0 0
      %2080 = vmatprep.subr.bf16.mxu0 0
      %2081 = vmatpush2.bf16.xpose.msra.mxu0 0
      %2082 = vmatprep.subr.bf16.mxu0 0
      %2083 = vmatpush2.bf16.xpose.msra.mxu0 0
      %2084 = vmatprep.mubr.bf16.mxu0 0
      %2085 = vmatmul.mubr.bf16.gmra.mxu0 %v2037
      %v2086 = vpop.f32.mrf.mxu0
      %v2087 = vadd.f32 0.0, %v2086
      %v2088 = vpop.f32.mrf.mxu0
      %v2089 = vpop.f32.mrf.mxu0
      %v2090 = vadd.f32 0.0, %v2089
      %v2091 = vpop.f32.mrf.mxu0
      %2092 = vdwg.mxu0
      %2093 = vmatprep.subr.bf16.mxu0 0
      %2094 = vmatpush1.bf16.xpose.msra.mxu0 0
      %2095 = vmatprep.subr.bf16.mxu0 0
      %2096 = vmatpush1.bf16.xpose.msra.mxu0 0
      %2097 = vmatprep.subr.bf16.mxu0 0
      %2098 = vmatpush1.bf16.xpose.msra.mxu0 0
      %2099 = vmatprep.subr.bf16.mxu0 0
      %2100 = vmatpush1.bf16.xpose.msra.mxu0 0
      %2101 = vmatprep.subr.bf16.mxu0 0
      %2102 = vmatpush1.bf16.xpose.msra.mxu0 0
      %2103 = vmatprep.subr.bf16.mxu0 0
      %2104 = vmatpush1.bf16.xpose.msra.mxu0 0
      %2105 = vmatprep.subr.bf16.mxu0 0
      %2106 = vmatpush1.bf16.xpose.msra.mxu0 0
      %2107 = vmatprep.subr.bf16.mxu0 0
      %2108 = vmatpush1.bf16.xpose.msra.mxu0 %v2043
      %2109 = vmatprep.subr.bf16.mxu0 0
      %2110 = vmatpush2.bf16.xpose.msra.mxu0 0
      %2111 = vmatprep.subr.bf16.mxu0 0
      %2112 = vmatpush2.bf16.xpose.msra.mxu0 0
      %2113 = vmatprep.subr.bf16.mxu0 0
      %2114 = vmatpush2.bf16.xpose.msra.mxu0 0
      %2115 = vmatprep.subr.bf16.mxu0 0
      %2116 = vmatpush2.bf16.xpose.msra.mxu0 0
      %2117 = vmatprep.subr.bf16.mxu0 0
      %2118 = vmatpush2.bf16.xpose.msra.mxu0 0
      %2119 = vmatprep.subr.bf16.mxu0 0
      %2120 = vmatpush2.bf16.xpose.msra.mxu0 0
      %2121 = vmatprep.subr.bf16.mxu0 0
      %2122 = vmatpush2.bf16.xpose.msra.mxu0 0
      %2123 = vmatprep.subr.bf16.mxu0 0
      %2124 = vmatpush2.bf16.xpose.msra.mxu0 0
      %2125 = vmatprep.mubr.bf16.mxu0 0
      %2126 = vmatmul.mubr.bf16.gmra.mxu0 %v2038
      %v2127 = vpop.f32.mrf.mxu0
      %v2128 = vadd.f32 0.0, %v2127
      %v2129 = vpop.f32.mrf.mxu0
      %v2130 = vpop.f32.mrf.mxu0
      %v2131 = vadd.f32 0.0, %v2130
      %v2132 = vpop.f32.mrf.mxu0
      %2133 = vdwg.mxu0
      %2134 = vmatprep.subr.bf16.mxu0 0
      %2135 = vmatpush1.bf16.xpose.msra.mxu0 0
      %2136 = vmatprep.subr.bf16.mxu0 0
      %2137 = vmatpush1.bf16.xpose.msra.mxu0 0
      %2138 = vmatprep.subr.bf16.mxu0 0
      %2139 = vmatpush1.bf16.xpose.msra.mxu0 0
      %2140 = vmatprep.subr.bf16.mxu0 0
      %2141 = vmatpush1.bf16.xpose.msra.mxu0 0
      %2142 = vmatprep.subr.bf16.mxu0 0
      %2143 = vmatpush1.bf16.xpose.msra.mxu0 0
      %2144 = vmatprep.subr.bf16.mxu0 0
      %2145 = vmatpush1.bf16.xpose.msra.mxu0 0
      %2146 = vmatprep.subr.bf16.mxu0 0
      %2147 = vmatpush1.bf16.xpose.msra.mxu0 0
      %2148 = vmatprep.subr.bf16.mxu0 0
      %2149 = vmatpush1.bf16.xpose.msra.mxu0 %v2044
      %2150 = vmatprep.subr.bf16.mxu0 0
      %2151 = vmatpush2.bf16.xpose.msra.mxu0 0
      %2152 = vmatprep.subr.bf16.mxu0 0
      %2153 = vmatpush2.bf16.xpose.msra.mxu0 0
      %2154 = vmatprep.subr.bf16.mxu0 0
      %2155 = vmatpush2.bf16.xpose.msra.mxu0 0
      %2156 = vmatprep.subr.bf16.mxu0 0
      %2157 = vmatpush2.bf16.xpose.msra.mxu0 0
      %2158 = vmatprep.subr.bf16.mxu0 0
      %2159 = vmatpush2.bf16.xpose.msra.mxu0 0
      %2160 = vmatprep.subr.bf16.mxu0 0
      %2161 = vmatpush2.bf16.xpose.msra.mxu0 0
      %2162 = vmatprep.subr.bf16.mxu0 0
      %2163 = vmatpush2.bf16.xpose.msra.mxu0 0
      %2164 = vmatprep.subr.bf16.mxu0 0
      %2165 = vmatpush2.bf16.xpose.msra.mxu0 0
      %2166 = vmatprep.mubr.bf16.mxu0 0
      %2167 = vmatmul.mubr.bf16.gmra.mxu0 %v2039
      %v2168 = vpop.f32.mrf.mxu0
      %v2169 = vadd.f32 0.0, %v2168
      %v2170 = vpop.f32.mrf.mxu0
      %v2171 = vpop.f32.mrf.mxu0
      %v2172 = vadd.f32 0.0, %v2171
      %v2173 = vpop.f32.mrf.mxu0
      %2174 = vdwg.mxu0
      %2175 = vmatprep.subr.bf16.mxu0 0
      %2176 = vmatpush1.bf16.xpose.msra.mxu0 0
      %2177 = vmatprep.subr.bf16.mxu0 0
      %2178 = vmatpush1.bf16.xpose.msra.mxu0 0
      %2179 = vmatprep.subr.bf16.mxu0 0
      %2180 = vmatpush1.bf16.xpose.msra.mxu0 0
      %2181 = vmatprep.subr.bf16.mxu0 0
      %2182 = vmatpush1.bf16.xpose.msra.mxu0 0
      %2183 = vmatprep.subr.bf16.mxu0 0
      %2184 = vmatpush1.bf16.xpose.msra.mxu0 0
      %2185 = vmatprep.subr.bf16.mxu0 0
      %2186 = vmatpush1.bf16.xpose.msra.mxu0 0
      %2187 = vmatprep.subr.bf16.mxu0 0
      %2188 = vmatpush1.bf16.xpose.msra.mxu0 0
      %2189 = vmatprep.subr.bf16.mxu0 0
      %2190 = vmatpush1.bf16.xpose.msra.mxu0 %v2045
      %2191 = vmatprep.subr.bf16.mxu0 0
      %2192 = vmatpush2.bf16.xpose.msra.mxu0 0
      %2193 = vmatprep.subr.bf16.mxu0 0
      %2194 = vmatpush2.bf16.xpose.msra.mxu0 0
      %2195 = vmatprep.subr.bf16.mxu0 0
      %2196 = vmatpush2.bf16.xpose.msra.mxu0 0
      %2197 = vmatprep.subr.bf16.mxu0 0
      %2198 = vmatpush2.bf16.xpose.msra.mxu0 0
      %2199 = vmatprep.subr.bf16.mxu0 0
      %2200 = vmatpush2.bf16.xpose.msra.mxu0 0
      %2201 = vmatprep.subr.bf16.mxu0 0
      %2202 = vmatpush2.bf16.xpose.msra.mxu0 0
      %2203 = vmatprep.subr.bf16.mxu0 0
      %2204 = vmatpush2.bf16.xpose.msra.mxu0 0
      %2205 = vmatprep.subr.bf16.mxu0 0
      %2206 = vmatpush2.bf16.xpose.msra.mxu0 0
      %2207 = vmatprep.mubr.bf16.mxu0 0
      %2208 = vmatmul.mubr.bf16.gmra.mxu0 %v2040
      %v2209 = vpop.f32.mrf.mxu0
      %v2210 = vadd.f32 0.0, %v2209
      %v2211 = vpop.f32.mrf.mxu0
      %v2212 = vpop.f32.mrf.mxu0
      %v2213 = vadd.f32 0.0, %v2212
      %v2214 = vpop.f32.mrf.mxu0
      %2215 = vdwg.mxu0
      %2216 = vmatprep.subr.bf16.mxu0 0
      %2217 = vmatpush1.bf16.xpose.msra.mxu0 0
      %2218 = vmatprep.subr.bf16.mxu0 0
      %2219 = vmatpush1.bf16.xpose.msra.mxu0 0
      %2220 = vmatprep.subr.bf16.mxu0 0
      %2221 = vmatpush1.bf16.xpose.msra.mxu0 0
      %2222 = vmatprep.subr.bf16.mxu0 0
      %2223 = vmatpush1.bf16.xpose.msra.mxu0 0
      %2224 = vmatprep.subr.bf16.mxu0 0
      %2225 = vmatpush1.bf16.xpose.msra.mxu0 0
      %2226 = vmatprep.subr.bf16.mxu0 0
      %2227 = vmatpush1.bf16.xpose.msra.mxu0 0
      %2228 = vmatprep.subr.bf16.mxu0 0
      %2229 = vmatpush1.bf16.xpose.msra.mxu0 0
      %2230 = vmatprep.subr.bf16.mxu0 0
      %2231 = vmatpush1.bf16.xpose.msra.mxu0 %v2046
      %2232 = vmatprep.subr.bf16.mxu0 0
      %2233 = vmatpush2.bf16.xpose.msra.mxu0 0
      %2234 = vmatprep.subr.bf16.mxu0 0
      %2235 = vmatpush2.bf16.xpose.msra.mxu0 0
      %2236 = vmatprep.subr.bf16.mxu0 0
      %2237 = vmatpush2.bf16.xpose.msra.mxu0 0
      %2238 = vmatprep.subr.bf16.mxu0 0
      %2239 = vmatpush2.bf16.xpose.msra.mxu0 0
      %2240 = vmatprep.subr.bf16.mxu0 0
      %2241 = vmatpush2.bf16.xpose.msra.mxu0 0
      %2242 = vmatprep.subr.bf16.mxu0 0
      %2243 = vmatpush2.bf16.xpose.msra.mxu0 0
      %2244 = vmatprep.subr.bf16.mxu0 0
      %2245 = vmatpush2.bf16.xpose.msra.mxu0 0
      %2246 = vmatprep.subr.bf16.mxu0 0
      %2247 = vmatpush2.bf16.xpose.msra.mxu0 0
      %2248 = vmatprep.mubr.bf16.mxu0 0
      %2249 = vmatmul.mubr.bf16.gmra.mxu0 %v2041
      %v2250 = vpop.f32.mrf.mxu0
      %v2251 = vadd.f32 0.0, %v2250
      %v2252 = vpop.f32.mrf.mxu0
      %v2253 = vpop.f32.mrf.mxu0
      %v2254 = vadd.f32 0.0, %v2253
      %v2255 = vpop.f32.mrf.mxu0
      %2256 = vdwg.mxu0
      %v2257 = vmul.f32 %v2087, 0.088388346
      %v2258 = vmul.f32 %v2090, 0.088388346
      %v2259 = vmul.f32 %v2128, 0.088388346
      %v2260 = vmul.f32 %v2131, 0.088388346
      %v2261 = vmul.f32 %v2169, 0.088388346
      %v2262 = vmul.f32 %v2172, 0.088388346
      %v2263 = vmul.f32 %v2210, 0.088388346
      %v2264 = vmul.f32 %v2213, 0.088388346
      %v2265 = vmul.f32 %v2251, 0.088388346
      %v2266 = vmul.f32 %v2254, 0.088388346
      %v2272 = vlaneseq
      %v2273 = vshrl.u32 %v2272, 7
      %v2274 = vsub.s32 0, %v2273
      %v2275 = vrot.slane %v2032, %v2274
      %v2276 = vlaneseq
      %v2277 = vshrl.u32 %v2276, 7
      %v2278 = vsub.s32 0, %v2277
      %v2279 = vrot.slane %v2033, %v2278
      %v2280 = vlaneseq
      %v2281 = vshrl.u32 %v2280, 7
      %v2282 = vsub.s32 0, %v2281
      %v2283 = vrot.slane %v2034, %v2282
      %v2284 = vlaneseq
      %v2285 = vshrl.u32 %v2284, 7
      %v2286 = vsub.s32 0, %v2285
      %v2287 = vrot.slane %v2035, %v2286
      %v2288 = vlaneseq
      %v2289 = vshrl.u32 %v2288, 7
      %v2290 = vsub.s32 0, %v2289
      %v2291 = vrot.slane %v2036, %v2290
      %v2297 = vadd.f32 %v2257, %v2275
      %v2298 = vadd.f32 %v2258, %v2275
      %v2299 = vadd.f32 %v2259, %v2279
      %v2300 = vadd.f32 %v2260, %v2279
      %v2301 = vadd.f32 %v2261, %v2283
      %v2302 = vadd.f32 %v2262, %v2283
      %v2303 = vadd.f32 %v2263, %v2287
      %v2304 = vadd.f32 %v2264, %v2287
      %v2305 = vadd.f32 %v2265, %v2291
      %v2306 = vadd.f32 %v2266, %v2291
      %vm2307 = vcmask 130048
      %v2308 = vsel %vm2307, %v2297, -inf
      %2309 = vmax.xlane.f32.xlu0 %v2308
      %v2310 = vpop.xlane.xlu0 %2309
      %v2311 = vsel %vm2307, %v2298, -inf
      %2312 = vmax.xlane.f32.xlu0 %v2311
      %v2313 = vpop.xlane.xlu0 %2312
      %v2314 = vsel %vm2307, %v2299, -inf
      %2315 = vmax.xlane.f32.xlu0 %v2314
      %v2316 = vpop.xlane.xlu0 %2315
      %v2317 = vsel %vm2307, %v2300, -inf
      %2318 = vmax.xlane.f32.xlu0 %v2317
      %v2319 = vpop.xlane.xlu0 %2318
      %v2320 = vsel %vm2307, %v2301, -inf
      %2321 = vmax.xlane.f32.xlu0 %v2320
      %v2322 = vpop.xlane.xlu0 %2321
      %v2323 = vsel %vm2307, %v2302, -inf
      %2324 = vmax.xlane.f32.xlu0 %v2323
      %v2325 = vpop.xlane.xlu0 %2324
      %v2326 = vsel %vm2307, %v2303, -inf
      %2327 = vmax.xlane.f32.xlu0 %v2326
      %v2328 = vpop.xlane.xlu0 %2327
      %v2329 = vsel %vm2307, %v2304, -inf
      %2330 = vmax.xlane.f32.xlu0 %v2329
      %v2331 = vpop.xlane.xlu0 %2330
      %v2332 = vsel %vm2307, %v2305, -inf
      %2333 = vmax.xlane.f32.xlu0 %v2332
      %v2334 = vpop.xlane.xlu0 %2333
      %v2335 = vsel %vm2307, %v2306, -inf
      %2336 = vmax.xlane.f32.xlu0 %v2335
      %v2337 = vpop.xlane.xlu0 %2336
      %v2338 = vsub.f32 %v2297, %v2310
      %v2339 = vsub.f32 %v2298, %v2313
      %v2340 = vsub.f32 %v2299, %v2316
      %v2341 = vsub.f32 %v2300, %v2319
      %v2342 = vsub.f32 %v2301, %v2322
      %v2343 = vsub.f32 %v2302, %v2325
      %v2344 = vsub.f32 %v2303, %v2328
      %v2345 = vsub.f32 %v2304, %v2331
      %v2346 = vsub.f32 %v2305, %v2334
      %v2347 = vsub.f32 %v2306, %v2337
      %v2348 = vmul.f32 %v2338, 1.442695
      %v2349 = vpow.pop %v2348
      %v2350 = vmul.f32 %v2339, 1.442695
      %v2351 = vpow.pop %v2350
      %v2352 = vmul.f32 %v2340, 1.442695
      %v2353 = vpow.pop %v2352
      %v2354 = vmul.f32 %v2341, 1.442695
      %v2355 = vpow.pop %v2354
      %v2356 = vmul.f32 %v2342, 1.442695
      %v2357 = vpow.pop %v2356
      %v2358 = vmul.f32 %v2343, 1.442695
      %v2359 = vpow.pop %v2358
      %v2360 = vmul.f32 %v2344, 1.442695
      %v2361 = vpow.pop %v2360
      %v2362 = vmul.f32 %v2345, 1.442695
      %v2363 = vpow.pop %v2362
      %v2364 = vmul.f32 %v2346, 1.442695
      %v2365 = vpow.pop %v2364
      %v2366 = vmul.f32 %v2347, 1.442695
      %v2367 = vpow.pop %v2366
      %v2368 = vsel %vm2307, %v2349, 0.0
      %2369 = vadd.xlane.f32.xlu0 %v2368
      %v2370 = vpop.xlane.xlu0 %2369
      %v2371 = vsel %vm2307, %v2351, 0.0
      %2372 = vadd.xlane.f32.xlu0 %v2371
      %v2373 = vpop.xlane.xlu0 %2372
      %v2374 = vsel %vm2307, %v2353, 0.0
      %2375 = vadd.xlane.f32.xlu0 %v2374
      %v2376 = vpop.xlane.xlu0 %2375
      %v2377 = vsel %vm2307, %v2355, 0.0
      %2378 = vadd.xlane.f32.xlu0 %v2377
      %v2379 = vpop.xlane.xlu0 %2378
      %v2380 = vsel %vm2307, %v2357, 0.0
      %2381 = vadd.xlane.f32.xlu0 %v2380
      %v2382 = vpop.xlane.xlu0 %2381
      %v2383 = vsel %vm2307, %v2359, 0.0
      %2384 = vadd.xlane.f32.xlu0 %v2383
      %v2385 = vpop.xlane.xlu0 %2384
      %v2386 = vsel %vm2307, %v2361, 0.0
      %2387 = vadd.xlane.f32.xlu0 %v2386
      %v2388 = vpop.xlane.xlu0 %2387
      %v2389 = vsel %vm2307, %v2363, 0.0
      %2390 = vadd.xlane.f32.xlu0 %v2389
      %v2391 = vpop.xlane.xlu0 %2390
      %v2392 = vsel %vm2307, %v2365, 0.0
      %2393 = vadd.xlane.f32.xlu0 %v2392
      %v2394 = vpop.xlane.xlu0 %2393
      %v2395 = vsel %vm2307, %v2367, 0.0
      %2396 = vadd.xlane.f32.xlu0 %v2395
      %v2397 = vpop.xlane.xlu0 %2396
      %v2398 = vrcp.pop %v2370
      %v2399 = vrcp.pop %v2373
      %v2400 = vrcp.pop %v2376
      %v2401 = vrcp.pop %v2379
      %v2402 = vrcp.pop %v2382
      %v2403 = vrcp.pop %v2385
      %v2404 = vrcp.pop %v2388
      %v2405 = vrcp.pop %v2391
      %v2406 = vrcp.pop %v2394
      %v2407 = vrcp.pop %v2397
      %v2408 = vmul.f32 %v2349, %v2398
      %v2409 = vmul.f32 %v2351, %v2399
      %v2410 = vmul.f32 %v2353, %v2400
      %v2411 = vmul.f32 %v2355, %v2401
      %v2412 = vmul.f32 %v2357, %v2402
      %v2413 = vmul.f32 %v2359, %v2403
      %v2414 = vmul.f32 %v2361, %v2404
      %v2415 = vmul.f32 %v2363, %v2405
      %v2416 = vmul.f32 %v2365, %v2406
      %v2417 = vmul.f32 %v2367, %v2407
      %v2418 = vpack.c.bf16 %v2409, %v2408
      %v2419 = vpack.c.bf16 %v2411, %v2410
      %v2420 = vpack.c.bf16 %v2413, %v2412
      %v2421 = vpack.c.bf16 %v2415, %v2414
      %v2422 = vpack.c.bf16 %v2417, %v2416
      %v2424 = vsel %vm2307, %v2418, 0
      %2426 = vmatprep.subr.bf16.mxu0 0
      %2427 = vmatpush1.bf16.msra.mxu0 0
      %2428 = vmatprep.subr.bf16.mxu0 0
      %2429 = vmatpush1.bf16.msra.mxu0 0
      %2430 = vmatprep.subr.bf16.mxu0 0
      %2431 = vmatpush1.bf16.msra.mxu0 0
      %2432 = vmatprep.subr.bf16.mxu0 0
      %2433 = vmatpush1.bf16.msra.mxu0 0
      %2434 = vmatprep.subr.bf16.mxu0 0
      %2435 = vmatpush1.bf16.msra.mxu0 0
      %2436 = vmatprep.subr.bf16.mxu0 0
      %2437 = vmatpush1.bf16.msra.mxu0 0
      %2438 = vmatprep.subr.bf16.mxu0 0
      %2439 = vmatpush1.bf16.msra.mxu0 0
      %2440 = vmatprep.subr.bf16.mxu0 0
      %2441 = vmatpush1.bf16.msra.mxu0 %v2047
      %2442 = vmatprep.subr.bf16.mxu0 0
      %2443 = vmatpush2.bf16.msra.mxu0 0
      %2444 = vmatprep.subr.bf16.mxu0 0
      %2445 = vmatpush2.bf16.msra.mxu0 0
      %2446 = vmatprep.subr.bf16.mxu0 0
      %2447 = vmatpush2.bf16.msra.mxu0 0
      %2448 = vmatprep.subr.bf16.mxu0 0
      %2449 = vmatpush2.bf16.msra.mxu0 0
      %2450 = vmatprep.subr.bf16.mxu0 0
      %2451 = vmatpush2.bf16.msra.mxu0 0
      %2452 = vmatprep.subr.bf16.mxu0 0
      %2453 = vmatpush2.bf16.msra.mxu0 0
      %2454 = vmatprep.subr.bf16.mxu0 0
      %2455 = vmatpush2.bf16.msra.mxu0 0
      %2456 = vmatprep.subr.bf16.mxu0 0
      %2457 = vmatpush2.bf16.msra.mxu0 0
      %2458 = vmatprep.mubr.bf16.mxu0 0
      %2459 = vmatmul.mubr.bf16.gmra.mxu0 %v2424
      %v2460 = vpop.f32.mrf.mxu0
      %v2461 = vadd.f32 0.0, %v2460
      %v2462 = vpop.f32.mrf.mxu0
      %v2463 = vpop.f32.mrf.mxu0
      %v2464 = vadd.f32 0.0, %v2463
      %v2465 = vpop.f32.mrf.mxu0
      %2466 = vdwg.mxu0
      %v2468 = vsel %vm2307, %v2419, 0
      %2470 = vmatprep.subr.bf16.mxu0 0
      %2471 = vmatpush1.bf16.msra.mxu0 0
      %2472 = vmatprep.subr.bf16.mxu0 0
      %2473 = vmatpush1.bf16.msra.mxu0 0
      %2474 = vmatprep.subr.bf16.mxu0 0
      %2475 = vmatpush1.bf16.msra.mxu0 0
      %2476 = vmatprep.subr.bf16.mxu0 0
      %2477 = vmatpush1.bf16.msra.mxu0 0
      %2478 = vmatprep.subr.bf16.mxu0 0
      %2479 = vmatpush1.bf16.msra.mxu0 0
      %2480 = vmatprep.subr.bf16.mxu0 0
      %2481 = vmatpush1.bf16.msra.mxu0 0
      %2482 = vmatprep.subr.bf16.mxu0 0
      %2483 = vmatpush1.bf16.msra.mxu0 0
      %2484 = vmatprep.subr.bf16.mxu0 0
      %2485 = vmatpush1.bf16.msra.mxu0 %v2048
      %2486 = vmatprep.subr.bf16.mxu0 0
      %2487 = vmatpush2.bf16.msra.mxu0 0
      %2488 = vmatprep.subr.bf16.mxu0 0
      %2489 = vmatpush2.bf16.msra.mxu0 0
      %2490 = vmatprep.subr.bf16.mxu0 0
      %2491 = vmatpush2.bf16.msra.mxu0 0
      %2492 = vmatprep.subr.bf16.mxu0 0
      %2493 = vmatpush2.bf16.msra.mxu0 0
      %2494 = vmatprep.subr.bf16.mxu0 0
      %2495 = vmatpush2.bf16.msra.mxu0 0
      %2496 = vmatprep.subr.bf16.mxu0 0
      %2497 = vmatpush2.bf16.msra.mxu0 0
      %2498 = vmatprep.subr.bf16.mxu0 0
      %2499 = vmatpush2.bf16.msra.mxu0 0
      %2500 = vmatprep.subr.bf16.mxu0 0
      %2501 = vmatpush2.bf16.msra.mxu0 0
      %2502 = vmatprep.mubr.bf16.mxu0 0
      %2503 = vmatmul.mubr.bf16.gmra.mxu0 %v2468
      %v2504 = vpop.f32.mrf.mxu0
      %v2505 = vadd.f32 0.0, %v2504
      %v2506 = vpop.f32.mrf.mxu0
      %v2507 = vpop.f32.mrf.mxu0
      %v2508 = vadd.f32 0.0, %v2507
      %v2509 = vpop.f32.mrf.mxu0
      %2510 = vdwg.mxu0
      %v2512 = vsel %vm2307, %v2420, 0
      %2514 = vmatprep.subr.bf16.mxu0 0
      %2515 = vmatpush1.bf16.msra.mxu0 0
      %2516 = vmatprep.subr.bf16.mxu0 0
      %2517 = vmatpush1.bf16.msra.mxu0 0
      %2518 = vmatprep.subr.bf16.mxu0 0
      %2519 = vmatpush1.bf16.msra.mxu0 0
      %2520 = vmatprep.subr.bf16.mxu0 0
      %2521 = vmatpush1.bf16.msra.mxu0 0
      %2522 = vmatprep.subr.bf16.mxu0 0
      %2523 = vmatpush1.bf16.msra.mxu0 0
      %2524 = vmatprep.subr.bf16.mxu0 0
      %2525 = vmatpush1.bf16.msra.mxu0 0
      %2526 = vmatprep.subr.bf16.mxu0 0
      %2527 = vmatpush1.bf16.msra.mxu0 0
      %2528 = vmatprep.subr.bf16.mxu0 0
      %2529 = vmatpush1.bf16.msra.mxu0 %v2049
      %2530 = vmatprep.subr.bf16.mxu0 0
      %2531 = vmatpush2.bf16.msra.mxu0 0
      %2532 = vmatprep.subr.bf16.mxu0 0
      %2533 = vmatpush2.bf16.msra.mxu0 0
      %2534 = vmatprep.subr.bf16.mxu0 0
      %2535 = vmatpush2.bf16.msra.mxu0 0
      %2536 = vmatprep.subr.bf16.mxu0 0
      %2537 = vmatpush2.bf16.msra.mxu0 0
      %2538 = vmatprep.subr.bf16.mxu0 0
      %2539 = vmatpush2.bf16.msra.mxu0 0
      %2540 = vmatprep.subr.bf16.mxu0 0
      %2541 = vmatpush2.bf16.msra.mxu0 0
      %2542 = vmatprep.subr.bf16.mxu0 0
      %2543 = vmatpush2.bf16.msra.mxu0 0
      %2544 = vmatprep.subr.bf16.mxu0 0
      %2545 = vmatpush2.bf16.msra.mxu0 0
      %2546 = vmatprep.mubr.bf16.mxu0 0
      %2547 = vmatmul.mubr.bf16.gmra.mxu0 %v2512
      %v2548 = vpop.f32.mrf.mxu0
      %v2549 = vadd.f32 0.0, %v2548
      %v2550 = vpop.f32.mrf.mxu0
      %v2551 = vpop.f32.mrf.mxu0
      %v2552 = vadd.f32 0.0, %v2551
      %v2553 = vpop.f32.mrf.mxu0
      %2554 = vdwg.mxu0
      %v2556 = vsel %vm2307, %v2421, 0
      %2558 = vmatprep.subr.bf16.mxu0 0
      %2559 = vmatpush1.bf16.msra.mxu0 0
      %2560 = vmatprep.subr.bf16.mxu0 0
      %2561 = vmatpush1.bf16.msra.mxu0 0
      %2562 = vmatprep.subr.bf16.mxu0 0
      %2563 = vmatpush1.bf16.msra.mxu0 0
      %2564 = vmatprep.subr.bf16.mxu0 0
      %2565 = vmatpush1.bf16.msra.mxu0 0
      %2566 = vmatprep.subr.bf16.mxu0 0
      %2567 = vmatpush1.bf16.msra.mxu0 0
      %2568 = vmatprep.subr.bf16.mxu0 0
      %2569 = vmatpush1.bf16.msra.mxu0 0
      %2570 = vmatprep.subr.bf16.mxu0 0
      %2571 = vmatpush1.bf16.msra.mxu0 0
      %2572 = vmatprep.subr.bf16.mxu0 0
      %2573 = vmatpush1.bf16.msra.mxu0 %v2050
      %2574 = vmatprep.subr.bf16.mxu0 0
      %2575 = vmatpush2.bf16.msra.mxu0 0
      %2576 = vmatprep.subr.bf16.mxu0 0
      %2577 = vmatpush2.bf16.msra.mxu0 0
      %2578 = vmatprep.subr.bf16.mxu0 0
      %2579 = vmatpush2.bf16.msra.mxu0 0
      %2580 = vmatprep.subr.bf16.mxu0 0
      %2581 = vmatpush2.bf16.msra.mxu0 0
      %2582 = vmatprep.subr.bf16.mxu0 0
      %2583 = vmatpush2.bf16.msra.mxu0 0
      %2584 = vmatprep.subr.bf16.mxu0 0
      %2585 = vmatpush2.bf16.msra.mxu0 0
      %2586 = vmatprep.subr.bf16.mxu0 0
      %2587 = vmatpush2.bf16.msra.mxu0 0
      %2588 = vmatprep.subr.bf16.mxu0 0
      %2589 = vmatpush2.bf16.msra.mxu0 0
      %2590 = vmatprep.mubr.bf16.mxu0 0
      %2591 = vmatmul.mubr.bf16.gmra.mxu0 %v2556
      %v2592 = vpop.f32.mrf.mxu0
      %v2593 = vadd.f32 0.0, %v2592
      %v2594 = vpop.f32.mrf.mxu0
      %v2595 = vpop.f32.mrf.mxu0
      %v2596 = vadd.f32 0.0, %v2595
      %v2597 = vpop.f32.mrf.mxu0
      %2598 = vdwg.mxu0
      %v2600 = vsel %vm2307, %v2422, 0
      %2602 = vmatprep.subr.bf16.mxu0 0
      %2603 = vmatpush1.bf16.msra.mxu0 0
      %2604 = vmatprep.subr.bf16.mxu0 0
      %2605 = vmatpush1.bf16.msra.mxu0 0
      %2606 = vmatprep.subr.bf16.mxu0 0
      %2607 = vmatpush1.bf16.msra.mxu0 0
      %2608 = vmatprep.subr.bf16.mxu0 0
      %2609 = vmatpush1.bf16.msra.mxu0 0
      %2610 = vmatprep.subr.bf16.mxu0 0
      %2611 = vmatpush1.bf16.msra.mxu0 0
      %2612 = vmatprep.subr.bf16.mxu0 0
      %2613 = vmatpush1.bf16.msra.mxu0 0
      %2614 = vmatprep.subr.bf16.mxu0 0
      %2615 = vmatpush1.bf16.msra.mxu0 0
      %2616 = vmatprep.subr.bf16.mxu0 0
      %2617 = vmatpush1.bf16.msra.mxu0 %v2051
      %2618 = vmatprep.subr.bf16.mxu0 0
      %2619 = vmatpush2.bf16.msra.mxu0 0
      %2620 = vmatprep.subr.bf16.mxu0 0
      %2621 = vmatpush2.bf16.msra.mxu0 0
      %2622 = vmatprep.subr.bf16.mxu0 0
      %2623 = vmatpush2.bf16.msra.mxu0 0
      %2624 = vmatprep.subr.bf16.mxu0 0
      %2625 = vmatpush2.bf16.msra.mxu0 0
      %2626 = vmatprep.subr.bf16.mxu0 0
      %2627 = vmatpush2.bf16.msra.mxu0 0
      %2628 = vmatprep.subr.bf16.mxu0 0
      %2629 = vmatpush2.bf16.msra.mxu0 0
      %2630 = vmatprep.subr.bf16.mxu0 0
      %2631 = vmatpush2.bf16.msra.mxu0 0
      %2632 = vmatprep.subr.bf16.mxu0 0
      %2633 = vmatpush2.bf16.msra.mxu0 0
      %2634 = vmatprep.mubr.bf16.mxu0 0
      %2635 = vmatmul.mubr.bf16.gmra.mxu0 %v2600
      %v2636 = vpop.f32.mrf.mxu0
      %v2637 = vadd.f32 0.0, %v2636
      %v2638 = vpop.f32.mrf.mxu0
      %v2639 = vpop.f32.mrf.mxu0
      %v2640 = vadd.f32 0.0, %v2639
      %v2641 = vpop.f32.mrf.mxu0
      %2642 = vdwg.mxu0
      %v2643 = vpack.c.bf16 %v1824, %v1820
      %v2644 = vpack.c.bf16 %v1834, %v1830
      %v2645 = vpack.c.bf16 %v1844, %v1840
      %v2646 = vpack.c.bf16 %v1854, %v1850
      %v2647 = vpack.c.bf16 %v1864, %v1860
      %v2648 = vpack.c.bf16 %v1907, %v1903
      %v2649 = vpack.c.bf16 %v1917, %v1913
      %v2650 = vpack.c.bf16 %v1927, %v1923
      %v2651 = vpack.c.bf16 %v1937, %v1933
      %v2652 = vpack.c.bf16 %v1947, %v1943
      %v2653 = vpack.c.bf16 %v1990, %v1986
      %v2654 = vpack.c.bf16 %v2000, %v1996
      %v2655 = vpack.c.bf16 %v2010, %v2006
      %v2656 = vpack.c.bf16 %v2020, %v2016
      %v2657 = vpack.c.bf16 %v2030, %v2026
      %2658 = vmatprep.subr.bf16.mxu0 0
      %2659 = vmatpush1.bf16.xpose.msra.mxu0 0
      %2660 = vmatprep.subr.bf16.mxu0 0
      %2661 = vmatpush1.bf16.xpose.msra.mxu0 0
      %2662 = vmatprep.subr.bf16.mxu0 0
      %2663 = vmatpush1.bf16.xpose.msra.mxu0 0
      %2664 = vmatprep.subr.bf16.mxu0 0
      %2665 = vmatpush1.bf16.xpose.msra.mxu0 0
      %2666 = vmatprep.subr.bf16.mxu0 0
      %2667 = vmatpush1.bf16.xpose.msra.mxu0 0
      %2668 = vmatprep.subr.bf16.mxu0 0
      %2669 = vmatpush1.bf16.xpose.msra.mxu0 0
      %2670 = vmatprep.subr.bf16.mxu0 0
      %2671 = vmatpush1.bf16.xpose.msra.mxu0 0
      %2672 = vmatprep.subr.bf16.mxu0 0
      %2673 = vmatpush1.bf16.xpose.msra.mxu0 %v2648
      %2674 = vmatprep.subr.bf16.mxu0 0
      %2675 = vmatpush2.bf16.xpose.msra.mxu0 0
      %2676 = vmatprep.subr.bf16.mxu0 0
      %2677 = vmatpush2.bf16.xpose.msra.mxu0 0
      %2678 = vmatprep.subr.bf16.mxu0 0
      %2679 = vmatpush2.bf16.xpose.msra.mxu0 0
      %2680 = vmatprep.subr.bf16.mxu0 0
      %2681 = vmatpush2.bf16.xpose.msra.mxu0 0
      %2682 = vmatprep.subr.bf16.mxu0 0
      %2683 = vmatpush2.bf16.xpose.msra.mxu0 0
      %2684 = vmatprep.subr.bf16.mxu0 0
      %2685 = vmatpush2.bf16.xpose.msra.mxu0 0
      %2686 = vmatprep.subr.bf16.mxu0 0
      %2687 = vmatpush2.bf16.xpose.msra.mxu0 0
      %2688 = vmatprep.subr.bf16.mxu0 0
      %2689 = vmatpush2.bf16.xpose.msra.mxu0 0
      %2690 = vmatprep.mubr.bf16.mxu0 0
      %2691 = vmatmul.mubr.bf16.gmra.mxu0 %v2643
      %v2692 = vpop.f32.mrf.mxu0
      %v2693 = vadd.f32 0.0, %v2692
      %v2694 = vpop.f32.mrf.mxu0
      %v2695 = vpop.f32.mrf.mxu0
      %v2696 = vadd.f32 0.0, %v2695
      %v2697 = vpop.f32.mrf.mxu0
      %2698 = vdwg.mxu0
      %2699 = vmatprep.subr.bf16.mxu0 0
      %2700 = vmatpush1.bf16.xpose.msra.mxu0 0
      %2701 = vmatprep.subr.bf16.mxu0 0
      %2702 = vmatpush1.bf16.xpose.msra.mxu0 0
      %2703 = vmatprep.subr.bf16.mxu0 0
      %2704 = vmatpush1.bf16.xpose.msra.mxu0 0
      %2705 = vmatprep.subr.bf16.mxu0 0
      %2706 = vmatpush1.bf16.xpose.msra.mxu0 0
      %2707 = vmatprep.subr.bf16.mxu0 0
      %2708 = vmatpush1.bf16.xpose.msra.mxu0 0
      %2709 = vmatprep.subr.bf16.mxu0 0
      %2710 = vmatpush1.bf16.xpose.msra.mxu0 0
      %2711 = vmatprep.subr.bf16.mxu0 0
      %2712 = vmatpush1.bf16.xpose.msra.mxu0 0
      %2713 = vmatprep.subr.bf16.mxu0 0
      %2714 = vmatpush1.bf16.xpose.msra.mxu0 %v2649
      %2715 = vmatprep.subr.bf16.mxu0 0
      %2716 = vmatpush2.bf16.xpose.msra.mxu0 0
      %2717 = vmatprep.subr.bf16.mxu0 0
      %2718 = vmatpush2.bf16.xpose.msra.mxu0 0
      %2719 = vmatprep.subr.bf16.mxu0 0
      %2720 = vmatpush2.bf16.xpose.msra.mxu0 0
      %2721 = vmatprep.subr.bf16.mxu0 0
      %2722 = vmatpush2.bf16.xpose.msra.mxu0 0
      %2723 = vmatprep.subr.bf16.mxu0 0
      %2724 = vmatpush2.bf16.xpose.msra.mxu0 0
      %2725 = vmatprep.subr.bf16.mxu0 0
      %2726 = vmatpush2.bf16.xpose.msra.mxu0 0
      %2727 = vmatprep.subr.bf16.mxu0 0
      %2728 = vmatpush2.bf16.xpose.msra.mxu0 0
      %2729 = vmatprep.subr.bf16.mxu0 0
      %2730 = vmatpush2.bf16.xpose.msra.mxu0 0
      %2731 = vmatprep.mubr.bf16.mxu0 0
      %2732 = vmatmul.mubr.bf16.gmra.mxu0 %v2644
      %v2733 = vpop.f32.mrf.mxu0
      %v2734 = vadd.f32 0.0, %v2733
      %v2735 = vpop.f32.mrf.mxu0
      %v2736 = vpop.f32.mrf.mxu0
      %v2737 = vadd.f32 0.0, %v2736
      %v2738 = vpop.f32.mrf.mxu0
      %2739 = vdwg.mxu0
      %2740 = vmatprep.subr.bf16.mxu0 0
      %2741 = vmatpush1.bf16.xpose.msra.mxu0 0
      %2742 = vmatprep.subr.bf16.mxu0 0
      %2743 = vmatpush1.bf16.xpose.msra.mxu0 0
      %2744 = vmatprep.subr.bf16.mxu0 0
      %2745 = vmatpush1.bf16.xpose.msra.mxu0 0
      %2746 = vmatprep.subr.bf16.mxu0 0
      %2747 = vmatpush1.bf16.xpose.msra.mxu0 0
      %2748 = vmatprep.subr.bf16.mxu0 0
      %2749 = vmatpush1.bf16.xpose.msra.mxu0 0
      %2750 = vmatprep.subr.bf16.mxu0 0
      %2751 = vmatpush1.bf16.xpose.msra.mxu0 0
      %2752 = vmatprep.subr.bf16.mxu0 0
      %2753 = vmatpush1.bf16.xpose.msra.mxu0 0
      %2754 = vmatprep.subr.bf16.mxu0 0
      %2755 = vmatpush1.bf16.xpose.msra.mxu0 %v2650
      %2756 = vmatprep.subr.bf16.mxu0 0
      %2757 = vmatpush2.bf16.xpose.msra.mxu0 0
      %2758 = vmatprep.subr.bf16.mxu0 0
      %2759 = vmatpush2.bf16.xpose.msra.mxu0 0
      %2760 = vmatprep.subr.bf16.mxu0 0
      %2761 = vmatpush2.bf16.xpose.msra.mxu0 0
      %2762 = vmatprep.subr.bf16.mxu0 0
      %2763 = vmatpush2.bf16.xpose.msra.mxu0 0
      %2764 = vmatprep.subr.bf16.mxu0 0
      %2765 = vmatpush2.bf16.xpose.msra.mxu0 0
      %2766 = vmatprep.subr.bf16.mxu0 0
      %2767 = vmatpush2.bf16.xpose.msra.mxu0 0
      %2768 = vmatprep.subr.bf16.mxu0 0
      %2769 = vmatpush2.bf16.xpose.msra.mxu0 0
      %2770 = vmatprep.subr.bf16.mxu0 0
      %2771 = vmatpush2.bf16.xpose.msra.mxu0 0
      %2772 = vmatprep.mubr.bf16.mxu0 0
      %2773 = vmatmul.mubr.bf16.gmra.mxu0 %v2645
      %v2774 = vpop.f32.mrf.mxu0
      %v2775 = vadd.f32 0.0, %v2774
      %v2776 = vpop.f32.mrf.mxu0
      %v2777 = vpop.f32.mrf.mxu0
      %v2778 = vadd.f32 0.0, %v2777
      %v2779 = vpop.f32.mrf.mxu0
      %2780 = vdwg.mxu0
      %2781 = vmatprep.subr.bf16.mxu0 0
      %2782 = vmatpush1.bf16.xpose.msra.mxu0 0
      %2783 = vmatprep.subr.bf16.mxu0 0
      %2784 = vmatpush1.bf16.xpose.msra.mxu0 0
      %2785 = vmatprep.subr.bf16.mxu0 0
      %2786 = vmatpush1.bf16.xpose.msra.mxu0 0
      %2787 = vmatprep.subr.bf16.mxu0 0
      %2788 = vmatpush1.bf16.xpose.msra.mxu0 0
      %2789 = vmatprep.subr.bf16.mxu0 0
      %2790 = vmatpush1.bf16.xpose.msra.mxu0 0
      %2791 = vmatprep.subr.bf16.mxu0 0
      %2792 = vmatpush1.bf16.xpose.msra.mxu0 0
      %2793 = vmatprep.subr.bf16.mxu0 0
      %2794 = vmatpush1.bf16.xpose.msra.mxu0 0
      %2795 = vmatprep.subr.bf16.mxu0 0
      %2796 = vmatpush1.bf16.xpose.msra.mxu0 %v2651
      %2797 = vmatprep.subr.bf16.mxu0 0
      %2798 = vmatpush2.bf16.xpose.msra.mxu0 0
      %2799 = vmatprep.subr.bf16.mxu0 0
      %2800 = vmatpush2.bf16.xpose.msra.mxu0 0
      %2801 = vmatprep.subr.bf16.mxu0 0
      %2802 = vmatpush2.bf16.xpose.msra.mxu0 0
      %2803 = vmatprep.subr.bf16.mxu0 0
      %2804 = vmatpush2.bf16.xpose.msra.mxu0 0
      %2805 = vmatprep.subr.bf16.mxu0 0
      %2806 = vmatpush2.bf16.xpose.msra.mxu0 0
      %2807 = vmatprep.subr.bf16.mxu0 0
      %2808 = vmatpush2.bf16.xpose.msra.mxu0 0
      %2809 = vmatprep.subr.bf16.mxu0 0
      %2810 = vmatpush2.bf16.xpose.msra.mxu0 0
      %2811 = vmatprep.subr.bf16.mxu0 0
      %2812 = vmatpush2.bf16.xpose.msra.mxu0 0
      %2813 = vmatprep.mubr.bf16.mxu0 0
      %2814 = vmatmul.mubr.bf16.gmra.mxu0 %v2646
      %v2815 = vpop.f32.mrf.mxu0
      %v2816 = vadd.f32 0.0, %v2815
      %v2817 = vpop.f32.mrf.mxu0
      %v2818 = vpop.f32.mrf.mxu0
      %v2819 = vadd.f32 0.0, %v2818
      %v2820 = vpop.f32.mrf.mxu0
      %2821 = vdwg.mxu0
      %2822 = vmatprep.subr.bf16.mxu0 0
      %2823 = vmatpush1.bf16.xpose.msra.mxu0 0
      %2824 = vmatprep.subr.bf16.mxu0 0
      %2825 = vmatpush1.bf16.xpose.msra.mxu0 0
      %2826 = vmatprep.subr.bf16.mxu0 0
      %2827 = vmatpush1.bf16.xpose.msra.mxu0 0
      %2828 = vmatprep.subr.bf16.mxu0 0
      %2829 = vmatpush1.bf16.xpose.msra.mxu0 0
      %2830 = vmatprep.subr.bf16.mxu0 0
      %2831 = vmatpush1.bf16.xpose.msra.mxu0 0
      %2832 = vmatprep.subr.bf16.mxu0 0
      %2833 = vmatpush1.bf16.xpose.msra.mxu0 0
      %2834 = vmatprep.subr.bf16.mxu0 0
      %2835 = vmatpush1.bf16.xpose.msra.mxu0 0
      %2836 = vmatprep.subr.bf16.mxu0 0
      %2837 = vmatpush1.bf16.xpose.msra.mxu0 %v2652
      %2838 = vmatprep.subr.bf16.mxu0 0
      %2839 = vmatpush2.bf16.xpose.msra.mxu0 0
      %2840 = vmatprep.subr.bf16.mxu0 0
      %2841 = vmatpush2.bf16.xpose.msra.mxu0 0
      %2842 = vmatprep.subr.bf16.mxu0 0
      %2843 = vmatpush2.bf16.xpose.msra.mxu0 0
      %2844 = vmatprep.subr.bf16.mxu0 0
      %2845 = vmatpush2.bf16.xpose.msra.mxu0 0
      %2846 = vmatprep.subr.bf16.mxu0 0
      %2847 = vmatpush2.bf16.xpose.msra.mxu0 0
      %2848 = vmatprep.subr.bf16.mxu0 0
      %2849 = vmatpush2.bf16.xpose.msra.mxu0 0
      %2850 = vmatprep.subr.bf16.mxu0 0
      %2851 = vmatpush2.bf16.xpose.msra.mxu0 0
      %2852 = vmatprep.subr.bf16.mxu0 0
      %2853 = vmatpush2.bf16.xpose.msra.mxu0 0
      %2854 = vmatprep.mubr.bf16.mxu0 0
      %2855 = vmatmul.mubr.bf16.gmra.mxu0 %v2647
      %v2856 = vpop.f32.mrf.mxu0
      %v2857 = vadd.f32 0.0, %v2856
      %v2858 = vpop.f32.mrf.mxu0
      %v2859 = vpop.f32.mrf.mxu0
      %v2860 = vadd.f32 0.0, %v2859
      %v2861 = vpop.f32.mrf.mxu0
      %2862 = vdwg.mxu0
      %v2863 = vmul.f32 %v2693, 0.088388346
      %v2864 = vmul.f32 %v2696, 0.088388346
      %v2865 = vmul.f32 %v2734, 0.088388346
      %v2866 = vmul.f32 %v2737, 0.088388346
      %v2867 = vmul.f32 %v2775, 0.088388346
      %v2868 = vmul.f32 %v2778, 0.088388346
      %v2869 = vmul.f32 %v2816, 0.088388346
      %v2870 = vmul.f32 %v2819, 0.088388346
      %v2871 = vmul.f32 %v2857, 0.088388346
      %v2872 = vmul.f32 %v2860, 0.088388346
      %v2873 = vadd.f32 %v2863, %v2275
      %v2874 = vadd.f32 %v2864, %v2275
      %v2875 = vadd.f32 %v2865, %v2279
      %v2876 = vadd.f32 %v2866, %v2279
      %v2877 = vadd.f32 %v2867, %v2283
      %v2878 = vadd.f32 %v2868, %v2283
      %v2879 = vadd.f32 %v2869, %v2287
      %v2880 = vadd.f32 %v2870, %v2287
      %v2881 = vadd.f32 %v2871, %v2291
      %v2882 = vadd.f32 %v2872, %v2291
      %v2883 = vsel %vm2307, %v2873, -inf
      %2884 = vmax.xlane.f32.xlu0 %v2883
      %v2885 = vpop.xlane.xlu0 %2884
      %v2886 = vsel %vm2307, %v2874, -inf
      %2887 = vmax.xlane.f32.xlu0 %v2886
      %v2888 = vpop.xlane.xlu0 %2887
      %v2889 = vsel %vm2307, %v2875, -inf
      %2890 = vmax.xlane.f32.xlu0 %v2889
      %v2891 = vpop.xlane.xlu0 %2890
      %v2892 = vsel %vm2307, %v2876, -inf
      %2893 = vmax.xlane.f32.xlu0 %v2892
      %v2894 = vpop.xlane.xlu0 %2893
      %v2895 = vsel %vm2307, %v2877, -inf
      %2896 = vmax.xlane.f32.xlu0 %v2895
      %v2897 = vpop.xlane.xlu0 %2896
      %v2898 = vsel %vm2307, %v2878, -inf
      %2899 = vmax.xlane.f32.xlu0 %v2898
      %v2900 = vpop.xlane.xlu0 %2899
      %v2901 = vsel %vm2307, %v2879, -inf
      %2902 = vmax.xlane.f32.xlu0 %v2901
      %v2903 = vpop.xlane.xlu0 %2902
      %v2904 = vsel %vm2307, %v2880, -inf
      %2905 = vmax.xlane.f32.xlu0 %v2904
      %v2906 = vpop.xlane.xlu0 %2905
      %v2907 = vsel %vm2307, %v2881, -inf
      %2908 = vmax.xlane.f32.xlu0 %v2907
      %v2909 = vpop.xlane.xlu0 %2908
      %v2910 = vsel %vm2307, %v2882, -inf
      %2911 = vmax.xlane.f32.xlu0 %v2910
      %v2912 = vpop.xlane.xlu0 %2911
      %v2913 = vsub.f32 %v2873, %v2885
      %v2914 = vsub.f32 %v2874, %v2888
      %v2915 = vsub.f32 %v2875, %v2891
      %v2916 = vsub.f32 %v2876, %v2894
      %v2917 = vsub.f32 %v2877, %v2897
      %v2918 = vsub.f32 %v2878, %v2900
      %v2919 = vsub.f32 %v2879, %v2903
      %v2920 = vsub.f32 %v2880, %v2906
      %v2921 = vsub.f32 %v2881, %v2909
      %v2922 = vsub.f32 %v2882, %v2912
      %v2923 = vmul.f32 %v2913, 1.442695
      %v2924 = vpow.pop %v2923
      %v2925 = vmul.f32 %v2914, 1.442695
      %v2926 = vpow.pop %v2925
      %v2927 = vmul.f32 %v2915, 1.442695
      %v2928 = vpow.pop %v2927
      %v2929 = vmul.f32 %v2916, 1.442695
      %v2930 = vpow.pop %v2929
      %v2931 = vmul.f32 %v2917, 1.442695
      %v2932 = vpow.pop %v2931
      %v2933 = vmul.f32 %v2918, 1.442695
      %v2934 = vpow.pop %v2933
      %v2935 = vmul.f32 %v2919, 1.442695
      %v2936 = vpow.pop %v2935
      %v2937 = vmul.f32 %v2920, 1.442695
      %v2938 = vpow.pop %v2937
      %v2939 = vmul.f32 %v2921, 1.442695
      %v2940 = vpow.pop %v2939
      %v2941 = vmul.f32 %v2922, 1.442695
      %v2942 = vpow.pop %v2941
      %v2943 = vsel %vm2307, %v2924, 0.0
      %2944 = vadd.xlane.f32.xlu0 %v2943
      %v2945 = vpop.xlane.xlu0 %2944
      %v2946 = vsel %vm2307, %v2926, 0.0
      %2947 = vadd.xlane.f32.xlu0 %v2946
      %v2948 = vpop.xlane.xlu0 %2947
      %v2949 = vsel %vm2307, %v2928, 0.0
      %2950 = vadd.xlane.f32.xlu0 %v2949
      %v2951 = vpop.xlane.xlu0 %2950
      %v2952 = vsel %vm2307, %v2930, 0.0
      %2953 = vadd.xlane.f32.xlu0 %v2952
      %v2954 = vpop.xlane.xlu0 %2953
      %v2955 = vsel %vm2307, %v2932, 0.0
      %2956 = vadd.xlane.f32.xlu0 %v2955
      %v2957 = vpop.xlane.xlu0 %2956
      %v2958 = vsel %vm2307, %v2934, 0.0
      %2959 = vadd.xlane.f32.xlu0 %v2958
      %v2960 = vpop.xlane.xlu0 %2959
      %v2961 = vsel %vm2307, %v2936, 0.0
      %2962 = vadd.xlane.f32.xlu0 %v2961
      %v2963 = vpop.xlane.xlu0 %2962
      %v2964 = vsel %vm2307, %v2938, 0.0
      %2965 = vadd.xlane.f32.xlu0 %v2964
      %v2966 = vpop.xlane.xlu0 %2965
      %v2967 = vsel %vm2307, %v2940, 0.0
      %2968 = vadd.xlane.f32.xlu0 %v2967
      %v2969 = vpop.xlane.xlu0 %2968
      %v2970 = vsel %vm2307, %v2942, 0.0
      %2971 = vadd.xlane.f32.xlu0 %v2970
      %v2972 = vpop.xlane.xlu0 %2971
      %v2973 = vrcp.pop %v2945
      %v2974 = vrcp.pop %v2948
      %v2975 = vrcp.pop %v2951
      %v2976 = vrcp.pop %v2954
      %v2977 = vrcp.pop %v2957
      %v2978 = vrcp.pop %v2960
      %v2979 = vrcp.pop %v2963
      %v2980 = vrcp.pop %v2966
      %v2981 = vrcp.pop %v2969
      %v2982 = vrcp.pop %v2972
      %v2983 = vmul.f32 %v2924, %v2973
      %v2984 = vmul.f32 %v2926, %v2974
      %v2985 = vmul.f32 %v2928, %v2975
      %v2986 = vmul.f32 %v2930, %v2976
      %v2987 = vmul.f32 %v2932, %v2977
      %v2988 = vmul.f32 %v2934, %v2978
      %v2989 = vmul.f32 %v2936, %v2979
      %v2990 = vmul.f32 %v2938, %v2980
      %v2991 = vmul.f32 %v2940, %v2981
      %v2992 = vmul.f32 %v2942, %v2982
      %v2993 = vpack.c.bf16 %v2984, %v2983
      %v2994 = vpack.c.bf16 %v2986, %v2985
      %v2995 = vpack.c.bf16 %v2988, %v2987
      %v2996 = vpack.c.bf16 %v2990, %v2989
      %v2997 = vpack.c.bf16 %v2992, %v2991
      %v2999 = vsel %vm2307, %v2993, 0
      %3001 = vmatprep.subr.bf16.mxu0 0
      %3002 = vmatpush1.bf16.msra.mxu0 0
      %3003 = vmatprep.subr.bf16.mxu0 0
      %3004 = vmatpush1.bf16.msra.mxu0 0
      %3005 = vmatprep.subr.bf16.mxu0 0
      %3006 = vmatpush1.bf16.msra.mxu0 0
      %3007 = vmatprep.subr.bf16.mxu0 0
      %3008 = vmatpush1.bf16.msra.mxu0 0
      %3009 = vmatprep.subr.bf16.mxu0 0
      %3010 = vmatpush1.bf16.msra.mxu0 0
      %3011 = vmatprep.subr.bf16.mxu0 0
      %3012 = vmatpush1.bf16.msra.mxu0 0
      %3013 = vmatprep.subr.bf16.mxu0 0
      %3014 = vmatpush1.bf16.msra.mxu0 0
      %3015 = vmatprep.subr.bf16.mxu0 0
      %3016 = vmatpush1.bf16.msra.mxu0 %v2653
      %3017 = vmatprep.subr.bf16.mxu0 0
      %3018 = vmatpush2.bf16.msra.mxu0 0
      %3019 = vmatprep.subr.bf16.mxu0 0
      %3020 = vmatpush2.bf16.msra.mxu0 0
      %3021 = vmatprep.subr.bf16.mxu0 0
      %3022 = vmatpush2.bf16.msra.mxu0 0
      %3023 = vmatprep.subr.bf16.mxu0 0
      %3024 = vmatpush2.bf16.msra.mxu0 0
      %3025 = vmatprep.subr.bf16.mxu0 0
      %3026 = vmatpush2.bf16.msra.mxu0 0
      %3027 = vmatprep.subr.bf16.mxu0 0
      %3028 = vmatpush2.bf16.msra.mxu0 0
      %3029 = vmatprep.subr.bf16.mxu0 0
      %3030 = vmatpush2.bf16.msra.mxu0 0
      %3031 = vmatprep.subr.bf16.mxu0 0
      %3032 = vmatpush2.bf16.msra.mxu0 0
      %3033 = vmatprep.mubr.bf16.mxu0 0
      %3034 = vmatmul.mubr.bf16.gmra.mxu0 %v2999
      %v3035 = vpop.f32.mrf.mxu0
      %v3036 = vadd.f32 0.0, %v3035
      %v3037 = vpop.f32.mrf.mxu0
      %v3038 = vpop.f32.mrf.mxu0
      %v3039 = vadd.f32 0.0, %v3038
      %v3040 = vpop.f32.mrf.mxu0
      %3041 = vdwg.mxu0
      %v3043 = vsel %vm2307, %v2994, 0
      %3045 = vmatprep.subr.bf16.mxu0 0
      %3046 = vmatpush1.bf16.msra.mxu0 0
      %3047 = vmatprep.subr.bf16.mxu0 0
      %3048 = vmatpush1.bf16.msra.mxu0 0
      %3049 = vmatprep.subr.bf16.mxu0 0
      %3050 = vmatpush1.bf16.msra.mxu0 0
      %3051 = vmatprep.subr.bf16.mxu0 0
      %3052 = vmatpush1.bf16.msra.mxu0 0
      %3053 = vmatprep.subr.bf16.mxu0 0
      %3054 = vmatpush1.bf16.msra.mxu0 0
      %3055 = vmatprep.subr.bf16.mxu0 0
      %3056 = vmatpush1.bf16.msra.mxu0 0
      %3057 = vmatprep.subr.bf16.mxu0 0
      %3058 = vmatpush1.bf16.msra.mxu0 0
      %3059 = vmatprep.subr.bf16.mxu0 0
      %3060 = vmatpush1.bf16.msra.mxu0 %v2654
      %3061 = vmatprep.subr.bf16.mxu0 0
      %3062 = vmatpush2.bf16.msra.mxu0 0
      %3063 = vmatprep.subr.bf16.mxu0 0
      %3064 = vmatpush2.bf16.msra.mxu0 0
      %3065 = vmatprep.subr.bf16.mxu0 0
      %3066 = vmatpush2.bf16.msra.mxu0 0
      %3067 = vmatprep.subr.bf16.mxu0 0
      %3068 = vmatpush2.bf16.msra.mxu0 0
      %3069 = vmatprep.subr.bf16.mxu0 0
      %3070 = vmatpush2.bf16.msra.mxu0 0
      %3071 = vmatprep.subr.bf16.mxu0 0
      %3072 = vmatpush2.bf16.msra.mxu0 0
      %3073 = vmatprep.subr.bf16.mxu0 0
      %3074 = vmatpush2.bf16.msra.mxu0 0
      %3075 = vmatprep.subr.bf16.mxu0 0
      %3076 = vmatpush2.bf16.msra.mxu0 0
      %3077 = vmatprep.mubr.bf16.mxu0 0
      %3078 = vmatmul.mubr.bf16.gmra.mxu0 %v3043
      %v3079 = vpop.f32.mrf.mxu0
      %v3080 = vadd.f32 0.0, %v3079
      %v3081 = vpop.f32.mrf.mxu0
      %v3082 = vpop.f32.mrf.mxu0
      %v3083 = vadd.f32 0.0, %v3082
      %v3084 = vpop.f32.mrf.mxu0
      %3085 = vdwg.mxu0
      %v3087 = vsel %vm2307, %v2995, 0
      %3089 = vmatprep.subr.bf16.mxu0 0
      %3090 = vmatpush1.bf16.msra.mxu0 0
      %3091 = vmatprep.subr.bf16.mxu0 0
      %3092 = vmatpush1.bf16.msra.mxu0 0
      %3093 = vmatprep.subr.bf16.mxu0 0
      %3094 = vmatpush1.bf16.msra.mxu0 0
      %3095 = vmatprep.subr.bf16.mxu0 0
      %3096 = vmatpush1.bf16.msra.mxu0 0
      %3097 = vmatprep.subr.bf16.mxu0 0
      %3098 = vmatpush1.bf16.msra.mxu0 0
      %3099 = vmatprep.subr.bf16.mxu0 0
      %3100 = vmatpush1.bf16.msra.mxu0 0
      %3101 = vmatprep.subr.bf16.mxu0 0
      %3102 = vmatpush1.bf16.msra.mxu0 0
      %3103 = vmatprep.subr.bf16.mxu0 0
      %3104 = vmatpush1.bf16.msra.mxu0 %v2655
      %3105 = vmatprep.subr.bf16.mxu0 0
      %3106 = vmatpush2.bf16.msra.mxu0 0
      %3107 = vmatprep.subr.bf16.mxu0 0
      %3108 = vmatpush2.bf16.msra.mxu0 0
      %3109 = vmatprep.subr.bf16.mxu0 0
      %3110 = vmatpush2.bf16.msra.mxu0 0
      %3111 = vmatprep.subr.bf16.mxu0 0
      %3112 = vmatpush2.bf16.msra.mxu0 0
      %3113 = vmatprep.subr.bf16.mxu0 0
      %3114 = vmatpush2.bf16.msra.mxu0 0
      %3115 = vmatprep.subr.bf16.mxu0 0
      %3116 = vmatpush2.bf16.msra.mxu0 0
      %3117 = vmatprep.subr.bf16.mxu0 0
      %3118 = vmatpush2.bf16.msra.mxu0 0
      %3119 = vmatprep.subr.bf16.mxu0 0
      %3120 = vmatpush2.bf16.msra.mxu0 0
      %3121 = vmatprep.mubr.bf16.mxu0 0
      %3122 = vmatmul.mubr.bf16.gmra.mxu0 %v3087
      %v3123 = vpop.f32.mrf.mxu0
      %v3124 = vadd.f32 0.0, %v3123
      %v3125 = vpop.f32.mrf.mxu0
      %v3126 = vpop.f32.mrf.mxu0
      %v3127 = vadd.f32 0.0, %v3126
      %v3128 = vpop.f32.mrf.mxu0
      %3129 = vdwg.mxu0
      %v3131 = vsel %vm2307, %v2996, 0
      %3133 = vmatprep.subr.bf16.mxu0 0
      %3134 = vmatpush1.bf16.msra.mxu0 0
      %3135 = vmatprep.subr.bf16.mxu0 0
      %3136 = vmatpush1.bf16.msra.mxu0 0
      %3137 = vmatprep.subr.bf16.mxu0 0
      %3138 = vmatpush1.bf16.msra.mxu0 0
      %3139 = vmatprep.subr.bf16.mxu0 0
      %3140 = vmatpush1.bf16.msra.mxu0 0
      %3141 = vmatprep.subr.bf16.mxu0 0
      %3142 = vmatpush1.bf16.msra.mxu0 0
      %3143 = vmatprep.subr.bf16.mxu0 0
      %3144 = vmatpush1.bf16.msra.mxu0 0
      %3145 = vmatprep.subr.bf16.mxu0 0
      %3146 = vmatpush1.bf16.msra.mxu0 0
      %3147 = vmatprep.subr.bf16.mxu0 0
      %3148 = vmatpush1.bf16.msra.mxu0 %v2656
      %3149 = vmatprep.subr.bf16.mxu0 0
      %3150 = vmatpush2.bf16.msra.mxu0 0
      %3151 = vmatprep.subr.bf16.mxu0 0
      %3152 = vmatpush2.bf16.msra.mxu0 0
      %3153 = vmatprep.subr.bf16.mxu0 0
      %3154 = vmatpush2.bf16.msra.mxu0 0
      %3155 = vmatprep.subr.bf16.mxu0 0
      %3156 = vmatpush2.bf16.msra.mxu0 0
      %3157 = vmatprep.subr.bf16.mxu0 0
      %3158 = vmatpush2.bf16.msra.mxu0 0
      %3159 = vmatprep.subr.bf16.mxu0 0
      %3160 = vmatpush2.bf16.msra.mxu0 0
      %3161 = vmatprep.subr.bf16.mxu0 0
      %3162 = vmatpush2.bf16.msra.mxu0 0
      %3163 = vmatprep.subr.bf16.mxu0 0
      %3164 = vmatpush2.bf16.msra.mxu0 0
      %3165 = vmatprep.mubr.bf16.mxu0 0
      %3166 = vmatmul.mubr.bf16.gmra.mxu0 %v3131
      %v3167 = vpop.f32.mrf.mxu0
      %v3168 = vadd.f32 0.0, %v3167
      %v3169 = vpop.f32.mrf.mxu0
      %v3170 = vpop.f32.mrf.mxu0
      %v3171 = vadd.f32 0.0, %v3170
      %v3172 = vpop.f32.mrf.mxu0
      %3173 = vdwg.mxu0
      %v3175 = vsel %vm2307, %v2997, 0
      %3177 = vmatprep.subr.bf16.mxu0 0
      %3178 = vmatpush1.bf16.msra.mxu0 0
      %3179 = vmatprep.subr.bf16.mxu0 0
      %3180 = vmatpush1.bf16.msra.mxu0 0
      %3181 = vmatprep.subr.bf16.mxu0 0
      %3182 = vmatpush1.bf16.msra.mxu0 0
      %3183 = vmatprep.subr.bf16.mxu0 0
      %3184 = vmatpush1.bf16.msra.mxu0 0
      %3185 = vmatprep.subr.bf16.mxu0 0
      %3186 = vmatpush1.bf16.msra.mxu0 0
      %3187 = vmatprep.subr.bf16.mxu0 0
      %3188 = vmatpush1.bf16.msra.mxu0 0
      %3189 = vmatprep.subr.bf16.mxu0 0
      %3190 = vmatpush1.bf16.msra.mxu0 0
      %3191 = vmatprep.subr.bf16.mxu0 0
      %3192 = vmatpush1.bf16.msra.mxu0 %v2657
      %3193 = vmatprep.subr.bf16.mxu0 0
      %3194 = vmatpush2.bf16.msra.mxu0 0
      %3195 = vmatprep.subr.bf16.mxu0 0
      %3196 = vmatpush2.bf16.msra.mxu0 0
      %3197 = vmatprep.subr.bf16.mxu0 0
      %3198 = vmatpush2.bf16.msra.mxu0 0
      %3199 = vmatprep.subr.bf16.mxu0 0
      %3200 = vmatpush2.bf16.msra.mxu0 0
      %3201 = vmatprep.subr.bf16.mxu0 0
      %3202 = vmatpush2.bf16.msra.mxu0 0
      %3203 = vmatprep.subr.bf16.mxu0 0
      %3204 = vmatpush2.bf16.msra.mxu0 0
      %3205 = vmatprep.subr.bf16.mxu0 0
      %3206 = vmatpush2.bf16.msra.mxu0 0
      %3207 = vmatprep.subr.bf16.mxu0 0
      %3208 = vmatpush2.bf16.msra.mxu0 0
      %3209 = vmatprep.mubr.bf16.mxu0 0
      %3210 = vmatmul.mubr.bf16.gmra.mxu0 %v3175
      %v3211 = vpop.f32.mrf.mxu0
      %v3212 = vadd.f32 0.0, %v3211
      %v3213 = vpop.f32.mrf.mxu0
      %v3214 = vpop.f32.mrf.mxu0
      %v3215 = vadd.f32 0.0, %v3214
      %v3216 = vpop.f32.mrf.mxu0
      %3217 = vdwg.mxu0
      %v3218 = vpack.c.bf16 %v2464, %v2461
      %v3219 = vpack.c.bf16 %v3039, %v3036
      %v3220 = vpack.c.bf16 %v2508, %v2505
      %v3221 = vpack.c.bf16 %v3083, %v3080
      %v3222 = vpack.c.bf16 %v2552, %v2549
      %v3223 = vpack.c.bf16 %v3127, %v3124
      %v3224 = vpack.c.bf16 %v2596, %v2593
      %v3225 = vpack.c.bf16 %v3171, %v3168
      %v3226 = vpack.c.bf16 %v2640, %v2637
      %v3227 = vpack.c.bf16 %v3215, %v3212
      %v3228 = vld [vmem:[%s832] sm:$0xff]
      %v3229 = vld [vmem:[%s832 + $0x8] sm:$0xff]
      %v3230 = vld [vmem:[%s832 + $0x10] sm:$0xff]
      %v3231 = vld [vmem:[%s832 + $0x18] sm:$0xff]
      %v3232 = vld [vmem:[%s832 + $0x20] sm:$0xff]
      %v3233 = vld [vmem:[%s832 + $0x28] sm:$0xff]
      %v3234 = vld [vmem:[%s832 + $0x30] sm:$0xff]
      %v3235 = vld [vmem:[%s832 + $0x38] sm:$0xff]
      %v3236 = vld [vmem:[%s832 + $0x40] sm:$0xff]
      %v3237 = vld [vmem:[%s832 + $0x48] sm:$0xff]
      %v3238 = vld [vmem:[%s832 + $0x50] sm:$0xff]
      %v3239 = vld [vmem:[%s832 + $0x58] sm:$0xff]
      %v3240 = vld [vmem:[%s832 + $0x60] sm:$0xff]
      %v3241 = vld [vmem:[%s832 + $0x68] sm:$0xff]
      %v3242 = vld [vmem:[%s832 + $0x70] sm:$0xff]
      %v3243 = vld [vmem:[%s832 + $0x78] sm:$0xff]
      %v3244 = vld [vmem:[%s832 + $0x80] sm:$0xff]
      %v3245 = vld [vmem:[%s832 + $0x88] sm:$0xff]
      %v3246 = vld [vmem:[%s832 + $0x90] sm:$0xff]
      %v3247 = vld [vmem:[%s832 + $0x98] sm:$0xff]
      %v3248 = vld [vmem:[%s832 + $0xa0] sm:$0xff]
      %v3249 = vld [vmem:[%s832 + $0xa8] sm:$0xff]
      %v3250 = vld [vmem:[%s832 + $0xb0] sm:$0xff]
      %v3251 = vld [vmem:[%s832 + $0xb8] sm:$0xff]
      %v3252 = vld [vmem:[%s832 + $0xc0] sm:$0xff]
      %v3253 = vld [vmem:[%s832 + $0xc8] sm:$0xff]
      %v3254 = vld [vmem:[%s832 + $0xd0] sm:$0xff]
      %v3255 = vld [vmem:[%s832 + $0xd8] sm:$0xff]
      %v3256 = vld [vmem:[%s832 + $0xe0] sm:$0xff]
      %v3257 = vld [vmem:[%s832 + $0xe8] sm:$0xff]
      %v3258 = vld [vmem:[%s832 + $0xf0] sm:$0xff]
      %v3259 = vld [vmem:[%s832 + $0xf8] sm:$0xff]
      %v3260 = vld [vmem:[%s836] sm:$0x3]
      %v3262 = vlaneseq
      %v3263 = vshrl.u32 %v3262, 7
      %v3264 = vsub.s32 0, %v3263
      %v3265 = vrot.slane %v3260, %v3264
      %v3266 = vlaneseq
      %v3267 = vshrl.u32 %v3266, 7
      %v3268 = vsub.s32 1, %v3267
      %v3269 = vrot.slane %v3260, %v3268
      %v3304 = vunpack.c.l.b16 %v3228
      %v3305 = vunpack.c.h.b16 %v3228
      %v3306 = vunpack.c.l.b16 %v3229
      %v3307 = vunpack.c.h.b16 %v3229
      %v3308 = vunpack.c.l.b16 %v3230
      %v3309 = vunpack.c.h.b16 %v3230
      %v3310 = vunpack.c.l.b16 %v3231
      %v3311 = vunpack.c.h.b16 %v3231
      %v3312 = vunpack.c.l.b16 %v3232
      %v3313 = vunpack.c.h.b16 %v3232
      %v3314 = vunpack.c.l.b16 %v3233
      %v3315 = vunpack.c.h.b16 %v3233
      %v3316 = vunpack.c.l.b16 %v3234
      %v3317 = vunpack.c.h.b16 %v3234
      %v3318 = vunpack.c.l.b16 %v3235
      %v3319 = vunpack.c.h.b16 %v3235
      %v3320 = vunpack.c.l.b16 %v3236
      %v3321 = vunpack.c.h.b16 %v3236
      %v3322 = vunpack.c.l.b16 %v3237
      %v3323 = vunpack.c.h.b16 %v3237
      %v3324 = vunpack.c.l.b16 %v3238
      %v3325 = vunpack.c.h.b16 %v3238
      %v3326 = vunpack.c.l.b16 %v3239
      %v3327 = vunpack.c.h.b16 %v3239
      %v3328 = vunpack.c.l.b16 %v3240
      %v3329 = vunpack.c.h.b16 %v3240
      %v3330 = vunpack.c.l.b16 %v3241
      %v3331 = vunpack.c.h.b16 %v3241
      %v3332 = vunpack.c.l.b16 %v3242
      %v3333 = vunpack.c.h.b16 %v3242
      %v3334 = vunpack.c.l.b16 %v3243
      %v3335 = vunpack.c.h.b16 %v3243
      %v3336 = vunpack.c.l.b16 %v3244
      %v3337 = vunpack.c.h.b16 %v3244
      %v3338 = vunpack.c.l.b16 %v3245
      %v3339 = vunpack.c.h.b16 %v3245
      %v3340 = vunpack.c.l.b16 %v3246
      %v3341 = vunpack.c.h.b16 %v3246
      %v3342 = vunpack.c.l.b16 %v3247
      %v3343 = vunpack.c.h.b16 %v3247
      %v3344 = vunpack.c.l.b16 %v3248
      %v3345 = vunpack.c.h.b16 %v3248
      %v3346 = vunpack.c.l.b16 %v3249
      %v3347 = vunpack.c.h.b16 %v3249
      %v3348 = vunpack.c.l.b16 %v3250
      %v3349 = vunpack.c.h.b16 %v3250
      %v3350 = vunpack.c.l.b16 %v3251
      %v3351 = vunpack.c.h.b16 %v3251
      %v3352 = vunpack.c.l.b16 %v3252
      %v3353 = vunpack.c.h.b16 %v3252
      %v3354 = vunpack.c.l.b16 %v3253
      %v3355 = vunpack.c.h.b16 %v3253
      %v3356 = vunpack.c.l.b16 %v3254
      %v3357 = vunpack.c.h.b16 %v3254
      %v3358 = vunpack.c.l.b16 %v3255
      %v3359 = vunpack.c.h.b16 %v3255
      %v3360 = vunpack.c.l.b16 %v3256
      %v3361 = vunpack.c.h.b16 %v3256
      %v3362 = vunpack.c.l.b16 %v3257
      %v3363 = vunpack.c.h.b16 %v3257
      %v3364 = vunpack.c.l.b16 %v3258
      %v3365 = vunpack.c.h.b16 %v3258
      %v3366 = vunpack.c.l.b16 %v3259
      %v3367 = vunpack.c.h.b16 %v3259
      %v3368 = vpack.c.b16 %v3306, %v3304
      %v3369 = vpack.c.b16 %v3307, %v3305
      %v3370 = vpack.c.b16 %v3310, %v3308
      %v3371 = vpack.c.b16 %v3311, %v3309
      %v3372 = vpack.c.b16 %v3314, %v3312
      %v3373 = vpack.c.b16 %v3315, %v3313
      %v3374 = vpack.c.b16 %v3318, %v3316
      %v3375 = vpack.c.b16 %v3319, %v3317
      %v3376 = vpack.c.b16 %v3322, %v3320
      %v3377 = vpack.c.b16 %v3323, %v3321
      %v3378 = vpack.c.b16 %v3326, %v3324
      %v3379 = vpack.c.b16 %v3327, %v3325
      %v3380 = vpack.c.b16 %v3330, %v3328
      %v3381 = vpack.c.b16 %v3331, %v3329
      %v3382 = vpack.c.b16 %v3334, %v3332
      %v3383 = vpack.c.b16 %v3335, %v3333
      %v3384 = vpack.c.b16 %v3338, %v3336
      %v3385 = vpack.c.b16 %v3339, %v3337
      %v3386 = vpack.c.b16 %v3342, %v3340
      %v3387 = vpack.c.b16 %v3343, %v3341
      %v3388 = vpack.c.b16 %v3346, %v3344
      %v3389 = vpack.c.b16 %v3347, %v3345
      %v3390 = vpack.c.b16 %v3350, %v3348
      %v3391 = vpack.c.b16 %v3351, %v3349
      %v3392 = vpack.c.b16 %v3354, %v3352
      %v3393 = vpack.c.b16 %v3355, %v3353
      %v3394 = vpack.c.b16 %v3358, %v3356
      %v3395 = vpack.c.b16 %v3359, %v3357
      %v3396 = vpack.c.b16 %v3362, %v3360
      %v3397 = vpack.c.b16 %v3363, %v3361
      %v3398 = vpack.c.b16 %v3366, %v3364
      %v3399 = vpack.c.b16 %v3367, %v3365
      %3432 = vmatprep.subr.bf16.mxu0 %v3383
      %3433 = vmatpush1.bf16.msra.mxu0 %v3382
      %3434 = vmatprep.subr.bf16.mxu0 %v3381
      %3435 = vmatpush1.bf16.msra.mxu0 %v3380
      %3436 = vmatprep.subr.bf16.mxu0 %v3379
      %3437 = vmatpush1.bf16.msra.mxu0 %v3378
      %3438 = vmatprep.subr.bf16.mxu0 %v3377
      %3439 = vmatpush1.bf16.msra.mxu0 %v3376
      %3440 = vmatprep.subr.bf16.mxu0 %v3375
      %3441 = vmatpush1.bf16.msra.mxu0 %v3374
      %3442 = vmatprep.subr.bf16.mxu0 %v3373
      %3443 = vmatpush1.bf16.msra.mxu0 %v3372
      %3444 = vmatprep.subr.bf16.mxu0 %v3371
      %3445 = vmatpush1.bf16.msra.mxu0 %v3370
      %3446 = vmatprep.subr.bf16.mxu0 %v3369
      %3447 = vmatpush1.bf16.msra.mxu0 %v3368
      %3448 = vmatprep.subr.bf16.mxu0 %v3399
      %3449 = vmatpush2.bf16.msra.mxu0 %v3398
      %3450 = vmatprep.subr.bf16.mxu0 %v3397
      %3451 = vmatpush2.bf16.msra.mxu0 %v3396
      %3452 = vmatprep.subr.bf16.mxu0 %v3395
      %3453 = vmatpush2.bf16.msra.mxu0 %v3394
      %3454 = vmatprep.subr.bf16.mxu0 %v3393
      %3455 = vmatpush2.bf16.msra.mxu0 %v3392
      %3456 = vmatprep.subr.bf16.mxu0 %v3391
      %3457 = vmatpush2.bf16.msra.mxu0 %v3390
      %3458 = vmatprep.subr.bf16.mxu0 %v3389
      %3459 = vmatpush2.bf16.msra.mxu0 %v3388
      %3460 = vmatprep.subr.bf16.mxu0 %v3387
      %3461 = vmatpush2.bf16.msra.mxu0 %v3386
      %3462 = vmatprep.subr.bf16.mxu0 %v3385
      %3463 = vmatpush2.bf16.msra.mxu0 %v3384
      %3464 = vmatprep.mubr.bf16.mxu0 %v3219
      %3465 = vmatmul.mubr.bf16.gmra.mxu0 %v3218
      %v3466 = vpop.f32.mrf.mxu0
      %v3467 = vadd.f32 %v3265, %v3466
      %v3468 = vpop.f32.mrf.mxu0
      %v3469 = vadd.f32 %v3269, %v3468
      %v3470 = vpop.f32.mrf.mxu0
      %v3471 = vadd.f32 %v3265, %v3470
      %v3472 = vpop.f32.mrf.mxu0
      %v3473 = vadd.f32 %v3269, %v3472
      %3474 = vmatprep.mubr.bf16.mxu0 %v3221
      %3475 = vmatmul.mubr.bf16.gmra.mxu0 %v3220
      %v3476 = vpop.f32.mrf.mxu0
      %v3477 = vadd.f32 %v3265, %v3476
      %v3478 = vpop.f32.mrf.mxu0
      %v3479 = vadd.f32 %v3269, %v3478
      %v3480 = vpop.f32.mrf.mxu0
      %v3481 = vadd.f32 %v3265, %v3480
      %v3482 = vpop.f32.mrf.mxu0
      %v3483 = vadd.f32 %v3269, %v3482
      %3484 = vmatprep.mubr.bf16.mxu0 %v3223
      %3485 = vmatmul.mubr.bf16.gmra.mxu0 %v3222
      %v3486 = vpop.f32.mrf.mxu0
      %v3487 = vadd.f32 %v3265, %v3486
      %v3488 = vpop.f32.mrf.mxu0
      %v3489 = vadd.f32 %v3269, %v3488
      %v3490 = vpop.f32.mrf.mxu0
      %v3491 = vadd.f32 %v3265, %v3490
      %v3492 = vpop.f32.mrf.mxu0
      %v3493 = vadd.f32 %v3269, %v3492
      %3494 = vmatprep.mubr.bf16.mxu0 %v3225
      %3495 = vmatmul.mubr.bf16.gmra.mxu0 %v3224
      %v3496 = vpop.f32.mrf.mxu0
      %v3497 = vadd.f32 %v3265, %v3496
      %v3498 = vpop.f32.mrf.mxu0
      %v3499 = vadd.f32 %v3269, %v3498
      %v3500 = vpop.f32.mrf.mxu0
      %v3501 = vadd.f32 %v3265, %v3500
      %v3502 = vpop.f32.mrf.mxu0
      %v3503 = vadd.f32 %v3269, %v3502
      %3504 = vmatprep.mubr.bf16.mxu0 %v3227
      %3505 = vmatmul.mubr.bf16.gmra.mxu0 %v3226
      %v3506 = vpop.f32.mrf.mxu0
      %v3507 = vadd.f32 %v3265, %v3506
      %v3508 = vpop.f32.mrf.mxu0
      %v3509 = vadd.f32 %v3269, %v3508
      %v3510 = vpop.f32.mrf.mxu0
      %v3511 = vadd.f32 %v3265, %v3510
      %v3512 = vpop.f32.mrf.mxu0
      %v3513 = vadd.f32 %v3269, %v3512
      %3514 = vdwg.mxu0
      %v3515 = vadd.f32 %v3467, %v1145
      %v3516 = vadd.f32 %v3469, %v1146
      %v3517 = vadd.f32 %v3471, %v1147
      %v3518 = vadd.f32 %v3473, %v1148
      %v3519 = vadd.f32 %v3477, %v1149
      %v3520 = vadd.f32 %v3479, %v1150
      %v3521 = vadd.f32 %v3481, %v1151
      %v3522 = vadd.f32 %v3483, %v1152
      %v3523 = vadd.f32 %v3487, %v1153
      %v3524 = vadd.f32 %v3489, %v1154
      %v3525 = vadd.f32 %v3491, %v1155
      %v3526 = vadd.f32 %v3493, %v1156
      %v3527 = vadd.f32 %v3497, %v1157
      %v3528 = vadd.f32 %v3499, %v1158
      %v3529 = vadd.f32 %v3501, %v1159
      %v3530 = vadd.f32 %v3503, %v1160
      %v3531 = vadd.f32 %v3507, %v1161
      %v3532 = vadd.f32 %v3509, %v1162
      %v3533 = vadd.f32 %v3511, %v1163
      %v3534 = vadd.f32 %v3513, %v1164
      %v3535 = vld [vmem:[%s840] sm:$0x3]
      %v3536 = vld [vmem:[%s844] sm:$0x3]
      %v3537 = vadd.f32 %v3515, %v3516
      %3538 = vadd.xlane.f32.xlu0 %v3537
      %v3539 = vpop.xlane.xlu0 %3538
      %v3540 = vadd.f32 %v3517, %v3518
      %3541 = vadd.xlane.f32.xlu0 %v3540
      %v3542 = vpop.xlane.xlu0 %3541
      %v3543 = vadd.f32 %v3519, %v3520
      %3544 = vadd.xlane.f32.xlu0 %v3543
      %v3545 = vpop.xlane.xlu0 %3544
      %v3546 = vadd.f32 %v3521, %v3522
      %3547 = vadd.xlane.f32.xlu0 %v3546
      %v3548 = vpop.xlane.xlu0 %3547
      %v3549 = vadd.f32 %v3523, %v3524
      %3550 = vadd.xlane.f32.xlu0 %v3549
      %v3551 = vpop.xlane.xlu0 %3550
      %v3552 = vadd.f32 %v3525, %v3526
      %3553 = vadd.xlane.f32.xlu0 %v3552
      %v3554 = vpop.xlane.xlu0 %3553
      %v3555 = vadd.f32 %v3527, %v3528
      %3556 = vadd.xlane.f32.xlu0 %v3555
      %v3557 = vpop.xlane.xlu0 %3556
      %v3558 = vadd.f32 %v3529, %v3530
      %3559 = vadd.xlane.f32.xlu0 %v3558
      %v3560 = vpop.xlane.xlu0 %3559
      %v3561 = vadd.f32 %v3531, %v3532
      %3562 = vadd.xlane.f32.xlu0 %v3561
      %v3563 = vpop.xlane.xlu0 %3562
      %v3564 = vadd.f32 %v3533, %v3534
      %3565 = vadd.xlane.f32.xlu0 %v3564
      %v3566 = vpop.xlane.xlu0 %3565
      %v3567 = vrcp.pop 256.0
      %v3568 = vmul.f32 %v3539, %v3567
      %v3569 = vmul.f32 %v3542, %v3567
      %v3570 = vmul.f32 %v3545, %v3567
      %v3571 = vmul.f32 %v3548, %v3567
      %v3572 = vmul.f32 %v3551, %v3567
      %v3573 = vmul.f32 %v3554, %v3567
      %v3574 = vmul.f32 %v3557, %v3567
      %v3575 = vmul.f32 %v3560, %v3567
      %v3576 = vmul.f32 %v3563, %v3567
      %v3577 = vmul.f32 %v3566, %v3567
      %v3578 = vsub.f32 %v3515, %v3568
      %v3579 = vsub.f32 %v3516, %v3568
      %v3580 = vsub.f32 %v3517, %v3569
      %v3581 = vsub.f32 %v3518, %v3569
      %v3582 = vsub.f32 %v3519, %v3570
      %v3583 = vsub.f32 %v3520, %v3570
      %v3584 = vsub.f32 %v3521, %v3571
      %v3585 = vsub.f32 %v3522, %v3571
      %v3586 = vsub.f32 %v3523, %v3572
      %v3587 = vsub.f32 %v3524, %v3572
      %v3588 = vsub.f32 %v3525, %v3573
      %v3589 = vsub.f32 %v3526, %v3573
      %v3590 = vsub.f32 %v3527, %v3574
      %v3591 = vsub.f32 %v3528, %v3574
      %v3592 = vsub.f32 %v3529, %v3575
      %v3593 = vsub.f32 %v3530, %v3575
      %v3594 = vsub.f32 %v3531, %v3576
      %v3595 = vsub.f32 %v3532, %v3576
      %v3596 = vsub.f32 %v3533, %v3577
      %v3597 = vsub.f32 %v3534, %v3577
      %v3598 = vmul.f32 %v3578, %v3578
      %v3599 = vmul.f32 %v3579, %v3579
      %v3600 = vmul.f32 %v3580, %v3580
      %v3601 = vmul.f32 %v3581, %v3581
      %v3602 = vmul.f32 %v3582, %v3582
      %v3603 = vmul.f32 %v3583, %v3583
      %v3604 = vmul.f32 %v3584, %v3584
      %v3605 = vmul.f32 %v3585, %v3585
      %v3606 = vmul.f32 %v3586, %v3586
      %v3607 = vmul.f32 %v3587, %v3587
      %v3608 = vmul.f32 %v3588, %v3588
      %v3609 = vmul.f32 %v3589, %v3589
      %v3610 = vmul.f32 %v3590, %v3590
      %v3611 = vmul.f32 %v3591, %v3591
      %v3612 = vmul.f32 %v3592, %v3592
      %v3613 = vmul.f32 %v3593, %v3593
      %v3614 = vmul.f32 %v3594, %v3594
      %v3615 = vmul.f32 %v3595, %v3595
      %v3616 = vmul.f32 %v3596, %v3596
      %v3617 = vmul.f32 %v3597, %v3597
      %v3618 = vadd.f32 %v3598, %v3599
      %3619 = vadd.xlane.f32.xlu0 %v3618
      %v3620 = vpop.xlane.xlu0 %3619
      %v3621 = vadd.f32 %v3600, %v3601
      %3622 = vadd.xlane.f32.xlu0 %v3621
      %v3623 = vpop.xlane.xlu0 %3622
      %v3624 = vadd.f32 %v3602, %v3603
      %3625 = vadd.xlane.f32.xlu0 %v3624
      %v3626 = vpop.xlane.xlu0 %3625
      %v3627 = vadd.f32 %v3604, %v3605
      %3628 = vadd.xlane.f32.xlu0 %v3627
      %v3629 = vpop.xlane.xlu0 %3628
      %v3630 = vadd.f32 %v3606, %v3607
      %3631 = vadd.xlane.f32.xlu0 %v3630
      %v3632 = vpop.xlane.xlu0 %3631
      %v3633 = vadd.f32 %v3608, %v3609
      %3634 = vadd.xlane.f32.xlu0 %v3633
      %v3635 = vpop.xlane.xlu0 %3634
      %v3636 = vadd.f32 %v3610, %v3611
      %3637 = vadd.xlane.f32.xlu0 %v3636
      %v3638 = vpop.xlane.xlu0 %3637
      %v3639 = vadd.f32 %v3612, %v3613
      %3640 = vadd.xlane.f32.xlu0 %v3639
      %v3641 = vpop.xlane.xlu0 %3640
      %v3642 = vadd.f32 %v3614, %v3615
      %3643 = vadd.xlane.f32.xlu0 %v3642
      %v3644 = vpop.xlane.xlu0 %3643
      %v3645 = vadd.f32 %v3616, %v3617
      %3646 = vadd.xlane.f32.xlu0 %v3645
      %v3647 = vpop.xlane.xlu0 %3646
      %v3648 = vmul.f32 %v3620, %v3567
      %v3649 = vmul.f32 %v3623, %v3567
      %v3650 = vmul.f32 %v3626, %v3567
      %v3651 = vmul.f32 %v3629, %v3567
      %v3652 = vmul.f32 %v3632, %v3567
      %v3653 = vmul.f32 %v3635, %v3567
      %v3654 = vmul.f32 %v3638, %v3567
      %v3655 = vmul.f32 %v3641, %v3567
      %v3656 = vmul.f32 %v3644, %v3567
      %v3657 = vmul.f32 %v3647, %v3567
      %v3658 = vadd.f32 %v3648, 1e-05
      %v3659 = vadd.f32 %v3649, 1e-05
      %v3660 = vadd.f32 %v3650, 1e-05
      %v3661 = vadd.f32 %v3651, 1e-05
      %v3662 = vadd.f32 %v3652, 1e-05
      %v3663 = vadd.f32 %v3653, 1e-05
      %v3664 = vadd.f32 %v3654, 1e-05
      %v3665 = vadd.f32 %v3655, 1e-05
      %v3666 = vadd.f32 %v3656, 1e-05
      %v3667 = vadd.f32 %v3657, 1e-05
      %v3668 = vrsqrt.pop %v3658
      %v3669 = vrsqrt.pop %v3659
      %v3670 = vrsqrt.pop %v3660
      %v3671 = vrsqrt.pop %v3661
      %v3672 = vrsqrt.pop %v3662
      %v3673 = vrsqrt.pop %v3663
      %v3674 = vrsqrt.pop %v3664
      %v3675 = vrsqrt.pop %v3665
      %v3676 = vrsqrt.pop %v3666
      %v3677 = vrsqrt.pop %v3667
      %v3678 = vmul.f32 %v3578, %v3668
      %v3679 = vmul.f32 %v3579, %v3668
      %v3680 = vmul.f32 %v3580, %v3669
      %v3681 = vmul.f32 %v3581, %v3669
      %v3682 = vmul.f32 %v3582, %v3670
      %v3683 = vmul.f32 %v3583, %v3670
      %v3684 = vmul.f32 %v3584, %v3671
      %v3685 = vmul.f32 %v3585, %v3671
      %v3686 = vmul.f32 %v3586, %v3672
      %v3687 = vmul.f32 %v3587, %v3672
      %v3688 = vmul.f32 %v3588, %v3673
      %v3689 = vmul.f32 %v3589, %v3673
      %v3690 = vmul.f32 %v3590, %v3674
      %v3691 = vmul.f32 %v3591, %v3674
      %v3692 = vmul.f32 %v3592, %v3675
      %v3693 = vmul.f32 %v3593, %v3675
      %v3694 = vmul.f32 %v3594, %v3676
      %v3695 = vmul.f32 %v3595, %v3676
      %v3696 = vmul.f32 %v3596, %v3677
      %v3697 = vmul.f32 %v3597, %v3677
      %v3699 = vlaneseq
      %v3700 = vshrl.u32 %v3699, 7
      %v3701 = vsub.s32 0, %v3700
      %v3702 = vrot.slane %v3535, %v3701
      %v3703 = vlaneseq
      %v3704 = vshrl.u32 %v3703, 7
      %v3705 = vsub.s32 1, %v3704
      %v3706 = vrot.slane %v3535, %v3705
      %v3709 = vmul.f32 %v3678, %v3702
      %v3710 = vmul.f32 %v3679, %v3706
      %v3711 = vmul.f32 %v3680, %v3702
      %v3712 = vmul.f32 %v3681, %v3706
      %v3713 = vmul.f32 %v3682, %v3702
      %v3714 = vmul.f32 %v3683, %v3706
      %v3715 = vmul.f32 %v3684, %v3702
      %v3716 = vmul.f32 %v3685, %v3706
      %v3717 = vmul.f32 %v3686, %v3702
      %v3718 = vmul.f32 %v3687, %v3706
      %v3719 = vmul.f32 %v3688, %v3702
      %v3720 = vmul.f32 %v3689, %v3706
      %v3721 = vmul.f32 %v3690, %v3702
      %v3722 = vmul.f32 %v3691, %v3706
      %v3723 = vmul.f32 %v3692, %v3702
      %v3724 = vmul.f32 %v3693, %v3706
      %v3725 = vmul.f32 %v3694, %v3702
      %v3726 = vmul.f32 %v3695, %v3706
      %v3727 = vmul.f32 %v3696, %v3702
      %v3728 = vmul.f32 %v3697, %v3706
      %v3730 = vlaneseq
      %v3731 = vshrl.u32 %v3730, 7
      %v3732 = vsub.s32 0, %v3731
      %v3733 = vrot.slane %v3536, %v3732
      %v3734 = vlaneseq
      %v3735 = vshrl.u32 %v3734, 7
      %v3736 = vsub.s32 1, %v3735
      %v3737 = vrot.slane %v3536, %v3736
      %v3740 = vadd.f32 %v3709, %v3733
      %v3741 = vadd.f32 %v3710, %v3737
      %v3742 = vadd.f32 %v3711, %v3733
      %v3743 = vadd.f32 %v3712, %v3737
      %v3744 = vadd.f32 %v3713, %v3733
      %v3745 = vadd.f32 %v3714, %v3737
      %v3746 = vadd.f32 %v3715, %v3733
      %v3747 = vadd.f32 %v3716, %v3737
      %v3748 = vadd.f32 %v3717, %v3733
      %v3749 = vadd.f32 %v3718, %v3737
      %v3750 = vadd.f32 %v3719, %v3733
      %v3751 = vadd.f32 %v3720, %v3737
      %v3752 = vadd.f32 %v3721, %v3733
      %v3753 = vadd.f32 %v3722, %v3737
      %v3754 = vadd.f32 %v3723, %v3733
      %v3755 = vadd.f32 %v3724, %v3737
      %v3756 = vadd.f32 %v3725, %v3733
      %v3757 = vadd.f32 %v3726, %v3737
      %v3758 = vadd.f32 %v3727, %v3733
      %v3759 = vadd.f32 %v3728, %v3737
      %v3760 = vpack.c.bf16 %v3742, %v3740
      %v3761 = vpack.c.bf16 %v3743, %v3741
      %v3762 = vpack.c.bf16 %v3746, %v3744
      %v3763 = vpack.c.bf16 %v3747, %v3745
      %v3764 = vpack.c.bf16 %v3750, %v3748
      %v3765 = vpack.c.bf16 %v3751, %v3749
      %v3766 = vpack.c.bf16 %v3754, %v3752
      %v3767 = vpack.c.bf16 %v3755, %v3753
      %v3768 = vpack.c.bf16 %v3758, %v3756
      %v3769 = vpack.c.bf16 %v3759, %v3757
      %v3770 = vld [vmem:[%s849] sm:$0xff]
      %v3771 = vld [vmem:[%s849 + $0x8] sm:$0xff]
      %v3772 = vld [vmem:[%s849 + $0x10] sm:$0xff]
      %v3773 = vld [vmem:[%s849 + $0x18] sm:$0xff]
      %v3774 = vld [vmem:[%s849 + $0x20] sm:$0xff]
      %v3775 = vld [vmem:[%s849 + $0x28] sm:$0xff]
      %v3776 = vld [vmem:[%s849 + $0x30] sm:$0xff]
      %v3777 = vld [vmem:[%s849 + $0x38] sm:$0xff]
      %v3778 = vld [vmem:[%s849 + $0x40] sm:$0xff]
      %v3779 = vld [vmem:[%s849 + $0x48] sm:$0xff]
      %v3780 = vld [vmem:[%s849 + $0x50] sm:$0xff]
      %v3781 = vld [vmem:[%s849 + $0x58] sm:$0xff]
      %v3782 = vld [vmem:[%s849 + $0x60] sm:$0xff]
      %v3783 = vld [vmem:[%s849 + $0x68] sm:$0xff]
      %v3784 = vld [vmem:[%s849 + $0x70] sm:$0xff]
      %v3785 = vld [vmem:[%s849 + $0x78] sm:$0xff]
      %v3786 = vld [vmem:[%s849 + $0x80] sm:$0xff]
      %v3787 = vld [vmem:[%s849 + $0x88] sm:$0xff]
      %v3788 = vld [vmem:[%s849 + $0x90] sm:$0xff]
      %v3789 = vld [vmem:[%s849 + $0x98] sm:$0xff]
      %v3790 = vld [vmem:[%s849 + $0xa0] sm:$0xff]
      %v3791 = vld [vmem:[%s849 + $0xa8] sm:$0xff]
      %v3792 = vld [vmem:[%s849 + $0xb0] sm:$0xff]
      %v3793 = vld [vmem:[%s849 + $0xb8] sm:$0xff]
      %v3794 = vld [vmem:[%s849 + $0xc0] sm:$0xff]
      %v3795 = vld [vmem:[%s849 + $0xc8] sm:$0xff]
      %v3796 = vld [vmem:[%s849 + $0xd0] sm:$0xff]
      %v3797 = vld [vmem:[%s849 + $0xd8] sm:$0xff]
      %v3798 = vld [vmem:[%s849 + $0xe0] sm:$0xff]
      %v3799 = vld [vmem:[%s849 + $0xe8] sm:$0xff]
      %v3800 = vld [vmem:[%s849 + $0xf0] sm:$0xff]
      %v3801 = vld [vmem:[%s849 + $0xf8] sm:$0xff]
      %v3802 = vld [vmem:[%s849 + $0x100] sm:$0xff]
      %v3803 = vld [vmem:[%s849 + $0x108] sm:$0xff]
      %v3804 = vld [vmem:[%s849 + $0x110] sm:$0xff]
      %v3805 = vld [vmem:[%s849 + $0x118] sm:$0xff]
      %v3806 = vld [vmem:[%s849 + $0x120] sm:$0xff]
      %v3807 = vld [vmem:[%s849 + $0x128] sm:$0xff]
      %v3808 = vld [vmem:[%s849 + $0x130] sm:$0xff]
      %v3809 = vld [vmem:[%s849 + $0x138] sm:$0xff]
      %v3810 = vld [vmem:[%s849 + $0x140] sm:$0xff]
      %v3811 = vld [vmem:[%s849 + $0x148] sm:$0xff]
      %v3812 = vld [vmem:[%s849 + $0x150] sm:$0xff]
      %v3813 = vld [vmem:[%s849 + $0x158] sm:$0xff]
      %v3814 = vld [vmem:[%s849 + $0x160] sm:$0xff]
      %v3815 = vld [vmem:[%s849 + $0x168] sm:$0xff]
      %v3816 = vld [vmem:[%s849 + $0x170] sm:$0xff]
      %v3817 = vld [vmem:[%s849 + $0x178] sm:$0xff]
      %v3818 = vld [vmem:[%s849 + $0x180] sm:$0xff]
      %v3819 = vld [vmem:[%s849 + $0x188] sm:$0xff]
      %v3820 = vld [vmem:[%s849 + $0x190] sm:$0xff]
      %v3821 = vld [vmem:[%s849 + $0x198] sm:$0xff]
      %v3822 = vld [vmem:[%s849 + $0x1a0] sm:$0xff]
      %v3823 = vld [vmem:[%s849 + $0x1a8] sm:$0xff]
      %v3824 = vld [vmem:[%s849 + $0x1b0] sm:$0xff]
      %v3825 = vld [vmem:[%s849 + $0x1b8] sm:$0xff]
      %v3826 = vld [vmem:[%s849 + $0x1c0] sm:$0xff]
      %v3827 = vld [vmem:[%s849 + $0x1c8] sm:$0xff]
      %v3828 = vld [vmem:[%s849 + $0x1d0] sm:$0xff]
      %v3829 = vld [vmem:[%s849 + $0x1d8] sm:$0xff]
      %v3830 = vld [vmem:[%s849 + $0x1e0] sm:$0xff]
      %v3831 = vld [vmem:[%s849 + $0x1e8] sm:$0xff]
      %v3832 = vld [vmem:[%s849 + $0x1f0] sm:$0xff]
      %v3833 = vld [vmem:[%s849 + $0x1f8] sm:$0xff]
      %v3834 = vld [vmem:[%s853] sm:$0xf]
      %v3836 = vlaneseq
      %v3837 = vshrl.u32 %v3836, 7
      %v3838 = vsub.s32 0, %v3837
      %v3839 = vrot.slane %v3834, %v3838
      %v3840 = vlaneseq
      %v3841 = vshrl.u32 %v3840, 7
      %v3842 = vsub.s32 1, %v3841
      %v3843 = vrot.slane %v3834, %v3842
      %v3844 = vlaneseq
      %v3845 = vshrl.u32 %v3844, 7
      %v3846 = vsub.s32 2, %v3845
      %v3847 = vrot.slane %v3834, %v3846
      %v3848 = vlaneseq
      %v3849 = vshrl.u32 %v3848, 7
      %v3850 = vsub.s32 3, %v3849
      %v3851 = vrot.slane %v3834, %v3850
      %v3920 = vunpack.c.l.b16 %v3770
      %v3921 = vunpack.c.h.b16 %v3770
      %v3922 = vunpack.c.l.b16 %v3771
      %v3923 = vunpack.c.h.b16 %v3771
      %v3924 = vunpack.c.l.b16 %v3772
      %v3925 = vunpack.c.h.b16 %v3772
      %v3926 = vunpack.c.l.b16 %v3773
      %v3927 = vunpack.c.h.b16 %v3773
      %v3928 = vunpack.c.l.b16 %v3774
      %v3929 = vunpack.c.h.b16 %v3774
      %v3930 = vunpack.c.l.b16 %v3775
      %v3931 = vunpack.c.h.b16 %v3775
      %v3932 = vunpack.c.l.b16 %v3776
      %v3933 = vunpack.c.h.b16 %v3776
      %v3934 = vunpack.c.l.b16 %v3777
      %v3935 = vunpack.c.h.b16 %v3777
      %v3936 = vunpack.c.l.b16 %v3778
      %v3937 = vunpack.c.h.b16 %v3778
      %v3938 = vunpack.c.l.b16 %v3779
      %v3939 = vunpack.c.h.b16 %v3779
      %v3940 = vunpack.c.l.b16 %v3780
      %v3941 = vunpack.c.h.b16 %v3780
      %v3942 = vunpack.c.l.b16 %v3781
      %v3943 = vunpack.c.h.b16 %v3781
      %v3944 = vunpack.c.l.b16 %v3782
      %v3945 = vunpack.c.h.b16 %v3782
      %v3946 = vunpack.c.l.b16 %v3783
      %v3947 = vunpack.c.h.b16 %v3783
      %v3948 = vunpack.c.l.b16 %v3784
      %v3949 = vunpack.c.h.b16 %v3784
      %v3950 = vunpack.c.l.b16 %v3785
      %v3951 = vunpack.c.h.b16 %v3785
      %v3952 = vunpack.c.l.b16 %v3786
      %v3953 = vunpack.c.h.b16 %v3786
      %v3954 = vunpack.c.l.b16 %v3787
      %v3955 = vunpack.c.h.b16 %v3787
      %v3956 = vunpack.c.l.b16 %v3788
      %v3957 = vunpack.c.h.b16 %v3788
      %v3958 = vunpack.c.l.b16 %v3789
      %v3959 = vunpack.c.h.b16 %v3789
      %v3960 = vunpack.c.l.b16 %v3790
      %v3961 = vunpack.c.h.b16 %v3790
      %v3962 = vunpack.c.l.b16 %v3791
      %v3963 = vunpack.c.h.b16 %v3791
      %v3964 = vunpack.c.l.b16 %v3792
      %v3965 = vunpack.c.h.b16 %v3792
      %v3966 = vunpack.c.l.b16 %v3793
      %v3967 = vunpack.c.h.b16 %v3793
      %v3968 = vunpack.c.l.b16 %v3794
      %v3969 = vunpack.c.h.b16 %v3794
      %v3970 = vunpack.c.l.b16 %v3795
      %v3971 = vunpack.c.h.b16 %v3795
      %v3972 = vunpack.c.l.b16 %v3796
      %v3973 = vunpack.c.h.b16 %v3796
      %v3974 = vunpack.c.l.b16 %v3797
      %v3975 = vunpack.c.h.b16 %v3797
      %v3976 = vunpack.c.l.b16 %v3798
      %v3977 = vunpack.c.h.b16 %v3798
      %v3978 = vunpack.c.l.b16 %v3799
      %v3979 = vunpack.c.h.b16 %v3799
      %v3980 = vunpack.c.l.b16 %v3800
      %v3981 = vunpack.c.h.b16 %v3800
      %v3982 = vunpack.c.l.b16 %v3801
      %v3983 = vunpack.c.h.b16 %v3801
      %v3984 = vunpack.c.l.b16 %v3802
      %v3985 = vunpack.c.h.b16 %v3802
      %v3986 = vunpack.c.l.b16 %v3803
      %v3987 = vunpack.c.h.b16 %v3803
      %v3988 = vunpack.c.l.b16 %v3804
      %v3989 = vunpack.c.h.b16 %v3804
      %v3990 = vunpack.c.l.b16 %v3805
      %v3991 = vunpack.c.h.b16 %v3805
      %v3992 = vunpack.c.l.b16 %v3806
      %v3993 = vunpack.c.h.b16 %v3806
      %v3994 = vunpack.c.l.b16 %v3807
      %v3995 = vunpack.c.h.b16 %v3807
      %v3996 = vunpack.c.l.b16 %v3808
      %v3997 = vunpack.c.h.b16 %v3808
      %v3998 = vunpack.c.l.b16 %v3809
      %v3999 = vunpack.c.h.b16 %v3809
      %v4000 = vunpack.c.l.b16 %v3810
      %v4001 = vunpack.c.h.b16 %v3810
      %v4002 = vunpack.c.l.b16 %v3811
      %v4003 = vunpack.c.h.b16 %v3811
      %v4004 = vunpack.c.l.b16 %v3812
      %v4005 = vunpack.c.h.b16 %v3812
      %v4006 = vunpack.c.l.b16 %v3813
      %v4007 = vunpack.c.h.b16 %v3813
      %v4008 = vunpack.c.l.b16 %v3814
      %v4009 = vunpack.c.h.b16 %v3814
      %v4010 = vunpack.c.l.b16 %v3815
      %v4011 = vunpack.c.h.b16 %v3815
      %v4012 = vunpack.c.l.b16 %v3816
      %v4013 = vunpack.c.h.b16 %v3816
      %v4014 = vunpack.c.l.b16 %v3817
      %v4015 = vunpack.c.h.b16 %v3817
      %v4016 = vunpack.c.l.b16 %v3818
      %v4017 = vunpack.c.h.b16 %v3818
      %v4018 = vunpack.c.l.b16 %v3819
      %v4019 = vunpack.c.h.b16 %v3819
      %v4020 = vunpack.c.l.b16 %v3820
      %v4021 = vunpack.c.h.b16 %v3820
      %v4022 = vunpack.c.l.b16 %v3821
      %v4023 = vunpack.c.h.b16 %v3821
      %v4024 = vunpack.c.l.b16 %v3822
      %v4025 = vunpack.c.h.b16 %v3822
      %v4026 = vunpack.c.l.b16 %v3823
      %v4027 = vunpack.c.h.b16 %v3823
      %v4028 = vunpack.c.l.b16 %v3824
      %v4029 = vunpack.c.h.b16 %v3824
      %v4030 = vunpack.c.l.b16 %v3825
      %v4031 = vunpack.c.h.b16 %v3825
      %v4032 = vunpack.c.l.b16 %v3826
      %v4033 = vunpack.c.h.b16 %v3826
      %v4034 = vunpack.c.l.b16 %v3827
      %v4035 = vunpack.c.h.b16 %v3827
      %v4036 = vunpack.c.l.b16 %v3828
      %v4037 = vunpack.c.h.b16 %v3828
      %v4038 = vunpack.c.l.b16 %v3829
      %v4039 = vunpack.c.h.b16 %v3829
      %v4040 = vunpack.c.l.b16 %v3830
      %v4041 = vunpack.c.h.b16 %v3830
      %v4042 = vunpack.c.l.b16 %v3831
      %v4043 = vunpack.c.h.b16 %v3831
      %v4044 = vunpack.c.l.b16 %v3832
      %v4045 = vunpack.c.h.b16 %v3832
      %v4046 = vunpack.c.l.b16 %v3833
      %v4047 = vunpack.c.h.b16 %v3833
      %v4048 = vpack.c.b16 %v3924, %v3920
      %v4049 = vpack.c.b16 %v3925, %v3921
      %v4050 = vpack.c.b16 %v3926, %v3922
      %v4051 = vpack.c.b16 %v3927, %v3923
      %v4052 = vpack.c.b16 %v3932, %v3928
      %v4053 = vpack.c.b16 %v3933, %v3929
      %v4054 = vpack.c.b16 %v3934, %v3930
      %v4055 = vpack.c.b16 %v3935, %v3931
      %v4056 = vpack.c.b16 %v3940, %v3936
      %v4057 = vpack.c.b16 %v3941, %v3937
      %v4058 = vpack.c.b16 %v3942, %v3938
      %v4059 = vpack.c.b16 %v3943, %v3939
      %v4060 = vpack.c.b16 %v3948, %v3944
      %v4061 = vpack.c.b16 %v3949, %v3945
      %v4062 = vpack.c.b16 %v3950, %v3946
      %v4063 = vpack.c.b16 %v3951, %v3947
      %v4064 = vpack.c.b16 %v3956, %v3952
      %v4065 = vpack.c.b16 %v3957, %v3953
      %v4066 = vpack.c.b16 %v3958, %v3954
      %v4067 = vpack.c.b16 %v3959, %v3955
      %v4068 = vpack.c.b16 %v3964, %v3960
      %v4069 = vpack.c.b16 %v3965, %v3961
      %v4070 = vpack.c.b16 %v3966, %v3962
      %v4071 = vpack.c.b16 %v3967, %v3963
      %v4072 = vpack.c.b16 %v3972, %v3968
      %v4073 = vpack.c.b16 %v3973, %v3969
      %v4074 = vpack.c.b16 %v3974, %v3970
      %v4075 = vpack.c.b16 %v3975, %v3971
      %v4076 = vpack.c.b16 %v3980, %v3976
      %v4077 = vpack.c.b16 %v3981, %v3977
      %v4078 = vpack.c.b16 %v3982, %v3978
      %v4079 = vpack.c.b16 %v3983, %v3979
      %v4080 = vpack.c.b16 %v3988, %v3984
      %v4081 = vpack.c.b16 %v3989, %v3985
      %v4082 = vpack.c.b16 %v3990, %v3986
      %v4083 = vpack.c.b16 %v3991, %v3987
      %v4084 = vpack.c.b16 %v3996, %v3992
      %v4085 = vpack.c.b16 %v3997, %v3993
      %v4086 = vpack.c.b16 %v3998, %v3994
      %v4087 = vpack.c.b16 %v3999, %v3995
      %v4088 = vpack.c.b16 %v4004, %v4000
      %v4089 = vpack.c.b16 %v4005, %v4001
      %v4090 = vpack.c.b16 %v4006, %v4002
      %v4091 = vpack.c.b16 %v4007, %v4003
      %v4092 = vpack.c.b16 %v4012, %v4008
      %v4093 = vpack.c.b16 %v4013, %v4009
      %v4094 = vpack.c.b16 %v4014, %v4010
      %v4095 = vpack.c.b16 %v4015, %v4011
      %v4096 = vpack.c.b16 %v4020, %v4016
      %v4097 = vpack.c.b16 %v4021, %v4017
      %v4098 = vpack.c.b16 %v4022, %v4018
      %v4099 = vpack.c.b16 %v4023, %v4019
      %v4100 = vpack.c.b16 %v4028, %v4024
      %v4101 = vpack.c.b16 %v4029, %v4025
      %v4102 = vpack.c.b16 %v4030, %v4026
      %v4103 = vpack.c.b16 %v4031, %v4027
      %v4104 = vpack.c.b16 %v4036, %v4032
      %v4105 = vpack.c.b16 %v4037, %v4033
      %v4106 = vpack.c.b16 %v4038, %v4034
      %v4107 = vpack.c.b16 %v4039, %v4035
      %v4108 = vpack.c.b16 %v4044, %v4040
      %v4109 = vpack.c.b16 %v4045, %v4041
      %v4110 = vpack.c.b16 %v4046, %v4042
      %v4111 = vpack.c.b16 %v4047, %v4043
      %4176 = vmatprep.subr.bf16.mxu0 %v4077
      %4177 = vmatpush1.bf16.msra.mxu0 %v4076
      %4178 = vmatprep.subr.bf16.mxu0 %v4073
      %4179 = vmatpush1.bf16.msra.mxu0 %v4072
      %4180 = vmatprep.subr.bf16.mxu0 %v4069
      %4181 = vmatpush1.bf16.msra.mxu0 %v4068
      %4182 = vmatprep.subr.bf16.mxu0 %v4065
      %4183 = vmatpush1.bf16.msra.mxu0 %v4064
      %4184 = vmatprep.subr.bf16.mxu0 %v4061
      %4185 = vmatpush1.bf16.msra.mxu0 %v4060
      %4186 = vmatprep.subr.bf16.mxu0 %v4057
      %4187 = vmatpush1.bf16.msra.mxu0 %v4056
      %4188 = vmatprep.subr.bf16.mxu0 %v4053
      %4189 = vmatpush1.bf16.msra.mxu0 %v4052
      %4190 = vmatprep.subr.bf16.mxu0 %v4049
      %4191 = vmatpush1.bf16.msra.mxu0 %v4048
      %4192 = vmatprep.subr.bf16.mxu0 %v4109
      %4193 = vmatpush2.bf16.msra.mxu0 %v4108
      %4194 = vmatprep.subr.bf16.mxu0 %v4105
      %4195 = vmatpush2.bf16.msra.mxu0 %v4104
      %4196 = vmatprep.subr.bf16.mxu0 %v4101
      %4197 = vmatpush2.bf16.msra.mxu0 %v4100
      %4198 = vmatprep.subr.bf16.mxu0 %v4097
      %4199 = vmatpush2.bf16.msra.mxu0 %v4096
      %4200 = vmatprep.subr.bf16.mxu0 %v4093
      %4201 = vmatpush2.bf16.msra.mxu0 %v4092
      %4202 = vmatprep.subr.bf16.mxu0 %v4089
      %4203 = vmatpush2.bf16.msra.mxu0 %v4088
      %4204 = vmatprep.subr.bf16.mxu0 %v4085
      %4205 = vmatpush2.bf16.msra.mxu0 %v4084
      %4206 = vmatprep.subr.bf16.mxu0 %v4081
      %4207 = vmatpush2.bf16.msra.mxu0 %v4080
      %4208 = vmatprep.mubr.bf16.mxu0 %v3761
      %4209 = vmatmul.mubr.bf16.gmra.mxu0 %v3760
      %v4210 = vpop.f32.mrf.mxu0
      %v4211 = vadd.f32 %v3839, %v4210
      %v4212 = vpop.f32.mrf.mxu0
      %v4213 = vadd.f32 %v3843, %v4212
      %v4214 = vpop.f32.mrf.mxu0
      %v4215 = vadd.f32 %v3839, %v4214
      %v4216 = vpop.f32.mrf.mxu0
      %v4217 = vadd.f32 %v3843, %v4216
      %4218 = vmatprep.mubr.bf16.mxu0 %v3763
      %4219 = vmatmul.mubr.bf16.gmra.mxu0 %v3762
      %v4220 = vpop.f32.mrf.mxu0
      %v4221 = vadd.f32 %v3839, %v4220
      %v4222 = vpop.f32.mrf.mxu0
      %v4223 = vadd.f32 %v3843, %v4222
      %v4224 = vpop.f32.mrf.mxu0
      %v4225 = vadd.f32 %v3839, %v4224
      %v4226 = vpop.f32.mrf.mxu0
      %v4227 = vadd.f32 %v3843, %v4226
      %4228 = vmatprep.mubr.bf16.mxu0 %v3765
      %4229 = vmatmul.mubr.bf16.gmra.mxu0 %v3764
      %v4230 = vpop.f32.mrf.mxu0
      %v4231 = vadd.f32 %v3839, %v4230
      %v4232 = vpop.f32.mrf.mxu0
      %v4233 = vadd.f32 %v3843, %v4232
      %v4234 = vpop.f32.mrf.mxu0
      %v4235 = vadd.f32 %v3839, %v4234
      %v4236 = vpop.f32.mrf.mxu0
      %v4237 = vadd.f32 %v3843, %v4236
      %4238 = vmatprep.mubr.bf16.mxu0 %v3767
      %4239 = vmatmul.mubr.bf16.gmra.mxu0 %v3766
      %v4240 = vpop.f32.mrf.mxu0
      %v4241 = vadd.f32 %v3839, %v4240
      %v4242 = vpop.f32.mrf.mxu0
      %v4243 = vadd.f32 %v3843, %v4242
      %v4244 = vpop.f32.mrf.mxu0
      %v4245 = vadd.f32 %v3839, %v4244
      %v4246 = vpop.f32.mrf.mxu0
      %v4247 = vadd.f32 %v3843, %v4246
      %4248 = vmatprep.mubr.bf16.mxu0 %v3769
      %4249 = vmatmul.mubr.bf16.gmra.mxu0 %v3768
      %v4250 = vpop.f32.mrf.mxu0
      %v4251 = vadd.f32 %v3839, %v4250
      %v4252 = vpop.f32.mrf.mxu0
      %v4253 = vadd.f32 %v3843, %v4252
      %v4254 = vpop.f32.mrf.mxu0
      %v4255 = vadd.f32 %v3839, %v4254
      %v4256 = vpop.f32.mrf.mxu0
      %v4257 = vadd.f32 %v3843, %v4256
      %4258 = vdwg.mxu0
      %4259 = vmatprep.subr.bf16.mxu0 %v4079
      %4260 = vmatpush1.bf16.msra.mxu0 %v4078
      %4261 = vmatprep.subr.bf16.mxu0 %v4075
      %4262 = vmatpush1.bf16.msra.mxu0 %v4074
      %4263 = vmatprep.subr.bf16.mxu0 %v4071
      %4264 = vmatpush1.bf16.msra.mxu0 %v4070
      %4265 = vmatprep.subr.bf16.mxu0 %v4067
      %4266 = vmatpush1.bf16.msra.mxu0 %v4066
      %4267 = vmatprep.subr.bf16.mxu0 %v4063
      %4268 = vmatpush1.bf16.msra.mxu0 %v4062
      %4269 = vmatprep.subr.bf16.mxu0 %v4059
      %4270 = vmatpush1.bf16.msra.mxu0 %v4058
      %4271 = vmatprep.subr.bf16.mxu0 %v4055
      %4272 = vmatpush1.bf16.msra.mxu0 %v4054
      %4273 = vmatprep.subr.bf16.mxu0 %v4051
      %4274 = vmatpush1.bf16.msra.mxu0 %v4050
      %4275 = vmatprep.subr.bf16.mxu0 %v4111
      %4276 = vmatpush2.bf16.msra.mxu0 %v4110
      %4277 = vmatprep.subr.bf16.mxu0 %v4107
      %4278 = vmatpush2.bf16.msra.mxu0 %v4106
      %4279 = vmatprep.subr.bf16.mxu0 %v4103
      %4280 = vmatpush2.bf16.msra.mxu0 %v4102
      %4281 = vmatprep.subr.bf16.mxu0 %v4099
      %4282 = vmatpush2.bf16.msra.mxu0 %v4098
      %4283 = vmatprep.subr.bf16.mxu0 %v4095
      %4284 = vmatpush2.bf16.msra.mxu0 %v4094
      %4285 = vmatprep.subr.bf16.mxu0 %v4091
      %4286 = vmatpush2.bf16.msra.mxu0 %v4090
      %4287 = vmatprep.subr.bf16.mxu0 %v4087
      %4288 = vmatpush2.bf16.msra.mxu0 %v4086
      %4289 = vmatprep.subr.bf16.mxu0 %v4083
      %4290 = vmatpush2.bf16.msra.mxu0 %v4082
      %4291 = vmatprep.mubr.bf16.mxu0 %v3761
      %4292 = vmatmul.mubr.bf16.gmra.mxu0 %v3760
      %v4293 = vpop.f32.mrf.mxu0
      %v4294 = vadd.f32 %v3847, %v4293
      %v4295 = vpop.f32.mrf.mxu0
      %v4296 = vadd.f32 %v3851, %v4295
      %v4297 = vpop.f32.mrf.mxu0
      %v4298 = vadd.f32 %v3847, %v4297
      %v4299 = vpop.f32.mrf.mxu0
      %v4300 = vadd.f32 %v3851, %v4299
      %4301 = vmatprep.mubr.bf16.mxu0 %v3763
      %4302 = vmatmul.mubr.bf16.gmra.mxu0 %v3762
      %v4303 = vpop.f32.mrf.mxu0
      %v4304 = vadd.f32 %v3847, %v4303
      %v4305 = vpop.f32.mrf.mxu0
      %v4306 = vadd.f32 %v3851, %v4305
      %v4307 = vpop.f32.mrf.mxu0
      %v4308 = vadd.f32 %v3847, %v4307
      %v4309 = vpop.f32.mrf.mxu0
      %v4310 = vadd.f32 %v3851, %v4309
      %4311 = vmatprep.mubr.bf16.mxu0 %v3765
      %4312 = vmatmul.mubr.bf16.gmra.mxu0 %v3764
      %v4313 = vpop.f32.mrf.mxu0
      %v4314 = vadd.f32 %v3847, %v4313
      %v4315 = vpop.f32.mrf.mxu0
      %v4316 = vadd.f32 %v3851, %v4315
      %v4317 = vpop.f32.mrf.mxu0
      %v4318 = vadd.f32 %v3847, %v4317
      %v4319 = vpop.f32.mrf.mxu0
      %v4320 = vadd.f32 %v3851, %v4319
      %4321 = vmatprep.mubr.bf16.mxu0 %v3767
      %4322 = vmatmul.mubr.bf16.gmra.mxu0 %v3766
      %v4323 = vpop.f32.mrf.mxu0
      %v4324 = vadd.f32 %v3847, %v4323
      %v4325 = vpop.f32.mrf.mxu0
      %v4326 = vadd.f32 %v3851, %v4325
      %v4327 = vpop.f32.mrf.mxu0
      %v4328 = vadd.f32 %v3847, %v4327
      %v4329 = vpop.f32.mrf.mxu0
      %v4330 = vadd.f32 %v3851, %v4329
      %4331 = vmatprep.mubr.bf16.mxu0 %v3769
      %4332 = vmatmul.mubr.bf16.gmra.mxu0 %v3768
      %v4333 = vpop.f32.mrf.mxu0
      %v4334 = vadd.f32 %v3847, %v4333
      %v4335 = vpop.f32.mrf.mxu0
      %v4336 = vadd.f32 %v3851, %v4335
      %v4337 = vpop.f32.mrf.mxu0
      %v4338 = vadd.f32 %v3847, %v4337
      %v4339 = vpop.f32.mrf.mxu0
      %v4340 = vadd.f32 %v3851, %v4339
      %4341 = vdwg.mxu0
      %v4342 = vmul.f32 %v4211, %v4211
      %v4343 = vmul.f32 %v4213, %v4213
      %v4344 = vmul.f32 %v4294, %v4294
      %v4345 = vmul.f32 %v4296, %v4296
      %v4346 = vmul.f32 %v4215, %v4215
      %v4347 = vmul.f32 %v4217, %v4217
      %v4348 = vmul.f32 %v4298, %v4298
      %v4349 = vmul.f32 %v4300, %v4300
      %v4350 = vmul.f32 %v4221, %v4221
      %v4351 = vmul.f32 %v4223, %v4223
      %v4352 = vmul.f32 %v4304, %v4304
      %v4353 = vmul.f32 %v4306, %v4306
      %v4354 = vmul.f32 %v4225, %v4225
      %v4355 = vmul.f32 %v4227, %v4227
      %v4356 = vmul.f32 %v4308, %v4308
      %v4357 = vmul.f32 %v4310, %v4310
      %v4358 = vmul.f32 %v4231, %v4231
      %v4359 = vmul.f32 %v4233, %v4233
      %v4360 = vmul.f32 %v4314, %v4314
      %v4361 = vmul.f32 %v4316, %v4316
      %v4362 = vmul.f32 %v4235, %v4235
      %v4363 = vmul.f32 %v4237, %v4237
      %v4364 = vmul.f32 %v4318, %v4318
      %v4365 = vmul.f32 %v4320, %v4320
      %v4366 = vmul.f32 %v4241, %v4241
      %v4367 = vmul.f32 %v4243, %v4243
      %v4368 = vmul.f32 %v4324, %v4324
      %v4369 = vmul.f32 %v4326, %v4326
      %v4370 = vmul.f32 %v4245, %v4245
      %v4371 = vmul.f32 %v4247, %v4247
      %v4372 = vmul.f32 %v4328, %v4328
      %v4373 = vmul.f32 %v4330, %v4330
      %v4374 = vmul.f32 %v4251, %v4251
      %v4375 = vmul.f32 %v4253, %v4253
      %v4376 = vmul.f32 %v4334, %v4334
      %v4377 = vmul.f32 %v4336, %v4336
      %v4378 = vmul.f32 %v4255, %v4255
      %v4379 = vmul.f32 %v4257, %v4257
      %v4380 = vmul.f32 %v4338, %v4338
      %v4381 = vmul.f32 %v4340, %v4340
      %v4382 = vmul.f32 %v4211, %v4342
      %v4383 = vmul.f32 %v4213, %v4343
      %v4384 = vmul.f32 %v4294, %v4344
      %v4385 = vmul.f32 %v4296, %v4345
      %v4386 = vmul.f32 %v4215, %v4346
      %v4387 = vmul.f32 %v4217, %v4347
      %v4388 = vmul.f32 %v4298, %v4348
      %v4389 = vmul.f32 %v4300, %v4349
      %v4390 = vmul.f32 %v4221, %v4350
      %v4391 = vmul.f32 %v4223, %v4351
      %v4392 = vmul.f32 %v4304, %v4352
      %v4393 = vmul.f32 %v4306, %v4353
      %v4394 = vmul.f32 %v4225, %v4354
      %v4395 = vmul.f32 %v4227, %v4355
      %v4396 = vmul.f32 %v4308, %v4356
      %v4397 = vmul.f32 %v4310, %v4357
      %v4398 = vmul.f32 %v4231, %v4358
      %v4399 = vmul.f32 %v4233, %v4359
      %v4400 = vmul.f32 %v4314, %v4360
      %v4401 = vmul.f32 %v4316, %v4361
      %v4402 = vmul.f32 %v4235, %v4362
      %v4403 = vmul.f32 %v4237, %v4363
      %v4404 = vmul.f32 %v4318, %v4364
      %v4405 = vmul.f32 %v4320, %v4365
      %v4406 = vmul.f32 %v4241, %v4366
      %v4407 = vmul.f32 %v4243, %v4367
      %v4408 = vmul.f32 %v4324, %v4368
      %v4409 = vmul.f32 %v4326, %v4369
      %v4410 = vmul.f32 %v4245, %v4370
      %v4411 = vmul.f32 %v4247, %v4371
      %v4412 = vmul.f32 %v4328, %v4372
      %v4413 = vmul.f32 %v4330, %v4373
      %v4414 = vmul.f32 %v4251, %v4374
      %v4415 = vmul.f32 %v4253, %v4375
      %v4416 = vmul.f32 %v4334, %v4376
      %v4417 = vmul.f32 %v4336, %v4377
      %v4418 = vmul.f32 %v4255, %v4378
      %v4419 = vmul.f32 %v4257, %v4379
      %v4420 = vmul.f32 %v4338, %v4380
      %v4421 = vmul.f32 %v4340, %v4381
      %v4422 = vmul.f32 %v4382, 0.044715
      %v4423 = vmul.f32 %v4383, 0.044715
      %v4424 = vmul.f32 %v4384, 0.044715
      %v4425 = vmul.f32 %v4385, 0.044715
      %v4426 = vmul.f32 %v4386, 0.044715
      %v4427 = vmul.f32 %v4387, 0.044715
      %v4428 = vmul.f32 %v4388, 0.044715
      %v4429 = vmul.f32 %v4389, 0.044715
      %v4430 = vmul.f32 %v4390, 0.044715
      %v4431 = vmul.f32 %v4391, 0.044715
      %v4432 = vmul.f32 %v4392, 0.044715
      %v4433 = vmul.f32 %v4393, 0.044715
      %v4434 = vmul.f32 %v4394, 0.044715
      %v4435 = vmul.f32 %v4395, 0.044715
      %v4436 = vmul.f32 %v4396, 0.044715
      %v4437 = vmul.f32 %v4397, 0.044715
      %v4438 = vmul.f32 %v4398, 0.044715
      %v4439 = vmul.f32 %v4399, 0.044715
      %v4440 = vmul.f32 %v4400, 0.044715
      %v4441 = vmul.f32 %v4401, 0.044715
      %v4442 = vmul.f32 %v4402, 0.044715
      %v4443 = vmul.f32 %v4403, 0.044715
      %v4444 = vmul.f32 %v4404, 0.044715
      %v4445 = vmul.f32 %v4405, 0.044715
      %v4446 = vmul.f32 %v4406, 0.044715
      %v4447 = vmul.f32 %v4407, 0.044715
      %v4448 = vmul.f32 %v4408, 0.044715
      %v4449 = vmul.f32 %v4409, 0.044715
      %v4450 = vmul.f32 %v4410, 0.044715
      %v4451 = vmul.f32 %v4411, 0.044715
      %v4452 = vmul.f32 %v4412, 0.044715
      %v4453 = vmul.f32 %v4413, 0.044715
      %v4454 = vmul.f32 %v4414, 0.044715
      %v4455 = vmul.f32 %v4415, 0.044715
      %v4456 = vmul.f32 %v4416, 0.044715
      %v4457 = vmul.f32 %v4417, 0.044715
      %v4458 = vmul.f32 %v4418, 0.044715
      %v4459 = vmul.f32 %v4419, 0.044715
      %v4460 = vmul.f32 %v4420, 0.044715
      %v4461 = vmul.f32 %v4421, 0.044715
      %v4462 = vadd.f32 %v4211, %v4422
      %v4463 = vadd.f32 %v4213, %v4423
      %v4464 = vadd.f32 %v4294, %v4424
      %v4465 = vadd.f32 %v4296, %v4425
      %v4466 = vadd.f32 %v4215, %v4426
      %v4467 = vadd.f32 %v4217, %v4427
      %v4468 = vadd.f32 %v4298, %v4428
      %v4469 = vadd.f32 %v4300, %v4429
      %v4470 = vadd.f32 %v4221, %v4430
      %v4471 = vadd.f32 %v4223, %v4431
      %v4472 = vadd.f32 %v4304, %v4432
      %v4473 = vadd.f32 %v4306, %v4433
      %v4474 = vadd.f32 %v4225, %v4434
      %v4475 = vadd.f32 %v4227, %v4435
      %v4476 = vadd.f32 %v4308, %v4436
      %v4477 = vadd.f32 %v4310, %v4437
      %v4478 = vadd.f32 %v4231, %v4438
      %v4479 = vadd.f32 %v4233, %v4439
      %v4480 = vadd.f32 %v4314, %v4440
      %v4481 = vadd.f32 %v4316, %v4441
      %v4482 = vadd.f32 %v4235, %v4442
      %v4483 = vadd.f32 %v4237, %v4443
      %v4484 = vadd.f32 %v4318, %v4444
      %v4485 = vadd.f32 %v4320, %v4445
      %v4486 = vadd.f32 %v4241, %v4446
      %v4487 = vadd.f32 %v4243, %v4447
      %v4488 = vadd.f32 %v4324, %v4448
      %v4489 = vadd.f32 %v4326, %v4449
      %v4490 = vadd.f32 %v4245, %v4450
      %v4491 = vadd.f32 %v4247, %v4451
      %v4492 = vadd.f32 %v4328, %v4452
      %v4493 = vadd.f32 %v4330, %v4453
      %v4494 = vadd.f32 %v4251, %v4454
      %v4495 = vadd.f32 %v4253, %v4455
      %v4496 = vadd.f32 %v4334, %v4456
      %v4497 = vadd.f32 %v4336, %v4457
      %v4498 = vadd.f32 %v4255, %v4458
      %v4499 = vadd.f32 %v4257, %v4459
      %v4500 = vadd.f32 %v4338, %v4460
      %v4501 = vadd.f32 %v4340, %v4461
      %v4502 = vmul.f32 %v4462, 0.7978846
      %v4503 = vmul.f32 %v4463, 0.7978846
      %v4504 = vmul.f32 %v4464, 0.7978846
      %v4505 = vmul.f32 %v4465, 0.7978846
      %v4506 = vmul.f32 %v4466, 0.7978846
      %v4507 = vmul.f32 %v4467, 0.7978846
      %v4508 = vmul.f32 %v4468, 0.7978846
      %v4509 = vmul.f32 %v4469, 0.7978846
      %v4510 = vmul.f32 %v4470, 0.7978846
      %v4511 = vmul.f32 %v4471, 0.7978846
      %v4512 = vmul.f32 %v4472, 0.7978846
      %v4513 = vmul.f32 %v4473, 0.7978846
      %v4514 = vmul.f32 %v4474, 0.7978846
      %v4515 = vmul.f32 %v4475, 0.7978846
      %v4516 = vmul.f32 %v4476, 0.7978846
      %v4517 = vmul.f32 %v4477, 0.7978846
      %v4518 = vmul.f32 %v4478, 0.7978846
      %v4519 = vmul.f32 %v4479, 0.7978846
      %v4520 = vmul.f32 %v4480, 0.7978846
      %v4521 = vmul.f32 %v4481, 0.7978846
      %v4522 = vmul.f32 %v4482, 0.7978846
      %v4523 = vmul.f32 %v4483, 0.7978846
      %v4524 = vmul.f32 %v4484, 0.7978846
      %v4525 = vmul.f32 %v4485, 0.7978846
      %v4526 = vmul.f32 %v4486, 0.7978846
      %v4527 = vmul.f32 %v4487, 0.7978846
      %v4528 = vmul.f32 %v4488, 0.7978846
      %v4529 = vmul.f32 %v4489, 0.7978846
      %v4530 = vmul.f32 %v4490, 0.7978846
      %v4531 = vmul.f32 %v4491, 0.7978846
      %v4532 = vmul.f32 %v4492, 0.7978846
      %v4533 = vmul.f32 %v4493, 0.7978846
      %v4534 = vmul.f32 %v4494, 0.7978846
      %v4535 = vmul.f32 %v4495, 0.7978846
      %v4536 = vmul.f32 %v4496, 0.7978846
      %v4537 = vmul.f32 %v4497, 0.7978846
      %v4538 = vmul.f32 %v4498, 0.7978846
      %v4539 = vmul.f32 %v4499, 0.7978846
      %v4540 = vmul.f32 %v4500, 0.7978846
      %v4541 = vmul.f32 %v4501, 0.7978846
      %v4542 = vtanh.pop %v4502
      %v4543 = vtanh.pop %v4503
      %v4544 = vtanh.pop %v4504
      %v4545 = vtanh.pop %v4505
      %v4546 = vtanh.pop %v4506
      %v4547 = vtanh.pop %v4507
      %v4548 = vtanh.pop %v4508
      %v4549 = vtanh.pop %v4509
      %v4550 = vtanh.pop %v4510
      %v4551 = vtanh.pop %v4511
      %v4552 = vtanh.pop %v4512
      %v4553 = vtanh.pop %v4513
      %v4554 = vtanh.pop %v4514
      %v4555 = vtanh.pop %v4515
      %v4556 = vtanh.pop %v4516
      %v4557 = vtanh.pop %v4517
      %v4558 = vtanh.pop %v4518
      %v4559 = vtanh.pop %v4519
      %v4560 = vtanh.pop %v4520
      %v4561 = vtanh.pop %v4521
      %v4562 = vtanh.pop %v4522
      %v4563 = vtanh.pop %v4523
      %v4564 = vtanh.pop %v4524
      %v4565 = vtanh.pop %v4525
      %v4566 = vtanh.pop %v4526
      %v4567 = vtanh.pop %v4527
      %v4568 = vtanh.pop %v4528
      %v4569 = vtanh.pop %v4529
      %v4570 = vtanh.pop %v4530
      %v4571 = vtanh.pop %v4531
      %v4572 = vtanh.pop %v4532
      %v4573 = vtanh.pop %v4533
      %v4574 = vtanh.pop %v4534
      %v4575 = vtanh.pop %v4535
      %v4576 = vtanh.pop %v4536
      %v4577 = vtanh.pop %v4537
      %v4578 = vtanh.pop %v4538
      %v4579 = vtanh.pop %v4539
      %v4580 = vtanh.pop %v4540
      %v4581 = vtanh.pop %v4541
      %v4582 = vadd.f32 %v4542, 1.0
      %v4583 = vadd.f32 %v4543, 1.0
      %v4584 = vadd.f32 %v4544, 1.0
      %v4585 = vadd.f32 %v4545, 1.0
      %v4586 = vadd.f32 %v4546, 1.0
      %v4587 = vadd.f32 %v4547, 1.0
      %v4588 = vadd.f32 %v4548, 1.0
      %v4589 = vadd.f32 %v4549, 1.0
      %v4590 = vadd.f32 %v4550, 1.0
      %v4591 = vadd.f32 %v4551, 1.0
      %v4592 = vadd.f32 %v4552, 1.0
      %v4593 = vadd.f32 %v4553, 1.0
      %v4594 = vadd.f32 %v4554, 1.0
      %v4595 = vadd.f32 %v4555, 1.0
      %v4596 = vadd.f32 %v4556, 1.0
      %v4597 = vadd.f32 %v4557, 1.0
      %v4598 = vadd.f32 %v4558, 1.0
      %v4599 = vadd.f32 %v4559, 1.0
      %v4600 = vadd.f32 %v4560, 1.0
      %v4601 = vadd.f32 %v4561, 1.0
      %v4602 = vadd.f32 %v4562, 1.0
      %v4603 = vadd.f32 %v4563, 1.0
      %v4604 = vadd.f32 %v4564, 1.0
      %v4605 = vadd.f32 %v4565, 1.0
      %v4606 = vadd.f32 %v4566, 1.0
      %v4607 = vadd.f32 %v4567, 1.0
      %v4608 = vadd.f32 %v4568, 1.0
      %v4609 = vadd.f32 %v4569, 1.0
      %v4610 = vadd.f32 %v4570, 1.0
      %v4611 = vadd.f32 %v4571, 1.0
      %v4612 = vadd.f32 %v4572, 1.0
      %v4613 = vadd.f32 %v4573, 1.0
      %v4614 = vadd.f32 %v4574, 1.0
      %v4615 = vadd.f32 %v4575, 1.0
      %v4616 = vadd.f32 %v4576, 1.0
      %v4617 = vadd.f32 %v4577, 1.0
      %v4618 = vadd.f32 %v4578, 1.0
      %v4619 = vadd.f32 %v4579, 1.0
      %v4620 = vadd.f32 %v4580, 1.0
      %v4621 = vadd.f32 %v4581, 1.0
      %v4622 = vmul.f32 %v4582, 0.5
      %v4623 = vmul.f32 %v4583, 0.5
      %v4624 = vmul.f32 %v4584, 0.5
      %v4625 = vmul.f32 %v4585, 0.5
      %v4626 = vmul.f32 %v4586, 0.5
      %v4627 = vmul.f32 %v4587, 0.5
      %v4628 = vmul.f32 %v4588, 0.5
      %v4629 = vmul.f32 %v4589, 0.5
      %v4630 = vmul.f32 %v4590, 0.5
      %v4631 = vmul.f32 %v4591, 0.5
      %v4632 = vmul.f32 %v4592, 0.5
      %v4633 = vmul.f32 %v4593, 0.5
      %v4634 = vmul.f32 %v4594, 0.5
      %v4635 = vmul.f32 %v4595, 0.5
      %v4636 = vmul.f32 %v4596, 0.5
      %v4637 = vmul.f32 %v4597, 0.5
      %v4638 = vmul.f32 %v4598, 0.5
      %v4639 = vmul.f32 %v4599, 0.5
      %v4640 = vmul.f32 %v4600, 0.5
      %v4641 = vmul.f32 %v4601, 0.5
      %v4642 = vmul.f32 %v4602, 0.5
      %v4643 = vmul.f32 %v4603, 0.5
      %v4644 = vmul.f32 %v4604, 0.5
      %v4645 = vmul.f32 %v4605, 0.5
      %v4646 = vmul.f32 %v4606, 0.5
      %v4647 = vmul.f32 %v4607, 0.5
      %v4648 = vmul.f32 %v4608, 0.5
      %v4649 = vmul.f32 %v4609, 0.5
      %v4650 = vmul.f32 %v4610, 0.5
      %v4651 = vmul.f32 %v4611, 0.5
      %v4652 = vmul.f32 %v4612, 0.5
      %v4653 = vmul.f32 %v4613, 0.5
      %v4654 = vmul.f32 %v4614, 0.5
      %v4655 = vmul.f32 %v4615, 0.5
      %v4656 = vmul.f32 %v4616, 0.5
      %v4657 = vmul.f32 %v4617, 0.5
      %v4658 = vmul.f32 %v4618, 0.5
      %v4659 = vmul.f32 %v4619, 0.5
      %v4660 = vmul.f32 %v4620, 0.5
      %v4661 = vmul.f32 %v4621, 0.5
      %v4662 = vmul.f32 %v4211, %v4622
      %v4663 = vmul.f32 %v4213, %v4623
      %v4664 = vmul.f32 %v4294, %v4624
      %v4665 = vmul.f32 %v4296, %v4625
      %v4666 = vmul.f32 %v4215, %v4626
      %v4667 = vmul.f32 %v4217, %v4627
      %v4668 = vmul.f32 %v4298, %v4628
      %v4669 = vmul.f32 %v4300, %v4629
      %v4670 = vmul.f32 %v4221, %v4630
      %v4671 = vmul.f32 %v4223, %v4631
      %v4672 = vmul.f32 %v4304, %v4632
      %v4673 = vmul.f32 %v4306, %v4633
      %v4674 = vmul.f32 %v4225, %v4634
      %v4675 = vmul.f32 %v4227, %v4635
      %v4676 = vmul.f32 %v4308, %v4636
      %v4677 = vmul.f32 %v4310, %v4637
      %v4678 = vmul.f32 %v4231, %v4638
      %v4679 = vmul.f32 %v4233, %v4639
      %v4680 = vmul.f32 %v4314, %v4640
      %v4681 = vmul.f32 %v4316, %v4641
      %v4682 = vmul.f32 %v4235, %v4642
      %v4683 = vmul.f32 %v4237, %v4643
      %v4684 = vmul.f32 %v4318, %v4644
      %v4685 = vmul.f32 %v4320, %v4645
      %v4686 = vmul.f32 %v4241, %v4646
      %v4687 = vmul.f32 %v4243, %v4647
      %v4688 = vmul.f32 %v4324, %v4648
      %v4689 = vmul.f32 %v4326, %v4649
      %v4690 = vmul.f32 %v4245, %v4650
      %v4691 = vmul.f32 %v4247, %v4651
      %v4692 = vmul.f32 %v4328, %v4652
      %v4693 = vmul.f32 %v4330, %v4653
      %v4694 = vmul.f32 %v4251, %v4654
      %v4695 = vmul.f32 %v4253, %v4655
      %v4696 = vmul.f32 %v4334, %v4656
      %v4697 = vmul.f32 %v4336, %v4657
      %v4698 = vmul.f32 %v4255, %v4658
      %v4699 = vmul.f32 %v4257, %v4659
      %v4700 = vmul.f32 %v4338, %v4660
      %v4701 = vmul.f32 %v4340, %v4661
      %v4702 = vpack.c.bf16 %v4666, %v4662
      %v4703 = vpack.c.bf16 %v4667, %v4663
      %v4704 = vpack.c.bf16 %v4668, %v4664
      %v4705 = vpack.c.bf16 %v4669, %v4665
      %v4706 = vpack.c.bf16 %v4674, %v4670
      %v4707 = vpack.c.bf16 %v4675, %v4671
      %v4708 = vpack.c.bf16 %v4676, %v4672
      %v4709 = vpack.c.bf16 %v4677, %v4673
      %v4710 = vpack.c.bf16 %v4682, %v4678
      %v4711 = vpack.c.bf16 %v4683, %v4679
      %v4712 = vpack.c.bf16 %v4684, %v4680
      %v4713 = vpack.c.bf16 %v4685, %v4681
      %v4714 = vpack.c.bf16 %v4690, %v4686
      %v4715 = vpack.c.bf16 %v4691, %v4687
      %v4716 = vpack.c.bf16 %v4692, %v4688
      %v4717 = vpack.c.bf16 %v4693, %v4689
      %v4718 = vpack.c.bf16 %v4698, %v4694
      %v4719 = vpack.c.bf16 %v4699, %v4695
      %v4720 = vpack.c.bf16 %v4700, %v4696
      %v4721 = vpack.c.bf16 %v4701, %v4697
      %v4722 = vld [vmem:[%s858] sm:$0xff]
      %v4723 = vld [vmem:[%s858 + $0x8] sm:$0xff]
      %v4724 = vld [vmem:[%s858 + $0x10] sm:$0xff]
      %v4725 = vld [vmem:[%s858 + $0x18] sm:$0xff]
      %v4726 = vld [vmem:[%s858 + $0x20] sm:$0xff]
      %v4727 = vld [vmem:[%s858 + $0x28] sm:$0xff]
      %v4728 = vld [vmem:[%s858 + $0x30] sm:$0xff]
      %v4729 = vld [vmem:[%s858 + $0x38] sm:$0xff]
      %v4730 = vld [vmem:[%s858 + $0x40] sm:$0xff]
      %v4731 = vld [vmem:[%s858 + $0x48] sm:$0xff]
      %v4732 = vld [vmem:[%s858 + $0x50] sm:$0xff]
      %v4733 = vld [vmem:[%s858 + $0x58] sm:$0xff]
      %v4734 = vld [vmem:[%s858 + $0x60] sm:$0xff]
      %v4735 = vld [vmem:[%s858 + $0x68] sm:$0xff]
      %v4736 = vld [vmem:[%s858 + $0x70] sm:$0xff]
      %v4737 = vld [vmem:[%s858 + $0x78] sm:$0xff]
      %v4738 = vld [vmem:[%s858 + $0x80] sm:$0xff]
      %v4739 = vld [vmem:[%s858 + $0x88] sm:$0xff]
      %v4740 = vld [vmem:[%s858 + $0x90] sm:$0xff]
      %v4741 = vld [vmem:[%s858 + $0x98] sm:$0xff]
      %v4742 = vld [vmem:[%s858 + $0xa0] sm:$0xff]
      %v4743 = vld [vmem:[%s858 + $0xa8] sm:$0xff]
      %v4744 = vld [vmem:[%s858 + $0xb0] sm:$0xff]
      %v4745 = vld [vmem:[%s858 + $0xb8] sm:$0xff]
      %v4746 = vld [vmem:[%s858 + $0xc0] sm:$0xff]
      %v4747 = vld [vmem:[%s858 + $0xc8] sm:$0xff]
      %v4748 = vld [vmem:[%s858 + $0xd0] sm:$0xff]
      %v4749 = vld [vmem:[%s858 + $0xd8] sm:$0xff]
      %v4750 = vld [vmem:[%s858 + $0xe0] sm:$0xff]
      %v4751 = vld [vmem:[%s858 + $0xe8] sm:$0xff]
      %v4752 = vld [vmem:[%s858 + $0xf0] sm:$0xff]
      %v4753 = vld [vmem:[%s858 + $0xf8] sm:$0xff]
      %v4754 = vld [vmem:[%s858 + $0x100] sm:$0xff]
      %v4755 = vld [vmem:[%s858 + $0x108] sm:$0xff]
      %v4756 = vld [vmem:[%s858 + $0x110] sm:$0xff]
      %v4757 = vld [vmem:[%s858 + $0x118] sm:$0xff]
      %v4758 = vld [vmem:[%s858 + $0x120] sm:$0xff]
      %v4759 = vld [vmem:[%s858 + $0x128] sm:$0xff]
      %v4760 = vld [vmem:[%s858 + $0x130] sm:$0xff]
      %v4761 = vld [vmem:[%s858 + $0x138] sm:$0xff]
      %v4762 = vld [vmem:[%s858 + $0x140] sm:$0xff]
      %v4763 = vld [vmem:[%s858 + $0x148] sm:$0xff]
      %v4764 = vld [vmem:[%s858 + $0x150] sm:$0xff]
      %v4765 = vld [vmem:[%s858 + $0x158] sm:$0xff]
      %v4766 = vld [vmem:[%s858 + $0x160] sm:$0xff]
      %v4767 = vld [vmem:[%s858 + $0x168] sm:$0xff]
      %v4768 = vld [vmem:[%s858 + $0x170] sm:$0xff]
      %v4769 = vld [vmem:[%s858 + $0x178] sm:$0xff]
      %v4770 = vld [vmem:[%s858 + $0x180] sm:$0xff]
      %v4771 = vld [vmem:[%s858 + $0x188] sm:$0xff]
      %v4772 = vld [vmem:[%s858 + $0x190] sm:$0xff]
      %v4773 = vld [vmem:[%s858 + $0x198] sm:$0xff]
      %v4774 = vld [vmem:[%s858 + $0x1a0] sm:$0xff]
      %v4775 = vld [vmem:[%s858 + $0x1a8] sm:$0xff]
      %v4776 = vld [vmem:[%s858 + $0x1b0] sm:$0xff]
      %v4777 = vld [vmem:[%s858 + $0x1b8] sm:$0xff]
      %v4778 = vld [vmem:[%s858 + $0x1c0] sm:$0xff]
      %v4779 = vld [vmem:[%s858 + $0x1c8] sm:$0xff]
      %v4780 = vld [vmem:[%s858 + $0x1d0] sm:$0xff]
      %v4781 = vld [vmem:[%s858 + $0x1d8] sm:$0xff]
      %v4782 = vld [vmem:[%s858 + $0x1e0] sm:$0xff]
      %v4783 = vld [vmem:[%s858 + $0x1e8] sm:$0xff]
      %v4784 = vld [vmem:[%s858 + $0x1f0] sm:$0xff]
      %v4785 = vld [vmem:[%s858 + $0x1f8] sm:$0xff]
      %v4786 = vld [vmem:[%s862] sm:$0x3]
      %v4788 = vlaneseq
      %v4789 = vshrl.u32 %v4788, 7
      %v4790 = vsub.s32 0, %v4789
      %v4791 = vrot.slane %v4786, %v4790
      %v4792 = vlaneseq
      %v4793 = vshrl.u32 %v4792, 7
      %v4794 = vsub.s32 1, %v4793
      %v4795 = vrot.slane %v4786, %v4794
      %v4862 = vunpack.c.l.b16 %v4722
      %v4863 = vunpack.c.h.b16 %v4722
      %v4864 = vunpack.c.l.b16 %v4723
      %v4865 = vunpack.c.h.b16 %v4723
      %v4866 = vunpack.c.l.b16 %v4724
      %v4867 = vunpack.c.h.b16 %v4724
      %v4868 = vunpack.c.l.b16 %v4725
      %v4869 = vunpack.c.h.b16 %v4725
      %v4870 = vunpack.c.l.b16 %v4726
      %v4871 = vunpack.c.h.b16 %v4726
      %v4872 = vunpack.c.l.b16 %v4727
      %v4873 = vunpack.c.h.b16 %v4727
      %v4874 = vunpack.c.l.b16 %v4728
      %v4875 = vunpack.c.h.b16 %v4728
      %v4876 = vunpack.c.l.b16 %v4729
      %v4877 = vunpack.c.h.b16 %v4729
      %v4878 = vunpack.c.l.b16 %v4730
      %v4879 = vunpack.c.h.b16 %v4730
      %v4880 = vunpack.c.l.b16 %v4731
      %v4881 = vunpack.c.h.b16 %v4731
      %v4882 = vunpack.c.l.b16 %v4732
      %v4883 = vunpack.c.h.b16 %v4732
      %v4884 = vunpack.c.l.b16 %v4733
      %v4885 = vunpack.c.h.b16 %v4733
      %v4886 = vunpack.c.l.b16 %v4734
      %v4887 = vunpack.c.h.b16 %v4734
      %v4888 = vunpack.c.l.b16 %v4735
      %v4889 = vunpack.c.h.b16 %v4735
      %v4890 = vunpack.c.l.b16 %v4736
      %v4891 = vunpack.c.h.b16 %v4736
      %v4892 = vunpack.c.l.b16 %v4737
      %v4893 = vunpack.c.h.b16 %v4737
      %v4894 = vunpack.c.l.b16 %v4738
      %v4895 = vunpack.c.h.b16 %v4738
      %v4896 = vunpack.c.l.b16 %v4739
      %v4897 = vunpack.c.h.b16 %v4739
      %v4898 = vunpack.c.l.b16 %v4740
      %v4899 = vunpack.c.h.b16 %v4740
      %v4900 = vunpack.c.l.b16 %v4741
      %v4901 = vunpack.c.h.b16 %v4741
      %v4902 = vunpack.c.l.b16 %v4742
      %v4903 = vunpack.c.h.b16 %v4742
      %v4904 = vunpack.c.l.b16 %v4743
      %v4905 = vunpack.c.h.b16 %v4743
      %v4906 = vunpack.c.l.b16 %v4744
      %v4907 = vunpack.c.h.b16 %v4744
      %v4908 = vunpack.c.l.b16 %v4745
      %v4909 = vunpack.c.h.b16 %v4745
      %v4910 = vunpack.c.l.b16 %v4746
      %v4911 = vunpack.c.h.b16 %v4746
      %v4912 = vunpack.c.l.b16 %v4747
      %v4913 = vunpack.c.h.b16 %v4747
      %v4914 = vunpack.c.l.b16 %v4748
      %v4915 = vunpack.c.h.b16 %v4748
      %v4916 = vunpack.c.l.b16 %v4749
      %v4917 = vunpack.c.h.b16 %v4749
      %v4918 = vunpack.c.l.b16 %v4750
      %v4919 = vunpack.c.h.b16 %v4750
      %v4920 = vunpack.c.l.b16 %v4751
      %v4921 = vunpack.c.h.b16 %v4751
      %v4922 = vunpack.c.l.b16 %v4752
      %v4923 = vunpack.c.h.b16 %v4752
      %v4924 = vunpack.c.l.b16 %v4753
      %v4925 = vunpack.c.h.b16 %v4753
      %v4926 = vunpack.c.l.b16 %v4754
      %v4927 = vunpack.c.h.b16 %v4754
      %v4928 = vunpack.c.l.b16 %v4755
      %v4929 = vunpack.c.h.b16 %v4755
      %v4930 = vunpack.c.l.b16 %v4756
      %v4931 = vunpack.c.h.b16 %v4756
      %v4932 = vunpack.c.l.b16 %v4757
      %v4933 = vunpack.c.h.b16 %v4757
      %v4934 = vunpack.c.l.b16 %v4758
      %v4935 = vunpack.c.h.b16 %v4758
      %v4936 = vunpack.c.l.b16 %v4759
      %v4937 = vunpack.c.h.b16 %v4759
      %v4938 = vunpack.c.l.b16 %v4760
      %v4939 = vunpack.c.h.b16 %v4760
      %v4940 = vunpack.c.l.b16 %v4761
      %v4941 = vunpack.c.h.b16 %v4761
      %v4942 = vunpack.c.l.b16 %v4762
      %v4943 = vunpack.c.h.b16 %v4762
      %v4944 = vunpack.c.l.b16 %v4763
      %v4945 = vunpack.c.h.b16 %v4763
      %v4946 = vunpack.c.l.b16 %v4764
      %v4947 = vunpack.c.h.b16 %v4764
      %v4948 = vunpack.c.l.b16 %v4765
      %v4949 = vunpack.c.h.b16 %v4765
      %v4950 = vunpack.c.l.b16 %v4766
      %v4951 = vunpack.c.h.b16 %v4766
      %v4952 = vunpack.c.l.b16 %v4767
      %v4953 = vunpack.c.h.b16 %v4767
      %v4954 = vunpack.c.l.b16 %v4768
      %v4955 = vunpack.c.h.b16 %v4768
      %v4956 = vunpack.c.l.b16 %v4769
      %v4957 = vunpack.c.h.b16 %v4769
      %v4958 = vunpack.c.l.b16 %v4770
      %v4959 = vunpack.c.h.b16 %v4770
      %v4960 = vunpack.c.l.b16 %v4771
      %v4961 = vunpack.c.h.b16 %v4771
      %v4962 = vunpack.c.l.b16 %v4772
      %v4963 = vunpack.c.h.b16 %v4772
      %v4964 = vunpack.c.l.b16 %v4773
      %v4965 = vunpack.c.h.b16 %v4773
      %v4966 = vunpack.c.l.b16 %v4774
      %v4967 = vunpack.c.h.b16 %v4774
      %v4968 = vunpack.c.l.b16 %v4775
      %v4969 = vunpack.c.h.b16 %v4775
      %v4970 = vunpack.c.l.b16 %v4776
      %v4971 = vunpack.c.h.b16 %v4776
      %v4972 = vunpack.c.l.b16 %v4777
      %v4973 = vunpack.c.h.b16 %v4777
      %v4974 = vunpack.c.l.b16 %v4778
      %v4975 = vunpack.c.h.b16 %v4778
      %v4976 = vunpack.c.l.b16 %v4779
      %v4977 = vunpack.c.h.b16 %v4779
      %v4978 = vunpack.c.l.b16 %v4780
      %v4979 = vunpack.c.h.b16 %v4780
      %v4980 = vunpack.c.l.b16 %v4781
      %v4981 = vunpack.c.h.b16 %v4781
      %v4982 = vunpack.c.l.b16 %v4782
      %v4983 = vunpack.c.h.b16 %v4782
      %v4984 = vunpack.c.l.b16 %v4783
      %v4985 = vunpack.c.h.b16 %v4783
      %v4986 = vunpack.c.l.b16 %v4784
      %v4987 = vunpack.c.h.b16 %v4784
      %v4988 = vunpack.c.l.b16 %v4785
      %v4989 = vunpack.c.h.b16 %v4785
      %v4990 = vpack.c.b16 %v4864, %v4862
      %v4991 = vpack.c.b16 %v4865, %v4863
      %v4992 = vpack.c.b16 %v4868, %v4866
      %v4993 = vpack.c.b16 %v4869, %v4867
      %v4994 = vpack.c.b16 %v4872, %v4870
      %v4995 = vpack.c.b16 %v4873, %v4871
      %v4996 = vpack.c.b16 %v4876, %v4874
      %v4997 = vpack.c.b16 %v4877, %v4875
      %v4998 = vpack.c.b16 %v4880, %v4878
      %v4999 = vpack.c.b16 %v4881, %v4879
      %v5000 = vpack.c.b16 %v4884, %v4882
      %v5001 = vpack.c.b16 %v4885, %v4883
      %v5002 = vpack.c.b16 %v4888, %v4886
      %v5003 = vpack.c.b16 %v4889, %v4887
      %v5004 = vpack.c.b16 %v4892, %v4890
      %v5005 = vpack.c.b16 %v4893, %v4891
      %v5006 = vpack.c.b16 %v4896, %v4894
      %v5007 = vpack.c.b16 %v4897, %v4895
      %v5008 = vpack.c.b16 %v4900, %v4898
      %v5009 = vpack.c.b16 %v4901, %v4899
      %v5010 = vpack.c.b16 %v4904, %v4902
      %v5011 = vpack.c.b16 %v4905, %v4903
      %v5012 = vpack.c.b16 %v4908, %v4906
      %v5013 = vpack.c.b16 %v4909, %v4907
      %v5014 = vpack.c.b16 %v4912, %v4910
      %v5015 = vpack.c.b16 %v4913, %v4911
      %v5016 = vpack.c.b16 %v4916, %v4914
      %v5017 = vpack.c.b16 %v4917, %v4915
      %v5018 = vpack.c.b16 %v4920, %v4918
      %v5019 = vpack.c.b16 %v4921, %v4919
      %v5020 = vpack.c.b16 %v4924, %v4922
      %v5021 = vpack.c.b16 %v4925, %v4923
      %v5022 = vpack.c.b16 %v4928, %v4926
      %v5023 = vpack.c.b16 %v4929, %v4927
      %v5024 = vpack.c.b16 %v4932, %v4930
      %v5025 = vpack.c.b16 %v4933, %v4931
      %v5026 = vpack.c.b16 %v4936, %v4934
      %v5027 = vpack.c.b16 %v4937, %v4935
      %v5028 = vpack.c.b16 %v4940, %v4938
      %v5029 = vpack.c.b16 %v4941, %v4939
      %v5030 = vpack.c.b16 %v4944, %v4942
      %v5031 = vpack.c.b16 %v4945, %v4943
      %v5032 = vpack.c.b16 %v4948, %v4946
      %v5033 = vpack.c.b16 %v4949, %v4947
      %v5034 = vpack.c.b16 %v4952, %v4950
      %v5035 = vpack.c.b16 %v4953, %v4951
      %v5036 = vpack.c.b16 %v4956, %v4954
      %v5037 = vpack.c.b16 %v4957, %v4955
      %v5038 = vpack.c.b16 %v4960, %v4958
      %v5039 = vpack.c.b16 %v4961, %v4959
      %v5040 = vpack.c.b16 %v4964, %v4962
      %v5041 = vpack.c.b16 %v4965, %v4963
      %v5042 = vpack.c.b16 %v4968, %v4966
      %v5043 = vpack.c.b16 %v4969, %v4967
      %v5044 = vpack.c.b16 %v4972, %v4970
      %v5045 = vpack.c.b16 %v4973, %v4971
      %v5046 = vpack.c.b16 %v4976, %v4974
      %v5047 = vpack.c.b16 %v4977, %v4975
      %v5048 = vpack.c.b16 %v4980, %v4978
      %v5049 = vpack.c.b16 %v4981, %v4979
      %v5050 = vpack.c.b16 %v4984, %v4982
      %v5051 = vpack.c.b16 %v4985, %v4983
      %v5052 = vpack.c.b16 %v4988, %v4986
      %v5053 = vpack.c.b16 %v4989, %v4987
      %5118 = vmatprep.subr.bf16.mxu0 %v5005
      %5119 = vmatpush1.bf16.msra.mxu0 %v5004
      %5120 = vmatprep.subr.bf16.mxu0 %v5003
      %5121 = vmatpush1.bf16.msra.mxu0 %v5002
      %5122 = vmatprep.subr.bf16.mxu0 %v5001
      %5123 = vmatpush1.bf16.msra.mxu0 %v5000
      %5124 = vmatprep.subr.bf16.mxu0 %v4999
      %5125 = vmatpush1.bf16.msra.mxu0 %v4998
      %5126 = vmatprep.subr.bf16.mxu0 %v4997
      %5127 = vmatpush1.bf16.msra.mxu0 %v4996
      %5128 = vmatprep.subr.bf16.mxu0 %v4995
      %5129 = vmatpush1.bf16.msra.mxu0 %v4994
      %5130 = vmatprep.subr.bf16.mxu0 %v4993
      %5131 = vmatpush1.bf16.msra.mxu0 %v4992
      %5132 = vmatprep.subr.bf16.mxu0 %v4991
      %5133 = vmatpush1.bf16.msra.mxu0 %v4990
      %5134 = vmatprep.subr.bf16.mxu0 %v5021
      %5135 = vmatpush2.bf16.msra.mxu0 %v5020
      %5136 = vmatprep.subr.bf16.mxu0 %v5019
      %5137 = vmatpush2.bf16.msra.mxu0 %v5018
      %5138 = vmatprep.subr.bf16.mxu0 %v5017
      %5139 = vmatpush2.bf16.msra.mxu0 %v5016
      %5140 = vmatprep.subr.bf16.mxu0 %v5015
      %5141 = vmatpush2.bf16.msra.mxu0 %v5014
      %5142 = vmatprep.subr.bf16.mxu0 %v5013
      %5143 = vmatpush2.bf16.msra.mxu0 %v5012
      %5144 = vmatprep.subr.bf16.mxu0 %v5011
      %5145 = vmatpush2.bf16.msra.mxu0 %v5010
      %5146 = vmatprep.subr.bf16.mxu0 %v5009
      %5147 = vmatpush2.bf16.msra.mxu0 %v5008
      %5148 = vmatprep.subr.bf16.mxu0 %v5007
      %5149 = vmatpush2.bf16.msra.mxu0 %v5006
      %5150 = vmatprep.mubr.bf16.mxu0 %v4703
      %5151 = vmatmul.mubr.bf16.gmra.mxu0 %v4702
      %v5152 = vpop.f32.mrf.mxu0
      %v5153 = vadd.f32 %v4791, %v5152
      %v5154 = vpop.f32.mrf.mxu0
      %v5155 = vadd.f32 %v4795, %v5154
      %v5156 = vpop.f32.mrf.mxu0
      %v5157 = vadd.f32 %v4791, %v5156
      %v5158 = vpop.f32.mrf.mxu0
      %v5159 = vadd.f32 %v4795, %v5158
      %5160 = vmatprep.mubr.bf16.mxu0 %v4707
      %5161 = vmatmul.mubr.bf16.gmra.mxu0 %v4706
      %v5162 = vpop.f32.mrf.mxu0
      %v5163 = vadd.f32 %v4791, %v5162
      %v5164 = vpop.f32.mrf.mxu0
      %v5165 = vadd.f32 %v4795, %v5164
      %v5166 = vpop.f32.mrf.mxu0
      %v5167 = vadd.f32 %v4791, %v5166
      %v5168 = vpop.f32.mrf.mxu0
      %v5169 = vadd.f32 %v4795, %v5168
      %5170 = vmatprep.mubr.bf16.mxu0 %v4711
      %5171 = vmatmul.mubr.bf16.gmra.mxu0 %v4710
      %v5172 = vpop.f32.mrf.mxu0
      %v5173 = vadd.f32 %v4791, %v5172
      %v5174 = vpop.f32.mrf.mxu0
      %v5175 = vadd.f32 %v4795, %v5174
      %v5176 = vpop.f32.mrf.mxu0
      %v5177 = vadd.f32 %v4791, %v5176
      %v5178 = vpop.f32.mrf.mxu0
      %v5179 = vadd.f32 %v4795, %v5178
      %5180 = vmatprep.mubr.bf16.mxu0 %v4715
      %5181 = vmatmul.mubr.bf16.gmra.mxu0 %v4714
      %v5182 = vpop.f32.mrf.mxu0
      %v5183 = vadd.f32 %v4791, %v5182
      %v5184 = vpop.f32.mrf.mxu0
      %v5185 = vadd.f32 %v4795, %v5184
      %v5186 = vpop.f32.mrf.mxu0
      %v5187 = vadd.f32 %v4791, %v5186
      %v5188 = vpop.f32.mrf.mxu0
      %v5189 = vadd.f32 %v4795, %v5188
      %5190 = vmatprep.mubr.bf16.mxu0 %v4719
      %5191 = vmatmul.mubr.bf16.gmra.mxu0 %v4718
      %v5192 = vpop.f32.mrf.mxu0
      %v5193 = vadd.f32 %v4791, %v5192
      %v5194 = vpop.f32.mrf.mxu0
      %v5195 = vadd.f32 %v4795, %v5194
      %v5196 = vpop.f32.mrf.mxu0
      %v5197 = vadd.f32 %v4791, %v5196
      %v5198 = vpop.f32.mrf.mxu0
      %v5199 = vadd.f32 %v4795, %v5198
      %5200 = vdwg.mxu0
      %5201 = vmatprep.subr.bf16.mxu0 %v5037
      %5202 = vmatpush1.bf16.msra.mxu0 %v5036
      %5203 = vmatprep.subr.bf16.mxu0 %v5035
      %5204 = vmatpush1.bf16.msra.mxu0 %v5034
      %5205 = vmatprep.subr.bf16.mxu0 %v5033
      %5206 = vmatpush1.bf16.msra.mxu0 %v5032
      %5207 = vmatprep.subr.bf16.mxu0 %v5031
      %5208 = vmatpush1.bf16.msra.mxu0 %v5030
      %5209 = vmatprep.subr.bf16.mxu0 %v5029
      %5210 = vmatpush1.bf16.msra.mxu0 %v5028
      %5211 = vmatprep.subr.bf16.mxu0 %v5027
      %5212 = vmatpush1.bf16.msra.mxu0 %v5026
      %5213 = vmatprep.subr.bf16.mxu0 %v5025
      %5214 = vmatpush1.bf16.msra.mxu0 %v5024
      %5215 = vmatprep.subr.bf16.mxu0 %v5023
      %5216 = vmatpush1.bf16.msra.mxu0 %v5022
      %5217 = vmatprep.subr.bf16.mxu0 %v5053
      %5218 = vmatpush2.bf16.msra.mxu0 %v5052
      %5219 = vmatprep.subr.bf16.mxu0 %v5051
      %5220 = vmatpush2.bf16.msra.mxu0 %v5050
      %5221 = vmatprep.subr.bf16.mxu0 %v5049
      %5222 = vmatpush2.bf16.msra.mxu0 %v5048
      %5223 = vmatprep.subr.bf16.mxu0 %v5047
      %5224 = vmatpush2.bf16.msra.mxu0 %v5046
      %5225 = vmatprep.subr.bf16.mxu0 %v5045
      %5226 = vmatpush2.bf16.msra.mxu0 %v5044
      %5227 = vmatprep.subr.bf16.mxu0 %v5043
      %5228 = vmatpush2.bf16.msra.mxu0 %v5042
      %5229 = vmatprep.subr.bf16.mxu0 %v5041
      %5230 = vmatpush2.bf16.msra.mxu0 %v5040
      %5231 = vmatprep.subr.bf16.mxu0 %v5039
      %5232 = vmatpush2.bf16.msra.mxu0 %v5038
      %5233 = vmatprep.mubr.bf16.mxu0 %v4705
      %5234 = vmatmul.mubr.bf16.gmra.mxu0 %v4704
      %v5235 = vpop.f32.mrf.mxu0
      %v5236 = vadd.f32 %v5153, %v5235
      %v5237 = vpop.f32.mrf.mxu0
      %v5238 = vadd.f32 %v5155, %v5237
      %v5239 = vpop.f32.mrf.mxu0
      %v5240 = vadd.f32 %v5157, %v5239
      %v5241 = vpop.f32.mrf.mxu0
      %v5242 = vadd.f32 %v5159, %v5241
      %5243 = vmatprep.mubr.bf16.mxu0 %v4709
      %5244 = vmatmul.mubr.bf16.gmra.mxu0 %v4708
      %v5245 = vpop.f32.mrf.mxu0
      %v5246 = vadd.f32 %v5163, %v5245
      %v5247 = vpop.f32.mrf.mxu0
      %v5248 = vadd.f32 %v5165, %v5247
      %v5249 = vpop.f32.mrf.mxu0
      %v5250 = vadd.f32 %v5167, %v5249
      %v5251 = vpop.f32.mrf.mxu0
      %v5252 = vadd.f32 %v5169, %v5251
      %5253 = vmatprep.mubr.bf16.mxu0 %v4713
      %5254 = vmatmul.mubr.bf16.gmra.mxu0 %v4712
      %v5255 = vpop.f32.mrf.mxu0
      %v5256 = vadd.f32 %v5173, %v5255
      %v5257 = vpop.f32.mrf.mxu0
      %v5258 = vadd.f32 %v5175, %v5257
      %v5259 = vpop.f32.mrf.mxu0
      %v5260 = vadd.f32 %v5177, %v5259
      %v5261 = vpop.f32.mrf.mxu0
      %v5262 = vadd.f32 %v5179, %v5261
      %5263 = vmatprep.mubr.bf16.mxu0 %v4717
      %5264 = vmatmul.mubr.bf16.gmra.mxu0 %v4716
      %v5265 = vpop.f32.mrf.mxu0
      %v5266 = vadd.f32 %v5183, %v5265
      %v5267 = vpop.f32.mrf.mxu0
      %v5268 = vadd.f32 %v5185, %v5267
      %v5269 = vpop.f32.mrf.mxu0
      %v5270 = vadd.f32 %v5187, %v5269
      %v5271 = vpop.f32.mrf.mxu0
      %v5272 = vadd.f32 %v5189, %v5271
      %5273 = vmatprep.mubr.bf16.mxu0 %v4721
      %5274 = vmatmul.mubr.bf16.gmra.mxu0 %v4720
      %v5275 = vpop.f32.mrf.mxu0
      %v5276 = vadd.f32 %v5193, %v5275
      %v5277 = vpop.f32.mrf.mxu0
      %v5278 = vadd.f32 %v5195, %v5277
      %v5279 = vpop.f32.mrf.mxu0
      %v5280 = vadd.f32 %v5197, %v5279
      %v5281 = vpop.f32.mrf.mxu0
      %v5282 = vadd.f32 %v5199, %v5281
      %5283 = vdwg.mxu0
      %v5284 = vadd.f32 %v5236, %v3740
      %v5285 = vadd.f32 %v5238, %v3741
      %v5286 = vadd.f32 %v5240, %v3742
      %v5287 = vadd.f32 %v5242, %v3743
      %v5288 = vadd.f32 %v5246, %v3744
      %v5289 = vadd.f32 %v5248, %v3745
      %v5290 = vadd.f32 %v5250, %v3746
      %v5291 = vadd.f32 %v5252, %v3747
      %v5292 = vadd.f32 %v5256, %v3748
      %v5293 = vadd.f32 %v5258, %v3749
      %v5294 = vadd.f32 %v5260, %v3750
      %v5295 = vadd.f32 %v5262, %v3751
      %v5296 = vadd.f32 %v5266, %v3752
      %v5297 = vadd.f32 %v5268, %v3753
      %v5298 = vadd.f32 %v5270, %v3754
      %v5299 = vadd.f32 %v5272, %v3755
      %v5300 = vadd.f32 %v5276, %v3756
      %v5301 = vadd.f32 %v5278, %v3757
      %v5302 = vadd.f32 %v5280, %v3758
      %v5303 = vadd.f32 %v5282, %v3759
      %v5304 = vld [vmem:[%s866] sm:$0x3]
      %v5305 = vld [vmem:[%s870] sm:$0x3]
      %v5306 = vadd.f32 %v5284, %v5285
      %5307 = vadd.xlane.f32.xlu0 %v5306
      %v5308 = vpop.xlane.xlu0 %5307
      %v5309 = vadd.f32 %v5286, %v5287
      %5310 = vadd.xlane.f32.xlu0 %v5309
      %v5311 = vpop.xlane.xlu0 %5310
      %v5312 = vadd.f32 %v5288, %v5289
      %5313 = vadd.xlane.f32.xlu0 %v5312
      %v5314 = vpop.xlane.xlu0 %5313
      %v5315 = vadd.f32 %v5290, %v5291
      %5316 = vadd.xlane.f32.xlu0 %v5315
      %v5317 = vpop.xlane.xlu0 %5316
      %v5318 = vadd.f32 %v5292, %v5293
      %5319 = vadd.xlane.f32.xlu0 %v5318
      %v5320 = vpop.xlane.xlu0 %5319
      %v5321 = vadd.f32 %v5294, %v5295
      %5322 = vadd.xlane.f32.xlu0 %v5321
      %v5323 = vpop.xlane.xlu0 %5322
      %v5324 = vadd.f32 %v5296, %v5297
      %5325 = vadd.xlane.f32.xlu0 %v5324
      %v5326 = vpop.xlane.xlu0 %5325
      %v5327 = vadd.f32 %v5298, %v5299
      %5328 = vadd.xlane.f32.xlu0 %v5327
      %v5329 = vpop.xlane.xlu0 %5328
      %v5330 = vadd.f32 %v5300, %v5301
      %5331 = vadd.xlane.f32.xlu0 %v5330
      %v5332 = vpop.xlane.xlu0 %5331
      %v5333 = vadd.f32 %v5302, %v5303
      %5334 = vadd.xlane.f32.xlu0 %v5333
      %v5335 = vpop.xlane.xlu0 %5334
      %v5336 = vmul.f32 %v5308, %v3567
      %v5337 = vmul.f32 %v5311, %v3567
      %v5338 = vmul.f32 %v5314, %v3567
      %v5339 = vmul.f32 %v5317, %v3567
      %v5340 = vmul.f32 %v5320, %v3567
      %v5341 = vmul.f32 %v5323, %v3567
      %v5342 = vmul.f32 %v5326, %v3567
      %v5343 = vmul.f32 %v5329, %v3567
      %v5344 = vmul.f32 %v5332, %v3567
      %v5345 = vmul.f32 %v5335, %v3567
      %v5346 = vsub.f32 %v5284, %v5336
      %v5347 = vsub.f32 %v5285, %v5336
      %v5348 = vsub.f32 %v5286, %v5337
      %v5349 = vsub.f32 %v5287, %v5337
      %v5350 = vsub.f32 %v5288, %v5338
      %v5351 = vsub.f32 %v5289, %v5338
      %v5352 = vsub.f32 %v5290, %v5339
      %v5353 = vsub.f32 %v5291, %v5339
      %v5354 = vsub.f32 %v5292, %v5340
      %v5355 = vsub.f32 %v5293, %v5340
      %v5356 = vsub.f32 %v5294, %v5341
      %v5357 = vsub.f32 %v5295, %v5341
      %v5358 = vsub.f32 %v5296, %v5342
      %v5359 = vsub.f32 %v5297, %v5342
      %v5360 = vsub.f32 %v5298, %v5343
      %v5361 = vsub.f32 %v5299, %v5343
      %v5362 = vsub.f32 %v5300, %v5344
      %v5363 = vsub.f32 %v5301, %v5344
      %v5364 = vsub.f32 %v5302, %v5345
      %v5365 = vsub.f32 %v5303, %v5345
      %v5366 = vmul.f32 %v5346, %v5346
      %v5367 = vmul.f32 %v5347, %v5347
      %v5368 = vmul.f32 %v5348, %v5348
      %v5369 = vmul.f32 %v5349, %v5349
      %v5370 = vmul.f32 %v5350, %v5350
      %v5371 = vmul.f32 %v5351, %v5351
      %v5372 = vmul.f32 %v5352, %v5352
      %v5373 = vmul.f32 %v5353, %v5353
      %v5374 = vmul.f32 %v5354, %v5354
      %v5375 = vmul.f32 %v5355, %v5355
      %v5376 = vmul.f32 %v5356, %v5356
      %v5377 = vmul.f32 %v5357, %v5357
      %v5378 = vmul.f32 %v5358, %v5358
      %v5379 = vmul.f32 %v5359, %v5359
      %v5380 = vmul.f32 %v5360, %v5360
      %v5381 = vmul.f32 %v5361, %v5361
      %v5382 = vmul.f32 %v5362, %v5362
      %v5383 = vmul.f32 %v5363, %v5363
      %v5384 = vmul.f32 %v5364, %v5364
      %v5385 = vmul.f32 %v5365, %v5365
      %v5386 = vadd.f32 %v5366, %v5367
      %5387 = vadd.xlane.f32.xlu0 %v5386
      %v5388 = vpop.xlane.xlu0 %5387
      %v5389 = vadd.f32 %v5368, %v5369
      %5390 = vadd.xlane.f32.xlu0 %v5389
      %v5391 = vpop.xlane.xlu0 %5390
      %v5392 = vadd.f32 %v5370, %v5371
      %5393 = vadd.xlane.f32.xlu0 %v5392
      %v5394 = vpop.xlane.xlu0 %5393
      %v5395 = vadd.f32 %v5372, %v5373
      %5396 = vadd.xlane.f32.xlu0 %v5395
      %v5397 = vpop.xlane.xlu0 %5396
      %v5398 = vadd.f32 %v5374, %v5375
      %5399 = vadd.xlane.f32.xlu0 %v5398
      %v5400 = vpop.xlane.xlu0 %5399
      %v5401 = vadd.f32 %v5376, %v5377
      %5402 = vadd.xlane.f32.xlu0 %v5401
      %v5403 = vpop.xlane.xlu0 %5402
      %v5404 = vadd.f32 %v5378, %v5379
      %5405 = vadd.xlane.f32.xlu0 %v5404
      %v5406 = vpop.xlane.xlu0 %5405
      %v5407 = vadd.f32 %v5380, %v5381
      %5408 = vadd.xlane.f32.xlu0 %v5407
      %v5409 = vpop.xlane.xlu0 %5408
      %v5410 = vadd.f32 %v5382, %v5383
      %5411 = vadd.xlane.f32.xlu0 %v5410
      %v5412 = vpop.xlane.xlu0 %5411
      %v5413 = vadd.f32 %v5384, %v5385
      %5414 = vadd.xlane.f32.xlu0 %v5413
      %v5415 = vpop.xlane.xlu0 %5414
      %v5416 = vmul.f32 %v5388, %v3567
      %v5417 = vmul.f32 %v5391, %v3567
      %v5418 = vmul.f32 %v5394, %v3567
      %v5419 = vmul.f32 %v5397, %v3567
      %v5420 = vmul.f32 %v5400, %v3567
      %v5421 = vmul.f32 %v5403, %v3567
      %v5422 = vmul.f32 %v5406, %v3567
      %v5423 = vmul.f32 %v5409, %v3567
      %v5424 = vmul.f32 %v5412, %v3567
      %v5425 = vmul.f32 %v5415, %v3567
      %v5426 = vadd.f32 %v5416, 1e-05
      %v5427 = vadd.f32 %v5417, 1e-05
      %v5428 = vadd.f32 %v5418, 1e-05
      %v5429 = vadd.f32 %v5419, 1e-05
      %v5430 = vadd.f32 %v5420, 1e-05
      %v5431 = vadd.f32 %v5421, 1e-05
      %v5432 = vadd.f32 %v5422, 1e-05
      %v5433 = vadd.f32 %v5423, 1e-05
      %v5434 = vadd.f32 %v5424, 1e-05
      %v5435 = vadd.f32 %v5425, 1e-05
      %v5436 = vrsqrt.pop %v5426
      %v5437 = vrsqrt.pop %v5427
      %v5438 = vrsqrt.pop %v5428
      %v5439 = vrsqrt.pop %v5429
      %v5440 = vrsqrt.pop %v5430
      %v5441 = vrsqrt.pop %v5431
      %v5442 = vrsqrt.pop %v5432
      %v5443 = vrsqrt.pop %v5433
      %v5444 = vrsqrt.pop %v5434
      %v5445 = vrsqrt.pop %v5435
      %v5446 = vmul.f32 %v5346, %v5436
      %v5447 = vmul.f32 %v5347, %v5436
      %v5448 = vmul.f32 %v5348, %v5437
      %v5449 = vmul.f32 %v5349, %v5437
      %v5450 = vmul.f32 %v5350, %v5438
      %v5451 = vmul.f32 %v5351, %v5438
      %v5452 = vmul.f32 %v5352, %v5439
      %v5453 = vmul.f32 %v5353, %v5439
      %v5454 = vmul.f32 %v5354, %v5440
      %v5455 = vmul.f32 %v5355, %v5440
      %v5456 = vmul.f32 %v5356, %v5441
      %v5457 = vmul.f32 %v5357, %v5441
      %v5458 = vmul.f32 %v5358, %v5442
      %v5459 = vmul.f32 %v5359, %v5442
      %v5460 = vmul.f32 %v5360, %v5443
      %v5461 = vmul.f32 %v5361, %v5443
      %v5462 = vmul.f32 %v5362, %v5444
      %v5463 = vmul.f32 %v5363, %v5444
      %v5464 = vmul.f32 %v5364, %v5445
      %v5465 = vmul.f32 %v5365, %v5445
      %v5467 = vlaneseq
      %v5468 = vshrl.u32 %v5467, 7
      %v5469 = vsub.s32 0, %v5468
      %v5470 = vrot.slane %v5304, %v5469
      %v5471 = vlaneseq
      %v5472 = vshrl.u32 %v5471, 7
      %v5473 = vsub.s32 1, %v5472
      %v5474 = vrot.slane %v5304, %v5473
      %v5477 = vmul.f32 %v5446, %v5470
      %v5478 = vmul.f32 %v5447, %v5474
      %v5479 = vmul.f32 %v5448, %v5470
      %v5480 = vmul.f32 %v5449, %v5474
      %v5481 = vmul.f32 %v5450, %v5470
      %v5482 = vmul.f32 %v5451, %v5474
      %v5483 = vmul.f32 %v5452, %v5470
      %v5484 = vmul.f32 %v5453, %v5474
      %v5485 = vmul.f32 %v5454, %v5470
      %v5486 = vmul.f32 %v5455, %v5474
      %v5487 = vmul.f32 %v5456, %v5470
      %v5488 = vmul.f32 %v5457, %v5474
      %v5489 = vmul.f32 %v5458, %v5470
      %v5490 = vmul.f32 %v5459, %v5474
      %v5491 = vmul.f32 %v5460, %v5470
      %v5492 = vmul.f32 %v5461, %v5474
      %v5493 = vmul.f32 %v5462, %v5470
      %v5494 = vmul.f32 %v5463, %v5474
      %v5495 = vmul.f32 %v5464, %v5470
      %v5496 = vmul.f32 %v5465, %v5474
      %v5498 = vlaneseq
      %v5499 = vshrl.u32 %v5498, 7
      %v5500 = vsub.s32 0, %v5499
      %v5501 = vrot.slane %v5305, %v5500
      %v5502 = vlaneseq
      %v5503 = vshrl.u32 %v5502, 7
      %v5504 = vsub.s32 1, %v5503
      %v5505 = vrot.slane %v5305, %v5504
      %v5508 = vadd.f32 %v5477, %v5501
      %v5509 = vadd.f32 %v5478, %v5505
      %v5510 = vadd.f32 %v5479, %v5501
      %v5511 = vadd.f32 %v5480, %v5505
      %v5512 = vadd.f32 %v5481, %v5501
      %v5513 = vadd.f32 %v5482, %v5505
      %v5514 = vadd.f32 %v5483, %v5501
      %v5515 = vadd.f32 %v5484, %v5505
      %v5516 = vadd.f32 %v5485, %v5501
      %v5517 = vadd.f32 %v5486, %v5505
      %v5518 = vadd.f32 %v5487, %v5501
      %v5519 = vadd.f32 %v5488, %v5505
      %v5520 = vadd.f32 %v5489, %v5501
      %v5521 = vadd.f32 %v5490, %v5505
      %v5522 = vadd.f32 %v5491, %v5501
      %v5523 = vadd.f32 %v5492, %v5505
      %v5524 = vadd.f32 %v5493, %v5501
      %v5525 = vadd.f32 %v5494, %v5505
      %v5526 = vadd.f32 %v5495, %v5501
      %v5527 = vadd.f32 %v5496, %v5505
      %5528 = vst [vmem:[#allocation2] sm:$0xff] %v5508
      %5529 = vst [vmem:[#allocation2 + $0x8] sm:$0xff] %v5509
      %5530 = vst [vmem:[#allocation2 + $0x10] sm:$0xff] %v5510
      %5531 = vst [vmem:[#allocation2 + $0x18] sm:$0xff] %v5511
      %5532 = vst [vmem:[#allocation2 + $0x20] sm:$0xff] %v5512
      %5533 = vst [vmem:[#allocation2 + $0x28] sm:$0xff] %v5513
      %5534 = vst [vmem:[#allocation2 + $0x30] sm:$0xff] %v5514
      %5535 = vst [vmem:[#allocation2 + $0x38] sm:$0xff] %v5515
      %5536 = vst [vmem:[#allocation2 + $0x40] sm:$0xff] %v5516
      %5537 = vst [vmem:[#allocation2 + $0x48] sm:$0xff] %v5517
      %5538 = vst [vmem:[#allocation2 + $0x50] sm:$0xff] %v5518
      %5539 = vst [vmem:[#allocation2 + $0x58] sm:$0xff] %v5519
      %5540 = vst [vmem:[#allocation2 + $0x60] sm:$0xff] %v5520
      %5541 = vst [vmem:[#allocation2 + $0x68] sm:$0xff] %v5521
      %5542 = vst [vmem:[#allocation2 + $0x70] sm:$0xff] %v5522
      %5543 = vst [vmem:[#allocation2 + $0x78] sm:$0xff] %v5523
      %5544 = vst [vmem:[#allocation2 + $0x80] sm:$0xff] %v5524
      %5545 = vst [vmem:[#allocation2 + $0x88] sm:$0xff] %v5525
      %5546 = vst [vmem:[#allocation2 + $0x90] sm:$0xff] %v5526
      %5547 = vst [vmem:[#allocation2 + $0x98] sm:$0xff] %v5527
      %p5548 = scmp.eq.s32.totalorder %s38, 1
      // Predicated region
      $region105: #{bd2bb_forward.1} parent=99 // pred_check
        %p5549 = pneg %p5548
      $region106: #{bd2bb_forward.1} parent=99 // pred_check_branch
        %5551 = sbr.rel (%p5549) target = $region108
      $region107: #{bd2bb_forward.1} parent=99 // pred_region
        %v5552 = vpack.c.bf16 %v5508, %v5508
        %v5553 = vpack.c.bf16 %v5509, %v5509
        %v5554 = vpack.c.bf16 %v5512, %v5512
        %v5555 = vpack.c.bf16 %v5513, %v5513
        %v5556 = vpack.c.bf16 %v5516, %v5516
        %v5557 = vpack.c.bf16 %v5517, %v5517
        %v5558 = vpack.c.bf16 %v5520, %v5520
        %v5559 = vpack.c.bf16 %v5521, %v5521
        %v5560 = vpack.c.bf16 %v5524, %v5524
        %v5561 = vpack.c.bf16 %v5525, %v5525
        %v5562 = vld [vmem:[%s16] sm:$0xff]
        %v5563 = vld [vmem:[%s16 + $0x8] sm:$0xff]
        %v5564 = vld [vmem:[%s16 + $0x10] sm:$0xff]
        %v5565 = vld [vmem:[%s16 + $0x18] sm:$0xff]
        %v5566 = vld [vmem:[%s16 + $0x20] sm:$0xff]
        %v5567 = vld [vmem:[%s16 + $0x28] sm:$0xff]
        %v5568 = vld [vmem:[%s16 + $0x30] sm:$0xff]
        %v5569 = vld [vmem:[%s16 + $0x38] sm:$0xff]
        %v5570 = vld [vmem:[%s16 + $0x40] sm:$0xff]
        %v5571 = vld [vmem:[%s16 + $0x48] sm:$0xff]
        %v5572 = vld [vmem:[%s16 + $0x50] sm:$0xff]
        %v5573 = vld [vmem:[%s16 + $0x58] sm:$0xff]
        %v5574 = vld [vmem:[%s16 + $0x60] sm:$0xff]
        %v5575 = vld [vmem:[%s16 + $0x68] sm:$0xff]
        %v5576 = vld [vmem:[%s16 + $0x70] sm:$0xff]
        %v5577 = vld [vmem:[%s16 + $0x78] sm:$0xff]
        %v5578 = vld [vmem:[%s16 + $0x80] sm:$0xff]
        %v5579 = vld [vmem:[%s16 + $0x88] sm:$0xff]
        %v5580 = vld [vmem:[%s16 + $0x90] sm:$0xff]
        %v5581 = vld [vmem:[%s16 + $0x98] sm:$0xff]
        %v5582 = vld [vmem:[%s16 + $0xa0] sm:$0xff]
        %v5583 = vld [vmem:[%s16 + $0xa8] sm:$0xff]
        %v5584 = vld [vmem:[%s16 + $0xb0] sm:$0xff]
        %v5585 = vld [vmem:[%s16 + $0xb8] sm:$0xff]
        %v5586 = vld [vmem:[%s16 + $0xc0] sm:$0xff]
        %v5587 = vld [vmem:[%s16 + $0xc8] sm:$0xff]
        %v5588 = vld [vmem:[%s16 + $0xd0] sm:$0xff]
        %v5589 = vld [vmem:[%s16 + $0xd8] sm:$0xff]
        %v5590 = vld [vmem:[%s16 + $0xe0] sm:$0xff]
        %v5591 = vld [vmem:[%s16 + $0xe8] sm:$0xff]
        %v5592 = vld [vmem:[%s16 + $0xf0] sm:$0xff]
        %v5593 = vld [vmem:[%s16 + $0xf8] sm:$0xff]
        %v5594 = vld [vmem:[%s17] sm:$0x3]
        %v5596 = vlaneseq
        %v5597 = vshrl.u32 %v5596, 7
        %v5598 = vsub.s32 0, %v5597
        %v5599 = vrot.slane %v5594, %v5598
        %v5600 = vlaneseq
        %v5601 = vshrl.u32 %v5600, 7
        %v5602 = vsub.s32 1, %v5601
        %v5603 = vrot.slane %v5594, %v5602
        %v5616 = vunpack.c.l.b16 %v5552
        %v5617 = vunpack.c.l.b16 %v5553
        %v5618 = vunpack.c.l.b16 %v5554
        %v5619 = vunpack.c.l.b16 %v5555
        %v5620 = vunpack.c.l.b16 %v5556
        %v5621 = vunpack.c.l.b16 %v5557
        %v5622 = vunpack.c.l.b16 %v5558
        %v5623 = vunpack.c.l.b16 %v5559
        %v5624 = vunpack.c.l.b16 %v5560
        %v5625 = vunpack.c.l.b16 %v5561
        %v5626 = vrot.slane %v5618, 7
        %vm5627 = vcmask 1041409
        %v5628 = vsel %vm5627, %v5626, %v5616
        %v5629 = vrot.slane %v5620, 6
        %vm5630 = vcmask 1042434
        %v5631 = vsel %vm5630, %v5629, %v5628
        %v5632 = vrot.slane %v5622, 5
        %vm5633 = vcmask 1043459
        %v5634 = vsel %vm5633, %v5632, %v5631
        %v5635 = vrot.slane %v5624, 4
        %vm5636 = vcmask 1044484
        %v5637 = vsel %vm5636, %v5635, %v5634
        %v5638 = vrot.slane %v5619, 7
        %v5639 = vsel %vm5627, %v5638, %v5617
        %v5640 = vrot.slane %v5621, 6
        %v5641 = vsel %vm5630, %v5640, %v5639
        %v5642 = vrot.slane %v5623, 5
        %v5643 = vsel %vm5633, %v5642, %v5641
        %v5644 = vrot.slane %v5625, 4
        %v5645 = vsel %vm5636, %v5644, %v5643
        %v5646 = vpack.c.b16 %v5637, %v5637
        %v5647 = vpack.c.b16 %v5645, %v5645
        %v5682 = vunpack.c.l.b16 %v5562
        %v5683 = vunpack.c.h.b16 %v5562
        %v5684 = vunpack.c.l.b16 %v5563
        %v5685 = vunpack.c.h.b16 %v5563
        %v5686 = vunpack.c.l.b16 %v5564
        %v5687 = vunpack.c.h.b16 %v5564
        %v5688 = vunpack.c.l.b16 %v5565
        %v5689 = vunpack.c.h.b16 %v5565
        %v5690 = vunpack.c.l.b16 %v5566
        %v5691 = vunpack.c.h.b16 %v5566
        %v5692 = vunpack.c.l.b16 %v5567
        %v5693 = vunpack.c.h.b16 %v5567
        %v5694 = vunpack.c.l.b16 %v5568
        %v5695 = vunpack.c.h.b16 %v5568
        %v5696 = vunpack.c.l.b16 %v5569
        %v5697 = vunpack.c.h.b16 %v5569
        %v5698 = vunpack.c.l.b16 %v5570
        %v5699 = vunpack.c.h.b16 %v5570
        %v5700 = vunpack.c.l.b16 %v5571
        %v5701 = vunpack.c.h.b16 %v5571
        %v5702 = vunpack.c.l.b16 %v5572
        %v5703 = vunpack.c.h.b16 %v5572
        %v5704 = vunpack.c.l.b16 %v5573
        %v5705 = vunpack.c.h.b16 %v5573
        %v5706 = vunpack.c.l.b16 %v5574
        %v5707 = vunpack.c.h.b16 %v5574
        %v5708 = vunpack.c.l.b16 %v5575
        %v5709 = vunpack.c.h.b16 %v5575
        %v5710 = vunpack.c.l.b16 %v5576
        %v5711 = vunpack.c.h.b16 %v5576
        %v5712 = vunpack.c.l.b16 %v5577
        %v5713 = vunpack.c.h.b16 %v5577
        %v5714 = vunpack.c.l.b16 %v5578
        %v5715 = vunpack.c.h.b16 %v5578
        %v5716 = vunpack.c.l.b16 %v5579
        %v5717 = vunpack.c.h.b16 %v5579
        %v5718 = vunpack.c.l.b16 %v5580
        %v5719 = vunpack.c.h.b16 %v5580
        %v5720 = vunpack.c.l.b16 %v5581
        %v5721 = vunpack.c.h.b16 %v5581
        %v5722 = vunpack.c.l.b16 %v5582
        %v5723 = vunpack.c.h.b16 %v5582
        %v5724 = vunpack.c.l.b16 %v5583
        %v5725 = vunpack.c.h.b16 %v5583
        %v5726 = vunpack.c.l.b16 %v5584
        %v5727 = vunpack.c.h.b16 %v5584
        %v5728 = vunpack.c.l.b16 %v5585
        %v5729 = vunpack.c.h.b16 %v5585
        %v5730 = vunpack.c.l.b16 %v5586
        %v5731 = vunpack.c.h.b16 %v5586
        %v5732 = vunpack.c.l.b16 %v5587
        %v5733 = vunpack.c.h.b16 %v5587
        %v5734 = vunpack.c.l.b16 %v5588
        %v5735 = vunpack.c.h.b16 %v5588
        %v5736 = vunpack.c.l.b16 %v5589
        %v5737 = vunpack.c.h.b16 %v5589
        %v5738 = vunpack.c.l.b16 %v5590
        %v5739 = vunpack.c.h.b16 %v5590
        %v5740 = vunpack.c.l.b16 %v5591
        %v5741 = vunpack.c.h.b16 %v5591
        %v5742 = vunpack.c.l.b16 %v5592
        %v5743 = vunpack.c.h.b16 %v5592
        %v5744 = vunpack.c.l.b16 %v5593
        %v5745 = vunpack.c.h.b16 %v5593
        %v5746 = vpack.c.b16 %v5684, %v5682
        %v5747 = vpack.c.b16 %v5685, %v5683
        %v5748 = vpack.c.b16 %v5688, %v5686
        %v5749 = vpack.c.b16 %v5689, %v5687
        %v5750 = vpack.c.b16 %v5692, %v5690
        %v5751 = vpack.c.b16 %v5693, %v5691
        %v5752 = vpack.c.b16 %v5696, %v5694
        %v5753 = vpack.c.b16 %v5697, %v5695
        %v5754 = vpack.c.b16 %v5700, %v5698
        %v5755 = vpack.c.b16 %v5701, %v5699
        %v5756 = vpack.c.b16 %v5704, %v5702
        %v5757 = vpack.c.b16 %v5705, %v5703
        %v5758 = vpack.c.b16 %v5708, %v5706
        %v5759 = vpack.c.b16 %v5709, %v5707
        %v5760 = vpack.c.b16 %v5712, %v5710
        %v5761 = vpack.c.b16 %v5713, %v5711
        %v5762 = vpack.c.b16 %v5716, %v5714
        %v5763 = vpack.c.b16 %v5717, %v5715
        %v5764 = vpack.c.b16 %v5720, %v5718
        %v5765 = vpack.c.b16 %v5721, %v5719
        %v5766 = vpack.c.b16 %v5724, %v5722
        %v5767 = vpack.c.b16 %v5725, %v5723
        %v5768 = vpack.c.b16 %v5728, %v5726
        %v5769 = vpack.c.b16 %v5729, %v5727
        %v5770 = vpack.c.b16 %v5732, %v5730
        %v5771 = vpack.c.b16 %v5733, %v5731
        %v5772 = vpack.c.b16 %v5736, %v5734
        %v5773 = vpack.c.b16 %v5737, %v5735
        %v5774 = vpack.c.b16 %v5740, %v5738
        %v5775 = vpack.c.b16 %v5741, %v5739
        %v5776 = vpack.c.b16 %v5744, %v5742
        %v5777 = vpack.c.b16 %v5745, %v5743
        %5810 = vmatprep.subr.bf16.mxu0 %v5761
        %5811 = vmatpush1.bf16.msra.mxu0 %v5760
        %5812 = vmatprep.subr.bf16.mxu0 %v5759
        %5813 = vmatpush1.bf16.msra.mxu0 %v5758
        %5814 = vmatprep.subr.bf16.mxu0 %v5757
        %5815 = vmatpush1.bf16.msra.mxu0 %v5756
        %5816 = vmatprep.subr.bf16.mxu0 %v5755
        %5817 = vmatpush1.bf16.msra.mxu0 %v5754
        %5818 = vmatprep.subr.bf16.mxu0 %v5753
        %5819 = vmatpush1.bf16.msra.mxu0 %v5752
        %5820 = vmatprep.subr.bf16.mxu0 %v5751
        %5821 = vmatpush1.bf16.msra.mxu0 %v5750
        %5822 = vmatprep.subr.bf16.mxu0 %v5749
        %5823 = vmatpush1.bf16.msra.mxu0 %v5748
        %5824 = vmatprep.subr.bf16.mxu0 %v5747
        %5825 = vmatpush1.bf16.msra.mxu0 %v5746
        %5826 = vmatprep.subr.bf16.mxu0 %v5777
        %5827 = vmatpush2.bf16.msra.mxu0 %v5776
        %5828 = vmatprep.subr.bf16.mxu0 %v5775
        %5829 = vmatpush2.bf16.msra.mxu0 %v5774
        %5830 = vmatprep.subr.bf16.mxu0 %v5773
        %5831 = vmatpush2.bf16.msra.mxu0 %v5772
        %5832 = vmatprep.subr.bf16.mxu0 %v5771
        %5833 = vmatpush2.bf16.msra.mxu0 %v5770
        %5834 = vmatprep.subr.bf16.mxu0 %v5769
        %5835 = vmatpush2.bf16.msra.mxu0 %v5768
        %5836 = vmatprep.subr.bf16.mxu0 %v5767
        %5837 = vmatpush2.bf16.msra.mxu0 %v5766
        %5838 = vmatprep.subr.bf16.mxu0 %v5765
        %5839 = vmatpush2.bf16.msra.mxu0 %v5764
        %5840 = vmatprep.subr.bf16.mxu0 %v5763
        %5841 = vmatpush2.bf16.msra.mxu0 %v5762
        %5842 = vmatprep.mubr.bf16.mxu0 %v5647
        %5843 = vmatmul.mubr.bf16.gmra.mxu0 %v5646
        %v5844 = vpop.f32.mrf.mxu0
        %v5845 = vadd.f32 %v5599, %v5844
        %v5846 = vpop.f32.mrf.mxu0
        %v5847 = vadd.f32 %v5603, %v5846
        %v5848 = vpop.f32.mrf.mxu0
        %v5849 = vpop.f32.mrf.mxu0
        %5850 = vdwg.mxu0
        %v5851 = vtanh.pop %v5845
        %v5852 = vtanh.pop %v5847
        %v5853 = vld [vmem:[%s18] sm:$0x3]
        %v5855 = vlaneseq
        %v5856 = vshrl.u32 %v5855, 7
        %v5857 = vsub.s32 0, %v5856
        %v5858 = vrot.slane %v5853, %v5857
        %v5859 = vlaneseq
        %v5860 = vshrl.u32 %v5859, 7
        %v5861 = vsub.s32 1, %v5860
        %v5862 = vrot.slane %v5853, %v5861
        %v5865 = vmul.f32 %v5851, %v5858
        %v5866 = vmul.f32 %v5852, %v5862
        %vm5867 = vcmask 1044480
        %v5868 = vsel %vm5867, %v5865, 0.0
        %v5869 = vsel %vm5867, %v5866, 0.0
        %v5870 = vadd.f32 %v5868, %v5869
        %5871 = vadd.xlane.f32.xlu0 %v5870
        %v5872 = vpop.xlane.xlu0 %5871
        %v5873 = vld [vmem:[#allocation3] sm:$0x1]
        %v5875 = vlaneseq
        %v5876 = vshrl.u32 %v5875, 7
        %v5877 = vsub.s32 0, %v5876
        %v5878 = vrot.slane %v5873, %v5877
        %v5880 = vadd.f32 %v5872, %v5878
        %vm5881 = vcmask 4096
        %5882 = vst.msk [vmem:[%s874] sm:$0x1f] %vm5881, %v5880
      $region108: #{bd2bb_forward.1} parent=99 // pred_fallthru
        _
      %p5883 = scmp.lt.s32.totalorder %s37, 1
      %s5884 = scalar_select %p5883, %s37, 1
      %s5885 = smul.addr %s5884, 8
      %s5886 = scalar_lea.vmem %s20, %s5885
      // Predicated region
      $region109: #{bd2bb_forward.1} parent=99 // pred_check
        %p5887 = pneg %p553
      $region110: #{bd2bb_forward.1} parent=99 // pred_check_branch
        %5889 = sbr.rel (%p5887) target = $region112
      $region111: #{bd2bb_forward.1} parent=99 // pred_region
        _
      $region112: #{bd2bb_forward.1} parent=99 // pred_fallthru
        _
    $region100: #{bd2bb_forward.1} parent=5 // pred_fallthru
      _
    %p5890 = scmp.le.s32.totalorder 2, %s28
    // Predicated region
    $region113: #{bd2bb_forward.1} parent=5 // pred_check
      %p5891 = pneg %p5890
    $region114: #{bd2bb_forward.1} parent=5 // pred_check_branch
      %5893 = sbr.rel (%p5891) target = $region116
    $region115: #{bd2bb_forward.1} parent=5 // pred_region
      %s5894 = ssub.s32 %s28, 2
      // Predicated region
      $region117: #{bd2bb_forward.1} parent=115 // pred_check
        %p5895 = pneg %p559
      $region118: #{bd2bb_forward.1} parent=115 // pred_check_branch
        %5897 = sbr.rel (%p5895) target = $region120
      $region119: #{bd2bb_forward.1} parent=115 // pred_region
        %p5898 = scmp.lt.s32.totalorder %s39, 1
        %s5899 = scalar_select %p5898, %s39, 1
        %s5900 = smul.addr %s5899, 8
        %s5901 = scalar_lea.vmem %s20, %s5900
      $region120: #{bd2bb_forward.1} parent=115 // pred_fallthru
        _
    $region116: #{bd2bb_forward.1} parent=5 // pred_fallthru
      _
  $region6: #{bd2bb_forward.1} parent=0 // loop_footer
    %s32 = sadd.s32 1, %s28
  $region7: #{bd2bb_forward.1} parent=0 // loop_footer_branch
    %27 = sbr.rel target = $region3
  $region8: #{bd2bb_forward.1} parent=0 // loop_exit
    _

</llo_original>
